<compile_context>
chip_gen: v7x
topology: tpu7x:2x2x1
jax: 0.10.0
libtpu: 0.0.40
codegen_flags: <defaults>
</compile_context>

<pallas_src>
import functools

import jax
import jax.numpy as jnp
from jax.experimental import pallas as pl
from jax.experimental.pallas import tpu as pltpu


def decoder_kernel(
    h0_ref, c0_ref, ctx_ref, srclen_ref,
    step_gates_ref,            # (C, 2, 4H): hoisted emb@W_ih[:E]+b, in step order
    w_ih_h_ref, w_hh_ref,      # (2, H, 4H) each (input-feeding half / recurrent)
    w_in_ref,                  # (2, H, H)  attention linear_in
    w_out_a_ref, w_out_b_ref,  # (2, H, H)  attention linear_out split halves
    lab_w_ref, lab_b_ref,      # (C*2H, C*2) block-diag, (1, C*2)
    out_ref,                   # (B, C*2)
    *, num_class, hidden, batch, src_seq,
):
    H, B, S, C = hidden, batch, src_seq, num_class

    ctx = ctx_ref[...]                                  # (B, S, H)
    srclen = srclen_ref[...]                            # (B, 1) int32
    pos = jax.lax.broadcasted_iota(jnp.int32, (B, S), 1)
    mask = (pos < srclen)[None]                         # (1, B, S) length mask
    ctx_b = ctx[None]                                   # (1, B, S, H)

    w_ih_h = w_ih_h_ref[...]
    w_hh = w_hh_ref[...]
    w_in = w_in_ref[...]
    w_out_a = w_out_a_ref[...]
    w_out_b = w_out_b_ref[...]

    def bdot(x, w):
        # (2, B, K) x (2, K, N) -> (2, B, N), batched over the direction axis.
        return jax.lax.dot_general(
            x, w, dimension_numbers=(((2,), (1,)), ((0,), (0,))),
            preferred_element_type=jnp.float32)

    # Both directions start from the same initial state; stack on dim 0.
    h = jnp.broadcast_to(h0_ref[...][None], (2, B, H))
    c = jnp.broadcast_to(c0_ref[...][None], (2, B, H))
    h_tilde = h                                         # input-feeding init

    f_outs = [None] * C                                 # forward h_tilde per class
    b_outs = [None] * C                                 # backward h_tilde per class

    for step in range(C):
        # Direction 0 handles class `step`, direction 1 handles class C-1-step.
        eg = step_gates_ref[step]                       # (2, 4H)
        gates = bdot(h_tilde, w_ih_h) + bdot(h, w_hh) + eg[:, None, :]  # (2,B,4H)

        # Activate the full 4H-wide register once, then slice per gate
        # (PyTorch LSTM gate order i, f, g, o).
        sig = jax.nn.sigmoid(gates)
        tah = jnp.tanh(gates)
        c = sig[..., H:2 * H] * c + sig[..., 0:H] * tah[..., 2 * H:3 * H]
        h = sig[..., 3 * H:4 * H] * jnp.tanh(c)

        # Luong "general" attention with length masking, both directions at once.
        target = bdot(h, w_in)                                        # (2, B, H)
        scores = jnp.sum(ctx_b * target[:, :, None, :], axis=3)       # (2, B, S)
        scores = jnp.where(mask, scores, -1e30)
        scores = scores - jnp.max(scores, axis=2, keepdims=True)
        p = jnp.exp(scores)
        denom = jnp.sum(p, axis=2, keepdims=True)                     # (2, B, 1)
        inv = pl.reciprocal(denom, approx=True)
        inv = inv * (2.0 - denom * inv)       # one Newton step -> ~f32 precision
        p = p * inv
        weighted = jnp.sum(ctx_b * p[..., None], axis=2)              # (2, B, H)
        # linear_out([ctx_vec ; h]) without the lane concat.
        h_tilde = jnp.tanh(bdot(weighted, w_out_a) + bdot(h, w_out_b))

        f_outs[step] = h_tilde[0]
        b_outs[C - 1 - step] = h_tilde[1]

    # One-time feature slab [f_0, b_0, f_1, b_1, ...] and one block-diag matmul
    # replacing the per-class label heads + width-2 concatenation.
    feats = jnp.concatenate(
        [hx for i in range(C) for hx in (f_outs[i], b_outs[i])], axis=1)  # (B, C*2H)
    out_ref[...] = (
        jnp.dot(feats, lab_w_ref[...], preferred_element_type=jnp.float32)
        + lab_b_ref[...])


def seq2seq_decoder_forward(h0, c0, ctx, src_len, params, *, num_class):
    B, H = h0.shape
    S = ctx.shape[1]
    E = params['emb'].shape[1]
    C = num_class
    hi = jax.lax.Precision.HIGHEST

    # --- Host-side precompute (constant folded by XLA for fixed params) -----
    # Hoisted constant gate term per direction/class: emb[c] @ W_ih[:E] + b.
    eg_f = jnp.dot(params['emb'], params['f_wih'][:E], precision=hi) + params['f_b']
    eg_b = jnp.dot(params['emb'], params['b_wih'][:E], precision=hi) + params['b_b']
    # Arrange in step order: [:, 0] = fwd class `step`, [:, 1] = bwd class C-1-step.
    step_gates = jnp.stack([eg_f, eg_b[::-1]], axis=1)                  # (C, 2, 4H)

    w_ih_h = jnp.stack([params['f_wih'][E:], params['b_wih'][E:]], axis=0)   # (2,H,4H)
    w_hh = jnp.stack([params['f_whh'], params['b_whh']], axis=0)             # (2,H,4H)
    w_in = jnp.stack([params['f_attn_in'], params['b_attn_in']], axis=0)     # (2,H,H)
    w_out_a = jnp.stack([params['f_attn_out'][:H], params['b_attn_out'][:H]], axis=0)
    w_out_b = jnp.stack([params['f_attn_out'][H:], params['b_attn_out'][H:]], axis=0)

    # Block-diagonal label head: one (C*2H, C*2) matmul replaces C tiny ones.
    lab_w_bd = jnp.zeros((C * 2 * H, C * 2), jnp.float32)
    for i in range(C):
        lab_w_bd = lab_w_bd.at[i * 2 * H:(i + 1) * 2 * H, 2 * i:2 * i + 2].set(
            params['lab_w'][i])
    lab_b = params['lab_b'].reshape(1, C * 2)

    kernel = functools.partial(decoder_kernel, num_class=C, hidden=H,
                               batch=B, src_seq=S)
    args = (h0, c0, ctx, src_len.reshape(B, 1).astype(jnp.int32),
            step_gates, w_ih_h, w_hh, w_in, w_out_a, w_out_b, lab_w_bd, lab_b)
    out = pl.pallas_call(
        kernel,
        out_shape=jax.ShapeDtypeStruct((B, C * 2), jnp.float32),
        in_specs=[pl.BlockSpec(memory_space=pltpu.MemorySpace.VMEM)] * len(args),
        out_specs=pl.BlockSpec(memory_space=pltpu.MemorySpace.VMEM),
    )(*args)
    return out.reshape(B, C, 2)   # == torch.stack(pred_list, dim=1)


def reference_forward(h0, c0, ctx, src_len, params, *, num_class):
    """Pure-JAX reference mirroring the PyTorch forward (same math)."""
    B, H = h0.shape
    S = ctx.shape[1]
    E = params['emb'].shape[1]
    mask = jnp.arange(S)[None, :] < src_len[:, None]

    def lstm_step(x, h, c, wih, whh, b):
        gates = x @ wih + h @ whh + b
        i = jax.nn.sigmoid(gates[:, :H])
        f = jax.nn.sigmoid(gates[:, H:2 * H])
        g = jnp.tanh(gates[:, 2 * H:3 * H])
        o = jax.nn.sigmoid(gates[:, 3 * H:])
        c = f * c + i * g
        return o * jnp.tanh(c), c

    def attn(h, w_in, w_out):
        t = h @ w_in
        s = jnp.einsum('bsh,bh->bs', ctx, t)
        s = jnp.where(mask, s, -1e30)
        p = jax.nn.softmax(s, axis=1)
        w = jnp.einsum('bs,bsh->bh', p, ctx)
        return jnp.tanh(jnp.concatenate([w, h], axis=1) @ w_out)

    def run(order, wih, whh, b, w_in, w_out):
        h, c, ht = h0, c0, h0
        outs = []
        for cls in order:
            e = jnp.broadcast_to(params['emb'][cls][None, :], (B, E))
            h, c = lstm_step(jnp.concatenate([e, ht], axis=1), h, c, wih, whh, b)
            ht = attn(h, w_in, w_out)
            outs.append(ht)
        return outs

    hs_f = run(range(num_class), params['f_wih'], params['f_whh'], params['f_b'],
               params['f_attn_in'], params['f_attn_out'])
    hs_b = run(range(num_class - 1, -1, -1), params['b_wih'], params['b_whh'],
               params['b_b'], params['b_attn_in'], params['b_attn_out'])
    preds = []
    for i in range(num_class):
        hbi = jnp.concatenate([hs_f[i], hs_b[num_class - 1 - i]], axis=1)
        preds.append(hbi @ params['lab_w'][i] + params['lab_b'][i][None, :])
    return jnp.stack(preds, axis=1)


def init_params(key, *, num_class, emb_dim, hidden):
    E, H = emb_dim, hidden
    keys = jax.random.split(key, 16)
    n = lambda k, shape: (jax.random.normal(k, shape, jnp.float32) * 0.1)
    params = {
        'emb': n(keys[0], (num_class, E)),                # shared fwd/bwd embedding
        # LSTM weights stored pre-transposed so the math is x @ W.
        'f_wih': n(keys[1], (E + H, 4 * H)),
        'f_whh': n(keys[2], (H, 4 * H)),
        'f_b': n(keys[3], (1, 4 * H)),                    # b_ih + b_hh combined
        'b_wih': n(keys[4], (E + H, 4 * H)),
        'b_whh': n(keys[5], (H, 4 * H)),
        'b_b': n(keys[6], (1, 4 * H)),
        'f_attn_in': n(keys[7], (H, H)),                  # linear_in (no bias)
        'f_attn_out': n(keys[8], (2 * H, H)),             # linear_out (no bias)
        'b_attn_in': n(keys[9], (H, H)),
        'b_attn_out': n(keys[10], (2 * H, H)),
        'lab_w': n(keys[11], (num_class, 2 * H, 2)),      # per-class Linear(2H, 2)
        'lab_b': n(keys[12], (num_class, 2)),
    }
    return params


if __name__ == "__main__":
    B, E, H, S, NUM_CLASS = 2, 16, 32, 8, 4

    key = jax.random.PRNGKey(0)
    k_params, k_h, k_c, k_ctx = jax.random.split(key, 4)

    params = init_params(k_params, num_class=NUM_CLASS, emb_dim=E, hidden=H)
    h0 = jax.random.normal(k_h, (B, H), jnp.float32)      # init_hidden[0]
    c0 = jax.random.normal(k_c, (B, H), jnp.float32)      # init_hidden[1]
    ctx = jax.random.normal(k_ctx, (B, S, H), jnp.float32)
    src_len = jnp.array([S, S - 3], dtype=jnp.int32)

    out = seq2seq_decoder_forward(h0, c0, ctx, src_len, params,
                                  num_class=NUM_CLASS)
    out = jax.block_until_ready(out)
    assert out.shape == (B, NUM_CLASS, 2), out.shape

    ref = reference_forward(h0, c0, ctx, src_len, params, num_class=NUM_CLASS)
    ref = jax.block_until_ready(ref)
    assert jnp.allclose(out, ref, rtol=1e-4, atol=1e-4), (
        float(jnp.max(jnp.abs(out - ref))))

    print("KERNEL_OK")
</pallas_src>

<mosaic_0001>
module attributes {stable_mosaic.version = 11 : i64} {
  func.func @decoder_kernel(%arg0: memref<2x32xf32, #tpu.memory_space<vmem>>, %arg1: memref<2x32xf32, #tpu.memory_space<vmem>>, %arg2: memref<2x8x32xf32, #tpu.memory_space<vmem>>, %arg3: memref<2x1xi32, #tpu.memory_space<vmem>>, %arg4: memref<4x2x128xf32, #tpu.memory_space<vmem>>, %arg5: memref<2x32x128xf32, #tpu.memory_space<vmem>>, %arg6: memref<2x32x128xf32, #tpu.memory_space<vmem>>, %arg7: memref<2x32x32xf32, #tpu.memory_space<vmem>>, %arg8: memref<2x32x32xf32, #tpu.memory_space<vmem>>, %arg9: memref<2x32x32xf32, #tpu.memory_space<vmem>>, %arg10: memref<256x8xf32, #tpu.memory_space<vmem>>, %arg11: memref<1x8xf32, #tpu.memory_space<vmem>>, %arg12: memref<2x8xf32, #tpu.memory_space<vmem>>) attributes {dimension_semantics = [], scalar_prefetch = 0 : i64, scratch_operands = 0 : i64, tpu.core_type = #tpu.core_type<tc>} {
    %c0 = arith.constant 0 : index
    %c0_0 = arith.constant 0 : index
    %c0_1 = arith.constant 0 : index
    %0 = vector.load %arg2[%c0, %c0_0, %c0_1] : memref<2x8x32xf32, #tpu.memory_space<vmem>>, vector<2x8x32xf32>
    %c0_2 = arith.constant 0 : index
    %c0_3 = arith.constant 0 : index
    %1 = vector.load %arg3[%c0_2, %c0_3] : memref<2x1xi32, #tpu.memory_space<vmem>>, vector<2x1xi32>
    %2 = tpu.iota {dimensions = array<i32: 1>} : vector<2x8xi32>
    %3 = vector.broadcast %1 : vector<2x1xi32> to vector<2x8xi32>
    %4 = arith.cmpi slt, %2, %3 : vector<2x8xi32>
    %5 = vector.shape_cast %4 : vector<2x8xi1> to vector<1x2x8xi1>
    %6 = vector.shape_cast %0 : vector<2x8x32xf32> to vector<1x2x8x32xf32>
    %c0_4 = arith.constant 0 : index
    %c0_5 = arith.constant 0 : index
    %c0_6 = arith.constant 0 : index
    %7 = vector.load %arg5[%c0_4, %c0_5, %c0_6] : memref<2x32x128xf32, #tpu.memory_space<vmem>>, vector<2x32x128xf32>
    %c0_7 = arith.constant 0 : index
    %c0_8 = arith.constant 0 : index
    %c0_9 = arith.constant 0 : index
    %8 = vector.load %arg6[%c0_7, %c0_8, %c0_9] : memref<2x32x128xf32, #tpu.memory_space<vmem>>, vector<2x32x128xf32>
    %c0_10 = arith.constant 0 : index
    %c0_11 = arith.constant 0 : index
    %c0_12 = arith.constant 0 : index
    %9 = vector.load %arg7[%c0_10, %c0_11, %c0_12] : memref<2x32x32xf32, #tpu.memory_space<vmem>>, vector<2x32x32xf32>
    %c0_13 = arith.constant 0 : index
    %c0_14 = arith.constant 0 : index
    %c0_15 = arith.constant 0 : index
    %10 = vector.load %arg8[%c0_13, %c0_14, %c0_15] : memref<2x32x32xf32, #tpu.memory_space<vmem>>, vector<2x32x32xf32>
    %c0_16 = arith.constant 0 : index
    %c0_17 = arith.constant 0 : index
    %c0_18 = arith.constant 0 : index
    %11 = vector.load %arg9[%c0_16, %c0_17, %c0_18] : memref<2x32x32xf32, #tpu.memory_space<vmem>>, vector<2x32x32xf32>
    %c0_19 = arith.constant 0 : index
    %c0_20 = arith.constant 0 : index
    %12 = vector.load %arg0[%c0_19, %c0_20] : memref<2x32xf32, #tpu.memory_space<vmem>>, vector<2x32xf32>
    %13 = vector.shape_cast %12 : vector<2x32xf32> to vector<1x2x32xf32>
    %14 = vector.shape_cast %13 : vector<1x2x32xf32> to vector<1x2x32xf32>
    %15 = vector.broadcast %14 : vector<1x2x32xf32> to vector<2x2x32xf32>
    %c0_21 = arith.constant 0 : index
    %c0_22 = arith.constant 0 : index
    %16 = vector.load %arg1[%c0_21, %c0_22] : memref<2x32xf32, #tpu.memory_space<vmem>>, vector<2x32xf32>
    %17 = vector.shape_cast %16 : vector<2x32xf32> to vector<1x2x32xf32>
    %18 = vector.shape_cast %17 : vector<1x2x32xf32> to vector<1x2x32xf32>
    %19 = vector.broadcast %18 : vector<1x2x32xf32> to vector<2x2x32xf32>
    %c0_23 = arith.constant 0 : index
    %c0_24 = arith.constant 0 : index
    %c0_25 = arith.constant 0 : index
    %20 = vector.load %arg4[%c0_23, %c0_24, %c0_25] : memref<4x2x128xf32, #tpu.memory_space<vmem>>, vector<1x2x128xf32>
    %21 = vector.shape_cast %20 : vector<1x2x128xf32> to vector<2x128xf32>
    %cst = arith.constant dense<0.000000e+00> : vector<2x2x128xf32>
    %22 = tpu.matmul %15, %7, %cst {dimension_numbers = #tpu.dot_dimension_numbers<[2], [1], [1], [2], [0, 0, 0, 1, 1, 2], [0], [0]>} : vector<2x2x32xf32>, vector<2x32x128xf32>, vector<2x2x128xf32> -> vector<2x2x128xf32>
    %cst_26 = arith.constant dense<0.000000e+00> : vector<2x2x128xf32>
    %23 = tpu.matmul %15, %8, %cst_26 {dimension_numbers = #tpu.dot_dimension_numbers<[2], [1], [1], [2], [0, 0, 0, 1, 1, 2], [0], [0]>} : vector<2x2x32xf32>, vector<2x32x128xf32>, vector<2x2x128xf32> -> vector<2x2x128xf32>
    %24 = arith.addf %22, %23 : vector<2x2x128xf32>
    %25 = vector.shape_cast %21 : vector<2x128xf32> to vector<2x1x128xf32>
    %26 = vector.broadcast %25 : vector<2x1x128xf32> to vector<2x2x128xf32>
    %27 = arith.addf %24, %26 : vector<2x2x128xf32>
    %28 = arith.negf %27 : vector<2x2x128xf32>
    %29 = math.exp %28 : vector<2x2x128xf32>
    %cst_27 = arith.constant 1.000000e+00 : f32
    %30 = vector.broadcast %cst_27 : f32 to vector<2x2x128xf32>
    %31 = arith.addf %30, %29 : vector<2x2x128xf32>
    %32 = arith.divf %30, %31 : vector<2x2x128xf32>
    %33 = math.tanh %27 : vector<2x2x128xf32>
    %34 = vector.extract_strided_slice %32 {offsets = [0, 0, 32], sizes = [2, 2, 32], strides = [1, 1, 1]} : vector<2x2x128xf32> to vector<2x2x32xf32>
    %35 = arith.mulf %34, %19 : vector<2x2x32xf32>
    %36 = vector.extract_strided_slice %32 {offsets = [0, 0, 0], sizes = [2, 2, 32], strides = [1, 1, 1]} : vector<2x2x128xf32> to vector<2x2x32xf32>
    %37 = vector.extract_strided_slice %33 {offsets = [0, 0, 64], sizes = [2, 2, 32], strides = [1, 1, 1]} : vector<2x2x128xf32> to vector<2x2x32xf32>
    %38 = arith.mulf %36, %37 : vector<2x2x32xf32>
    %39 = arith.addf %35, %38 : vector<2x2x32xf32>
    %40 = vector.extract_strided_slice %32 {offsets = [0, 0, 96], sizes = [2, 2, 32], strides = [1, 1, 1]} : vector<2x2x128xf32> to vector<2x2x32xf32>
    %41 = math.tanh %39 : vector<2x2x32xf32>
    %42 = arith.mulf %40, %41 : vector<2x2x32xf32>
    %cst_28 = arith.constant dense<0.000000e+00> : vector<2x2x32xf32>
    %43 = tpu.matmul %42, %9, %cst_28 {dimension_numbers = #tpu.dot_dimension_numbers<[2], [1], [1], [2], [0, 0, 0, 1, 1, 2], [0], [0]>} : vector<2x2x32xf32>, vector<2x32x32xf32>, vector<2x2x32xf32> -> vector<2x2x32xf32>
    %44 = vector.shape_cast %43 : vector<2x2x32xf32> to vector<2x2x1x32xf32>
    %45 = vector.broadcast %6 : vector<1x2x8x32xf32> to vector<2x2x8x32xf32>
    %46 = vector.broadcast %44 : vector<2x2x1x32xf32> to vector<2x2x8x32xf32>
    %47 = arith.mulf %45, %46 : vector<2x2x8x32xf32>
    %cst_29 = arith.constant dense<0.000000e+00> : vector<2x2x8xf32>
    %48 = vector.multi_reduction <add>, %47, %cst_29 [3] : vector<2x2x8x32xf32> to vector<2x2x8xf32>
    %cst_30 = arith.constant -1.000000e+30 : f32
    %49 = vector.shape_cast %5 : vector<1x2x8xi1> to vector<1x2x8xi1>
    %50 = vector.broadcast %49 : vector<1x2x8xi1> to vector<2x2x8xi1>
    %51 = vector.broadcast %cst_30 : f32 to vector<2x2x8xf32>
    %52 = arith.select %50, %48, %51 : vector<2x2x8xi1>, vector<2x2x8xf32>
    %cst_31 = arith.constant dense<0xFF800000> : vector<2x2xf32>
    %53 = vector.multi_reduction <maximumf>, %52, %cst_31 [2] : vector<2x2x8xf32> to vector<2x2xf32>
    %54 = vector.shape_cast %53 : vector<2x2xf32> to vector<2x2x1xf32>
    %55 = vector.broadcast %54 : vector<2x2x1xf32> to vector<2x2x8xf32>
    %56 = arith.subf %52, %55 : vector<2x2x8xf32>
    %57 = math.exp %56 : vector<2x2x8xf32>
    %cst_32 = arith.constant dense<0.000000e+00> : vector<2x2xf32>
    %58 = vector.multi_reduction <add>, %57, %cst_32 [2] : vector<2x2x8xf32> to vector<2x2xf32>
    %59 = vector.shape_cast %58 : vector<2x2xf32> to vector<2x2x1xf32>
    %60 = tpu.reciprocal %59 {approx = true} : vector<2x2x1xf32> -> vector<2x2x1xf32>
    %61 = arith.mulf %59, %60 : vector<2x2x1xf32>
    %cst_33 = arith.constant 2.000000e+00 : f32
    %62 = vector.broadcast %cst_33 : f32 to vector<2x2x1xf32>
    %63 = arith.subf %62, %61 : vector<2x2x1xf32>
    %64 = arith.mulf %60, %63 : vector<2x2x1xf32>
    %65 = vector.broadcast %64 : vector<2x2x1xf32> to vector<2x2x8xf32>
    %66 = arith.mulf %57, %65 : vector<2x2x8xf32>
    %67 = vector.shape_cast %66 : vector<2x2x8xf32> to vector<2x2x8x1xf32>
    %68 = vector.broadcast %6 : vector<1x2x8x32xf32> to vector<2x2x8x32xf32>
    %69 = vector.broadcast %67 : vector<2x2x8x1xf32> to vector<2x2x8x32xf32>
    %70 = arith.mulf %68, %69 : vector<2x2x8x32xf32>
    %cst_34 = arith.constant dense<0.000000e+00> : vector<2x2x32xf32>
    %71 = vector.multi_reduction <add>, %70, %cst_34 [2] : vector<2x2x8x32xf32> to vector<2x2x32xf32>
    %cst_35 = arith.constant dense<0.000000e+00> : vector<2x2x32xf32>
    %72 = tpu.matmul %71, %10, %cst_35 {dimension_numbers = #tpu.dot_dimension_numbers<[2], [1], [1], [2], [0, 0, 0, 1, 1, 2], [0], [0]>} : vector<2x2x32xf32>, vector<2x32x32xf32>, vector<2x2x32xf32> -> vector<2x2x32xf32>
    %cst_36 = arith.constant dense<0.000000e+00> : vector<2x2x32xf32>
    %73 = tpu.matmul %42, %11, %cst_36 {dimension_numbers = #tpu.dot_dimension_numbers<[2], [1], [1], [2], [0, 0, 0, 1, 1, 2], [0], [0]>} : vector<2x2x32xf32>, vector<2x32x32xf32>, vector<2x2x32xf32> -> vector<2x2x32xf32>
    %74 = arith.addf %72, %73 : vector<2x2x32xf32>
    %75 = math.tanh %74 : vector<2x2x32xf32>
    %76 = vector.extract_strided_slice %75 {offsets = [0, 0, 0], sizes = [1, 2, 32], strides = [1, 1, 1]} : vector<2x2x32xf32> to vector<1x2x32xf32>
    %77 = vector.shape_cast %76 : vector<1x2x32xf32> to vector<2x32xf32>
    %78 = vector.extract_strided_slice %75 {offsets = [1, 0, 0], sizes = [1, 2, 32], strides = [1, 1, 1]} : vector<2x2x32xf32> to vector<1x2x32xf32>
    %79 = vector.shape_cast %78 : vector<1x2x32xf32> to vector<2x32xf32>
    %c1 = arith.constant 1 : index
    %c0_37 = arith.constant 0 : index
    %c0_38 = arith.constant 0 : index
    %80 = vector.load %arg4[%c1, %c0_37, %c0_38] : memref<4x2x128xf32, #tpu.memory_space<vmem>>, vector<1x2x128xf32>
    %81 = vector.shape_cast %80 : vector<1x2x128xf32> to vector<2x128xf32>
    %cst_39 = arith.constant dense<0.000000e+00> : vector<2x2x128xf32>
    %82 = tpu.matmul %75, %7, %cst_39 {dimension_numbers = #tpu.dot_dimension_numbers<[2], [1], [1], [2], [0, 0, 0, 1, 1, 2], [0], [0]>} : vector<2x2x32xf32>, vector<2x32x128xf32>, vector<2x2x128xf32> -> vector<2x2x128xf32>
    %cst_40 = arith.constant dense<0.000000e+00> : vector<2x2x128xf32>
    %83 = tpu.matmul %42, %8, %cst_40 {dimension_numbers = #tpu.dot_dimension_numbers<[2], [1], [1], [2], [0, 0, 0, 1, 1, 2], [0], [0]>} : vector<2x2x32xf32>, vector<2x32x128xf32>, vector<2x2x128xf32> -> vector<2x2x128xf32>
    %84 = arith.addf %82, %83 : vector<2x2x128xf32>
    %85 = vector.shape_cast %81 : vector<2x128xf32> to vector<2x1x128xf32>
    %86 = vector.broadcast %85 : vector<2x1x128xf32> to vector<2x2x128xf32>
    %87 = arith.addf %84, %86 : vector<2x2x128xf32>
    %88 = arith.negf %87 : vector<2x2x128xf32>
    %89 = math.exp %88 : vector<2x2x128xf32>
    %cst_41 = arith.constant 1.000000e+00 : f32
    %90 = vector.broadcast %cst_41 : f32 to vector<2x2x128xf32>
    %91 = arith.addf %90, %89 : vector<2x2x128xf32>
    %92 = arith.divf %90, %91 : vector<2x2x128xf32>
    %93 = math.tanh %87 : vector<2x2x128xf32>
    %94 = vector.extract_strided_slice %92 {offsets = [0, 0, 32], sizes = [2, 2, 32], strides = [1, 1, 1]} : vector<2x2x128xf32> to vector<2x2x32xf32>
    %95 = arith.mulf %94, %39 : vector<2x2x32xf32>
    %96 = vector.extract_strided_slice %92 {offsets = [0, 0, 0], sizes = [2, 2, 32], strides = [1, 1, 1]} : vector<2x2x128xf32> to vector<2x2x32xf32>
    %97 = vector.extract_strided_slice %93 {offsets = [0, 0, 64], sizes = [2, 2, 32], strides = [1, 1, 1]} : vector<2x2x128xf32> to vector<2x2x32xf32>
    %98 = arith.mulf %96, %97 : vector<2x2x32xf32>
    %99 = arith.addf %95, %98 : vector<2x2x32xf32>
    %100 = vector.extract_strided_slice %92 {offsets = [0, 0, 96], sizes = [2, 2, 32], strides = [1, 1, 1]} : vector<2x2x128xf32> to vector<2x2x32xf32>
    %101 = math.tanh %99 : vector<2x2x32xf32>
    %102 = arith.mulf %100, %101 : vector<2x2x32xf32>
    %cst_42 = arith.constant dense<0.000000e+00> : vector<2x2x32xf32>
    %103 = tpu.matmul %102, %9, %cst_42 {dimension_numbers = #tpu.dot_dimension_numbers<[2], [1], [1], [2], [0, 0, 0, 1, 1, 2], [0], [0]>} : vector<2x2x32xf32>, vector<2x32x32xf32>, vector<2x2x32xf32> -> vector<2x2x32xf32>
    %104 = vector.shape_cast %103 : vector<2x2x32xf32> to vector<2x2x1x32xf32>
    %105 = vector.broadcast %6 : vector<1x2x8x32xf32> to vector<2x2x8x32xf32>
    %106 = vector.broadcast %104 : vector<2x2x1x32xf32> to vector<2x2x8x32xf32>
    %107 = arith.mulf %105, %106 : vector<2x2x8x32xf32>
    %cst_43 = arith.constant dense<0.000000e+00> : vector<2x2x8xf32>
    %108 = vector.multi_reduction <add>, %107, %cst_43 [3] : vector<2x2x8x32xf32> to vector<2x2x8xf32>
    %cst_44 = arith.constant -1.000000e+30 : f32
    %109 = vector.shape_cast %5 : vector<1x2x8xi1> to vector<1x2x8xi1>
    %110 = vector.broadcast %109 : vector<1x2x8xi1> to vector<2x2x8xi1>
    %111 = vector.broadcast %cst_44 : f32 to vector<2x2x8xf32>
    %112 = arith.select %110, %108, %111 : vector<2x2x8xi1>, vector<2x2x8xf32>
    %cst_45 = arith.constant dense<0xFF800000> : vector<2x2xf32>
    %113 = vector.multi_reduction <maximumf>, %112, %cst_45 [2] : vector<2x2x8xf32> to vector<2x2xf32>
    %114 = vector.shape_cast %113 : vector<2x2xf32> to vector<2x2x1xf32>
    %115 = vector.broadcast %114 : vector<2x2x1xf32> to vector<2x2x8xf32>
    %116 = arith.subf %112, %115 : vector<2x2x8xf32>
    %117 = math.exp %116 : vector<2x2x8xf32>
    %cst_46 = arith.constant dense<0.000000e+00> : vector<2x2xf32>
    %118 = vector.multi_reduction <add>, %117, %cst_46 [2] : vector<2x2x8xf32> to vector<2x2xf32>
    %119 = vector.shape_cast %118 : vector<2x2xf32> to vector<2x2x1xf32>
    %120 = tpu.reciprocal %119 {approx = true} : vector<2x2x1xf32> -> vector<2x2x1xf32>
    %121 = arith.mulf %119, %120 : vector<2x2x1xf32>
    %cst_47 = arith.constant 2.000000e+00 : f32
    %122 = vector.broadcast %cst_47 : f32 to vector<2x2x1xf32>
    %123 = arith.subf %122, %121 : vector<2x2x1xf32>
    %124 = arith.mulf %120, %123 : vector<2x2x1xf32>
    %125 = vector.broadcast %124 : vector<2x2x1xf32> to vector<2x2x8xf32>
    %126 = arith.mulf %117, %125 : vector<2x2x8xf32>
    %127 = vector.shape_cast %126 : vector<2x2x8xf32> to vector<2x2x8x1xf32>
    %128 = vector.broadcast %6 : vector<1x2x8x32xf32> to vector<2x2x8x32xf32>
    %129 = vector.broadcast %127 : vector<2x2x8x1xf32> to vector<2x2x8x32xf32>
    %130 = arith.mulf %128, %129 : vector<2x2x8x32xf32>
    %cst_48 = arith.constant dense<0.000000e+00> : vector<2x2x32xf32>
    %131 = vector.multi_reduction <add>, %130, %cst_48 [2] : vector<2x2x8x32xf32> to vector<2x2x32xf32>
    %cst_49 = arith.constant dense<0.000000e+00> : vector<2x2x32xf32>
    %132 = tpu.matmul %131, %10, %cst_49 {dimension_numbers = #tpu.dot_dimension_numbers<[2], [1], [1], [2], [0, 0, 0, 1, 1, 2], [0], [0]>} : vector<2x2x32xf32>, vector<2x32x32xf32>, vector<2x2x32xf32> -> vector<2x2x32xf32>
    %cst_50 = arith.constant dense<0.000000e+00> : vector<2x2x32xf32>
    %133 = tpu.matmul %102, %11, %cst_50 {dimension_numbers = #tpu.dot_dimension_numbers<[2], [1], [1], [2], [0, 0, 0, 1, 1, 2], [0], [0]>} : vector<2x2x32xf32>, vector<2x32x32xf32>, vector<2x2x32xf32> -> vector<2x2x32xf32>
    %134 = arith.addf %132, %133 : vector<2x2x32xf32>
    %135 = math.tanh %134 : vector<2x2x32xf32>
    %136 = vector.extract_strided_slice %135 {offsets = [0, 0, 0], sizes = [1, 2, 32], strides = [1, 1, 1]} : vector<2x2x32xf32> to vector<1x2x32xf32>
    %137 = vector.shape_cast %136 : vector<1x2x32xf32> to vector<2x32xf32>
    %138 = vector.extract_strided_slice %135 {offsets = [1, 0, 0], sizes = [1, 2, 32], strides = [1, 1, 1]} : vector<2x2x32xf32> to vector<1x2x32xf32>
    %139 = vector.shape_cast %138 : vector<1x2x32xf32> to vector<2x32xf32>
    %c2 = arith.constant 2 : index
    %c0_51 = arith.constant 0 : index
    %c0_52 = arith.constant 0 : index
    %140 = vector.load %arg4[%c2, %c0_51, %c0_52] : memref<4x2x128xf32, #tpu.memory_space<vmem>>, vector<1x2x128xf32>
    %141 = vector.shape_cast %140 : vector<1x2x128xf32> to vector<2x128xf32>
    %cst_53 = arith.constant dense<0.000000e+00> : vector<2x2x128xf32>
    %142 = tpu.matmul %135, %7, %cst_53 {dimension_numbers = #tpu.dot_dimension_numbers<[2], [1], [1], [2], [0, 0, 0, 1, 1, 2], [0], [0]>} : vector<2x2x32xf32>, vector<2x32x128xf32>, vector<2x2x128xf32> -> vector<2x2x128xf32>
    %cst_54 = arith.constant dense<0.000000e+00> : vector<2x2x128xf32>
    %143 = tpu.matmul %102, %8, %cst_54 {dimension_numbers = #tpu.dot_dimension_numbers<[2], [1], [1], [2], [0, 0, 0, 1, 1, 2], [0], [0]>} : vector<2x2x32xf32>, vector<2x32x128xf32>, vector<2x2x128xf32> -> vector<2x2x128xf32>
    %144 = arith.addf %142, %143 : vector<2x2x128xf32>
    %145 = vector.shape_cast %141 : vector<2x128xf32> to vector<2x1x128xf32>
    %146 = vector.broadcast %145 : vector<2x1x128xf32> to vector<2x2x128xf32>
    %147 = arith.addf %144, %146 : vector<2x2x128xf32>
    %148 = arith.negf %147 : vector<2x2x128xf32>
    %149 = math.exp %148 : vector<2x2x128xf32>
    %cst_55 = arith.constant 1.000000e+00 : f32
    %150 = vector.broadcast %cst_55 : f32 to vector<2x2x128xf32>
    %151 = arith.addf %150, %149 : vector<2x2x128xf32>
    %152 = arith.divf %150, %151 : vector<2x2x128xf32>
    %153 = math.tanh %147 : vector<2x2x128xf32>
    %154 = vector.extract_strided_slice %152 {offsets = [0, 0, 32], sizes = [2, 2, 32], strides = [1, 1, 1]} : vector<2x2x128xf32> to vector<2x2x32xf32>
    %155 = arith.mulf %154, %99 : vector<2x2x32xf32>
    %156 = vector.extract_strided_slice %152 {offsets = [0, 0, 0], sizes = [2, 2, 32], strides = [1, 1, 1]} : vector<2x2x128xf32> to vector<2x2x32xf32>
    %157 = vector.extract_strided_slice %153 {offsets = [0, 0, 64], sizes = [2, 2, 32], strides = [1, 1, 1]} : vector<2x2x128xf32> to vector<2x2x32xf32>
    %158 = arith.mulf %156, %157 : vector<2x2x32xf32>
    %159 = arith.addf %155, %158 : vector<2x2x32xf32>
    %160 = vector.extract_strided_slice %152 {offsets = [0, 0, 96], sizes = [2, 2, 32], strides = [1, 1, 1]} : vector<2x2x128xf32> to vector<2x2x32xf32>
    %161 = math.tanh %159 : vector<2x2x32xf32>
    %162 = arith.mulf %160, %161 : vector<2x2x32xf32>
    %cst_56 = arith.constant dense<0.000000e+00> : vector<2x2x32xf32>
    %163 = tpu.matmul %162, %9, %cst_56 {dimension_numbers = #tpu.dot_dimension_numbers<[2], [1], [1], [2], [0, 0, 0, 1, 1, 2], [0], [0]>} : vector<2x2x32xf32>, vector<2x32x32xf32>, vector<2x2x32xf32> -> vector<2x2x32xf32>
    %164 = vector.shape_cast %163 : vector<2x2x32xf32> to vector<2x2x1x32xf32>
    %165 = vector.broadcast %6 : vector<1x2x8x32xf32> to vector<2x2x8x32xf32>
    %166 = vector.broadcast %164 : vector<2x2x1x32xf32> to vector<2x2x8x32xf32>
    %167 = arith.mulf %165, %166 : vector<2x2x8x32xf32>
    %cst_57 = arith.constant dense<0.000000e+00> : vector<2x2x8xf32>
    %168 = vector.multi_reduction <add>, %167, %cst_57 [3] : vector<2x2x8x32xf32> to vector<2x2x8xf32>
    %cst_58 = arith.constant -1.000000e+30 : f32
    %169 = vector.shape_cast %5 : vector<1x2x8xi1> to vector<1x2x8xi1>
    %170 = vector.broadcast %169 : vector<1x2x8xi1> to vector<2x2x8xi1>
    %171 = vector.broadcast %cst_58 : f32 to vector<2x2x8xf32>
    %172 = arith.select %170, %168, %171 : vector<2x2x8xi1>, vector<2x2x8xf32>
    %cst_59 = arith.constant dense<0xFF800000> : vector<2x2xf32>
    %173 = vector.multi_reduction <maximumf>, %172, %cst_59 [2] : vector<2x2x8xf32> to vector<2x2xf32>
    %174 = vector.shape_cast %173 : vector<2x2xf32> to vector<2x2x1xf32>
    %175 = vector.broadcast %174 : vector<2x2x1xf32> to vector<2x2x8xf32>
    %176 = arith.subf %172, %175 : vector<2x2x8xf32>
    %177 = math.exp %176 : vector<2x2x8xf32>
    %cst_60 = arith.constant dense<0.000000e+00> : vector<2x2xf32>
    %178 = vector.multi_reduction <add>, %177, %cst_60 [2] : vector<2x2x8xf32> to vector<2x2xf32>
    %179 = vector.shape_cast %178 : vector<2x2xf32> to vector<2x2x1xf32>
    %180 = tpu.reciprocal %179 {approx = true} : vector<2x2x1xf32> -> vector<2x2x1xf32>
    %181 = arith.mulf %179, %180 : vector<2x2x1xf32>
    %cst_61 = arith.constant 2.000000e+00 : f32
    %182 = vector.broadcast %cst_61 : f32 to vector<2x2x1xf32>
    %183 = arith.subf %182, %181 : vector<2x2x1xf32>
    %184 = arith.mulf %180, %183 : vector<2x2x1xf32>
    %185 = vector.broadcast %184 : vector<2x2x1xf32> to vector<2x2x8xf32>
    %186 = arith.mulf %177, %185 : vector<2x2x8xf32>
    %187 = vector.shape_cast %186 : vector<2x2x8xf32> to vector<2x2x8x1xf32>
    %188 = vector.broadcast %6 : vector<1x2x8x32xf32> to vector<2x2x8x32xf32>
    %189 = vector.broadcast %187 : vector<2x2x8x1xf32> to vector<2x2x8x32xf32>
    %190 = arith.mulf %188, %189 : vector<2x2x8x32xf32>
    %cst_62 = arith.constant dense<0.000000e+00> : vector<2x2x32xf32>
    %191 = vector.multi_reduction <add>, %190, %cst_62 [2] : vector<2x2x8x32xf32> to vector<2x2x32xf32>
    %cst_63 = arith.constant dense<0.000000e+00> : vector<2x2x32xf32>
    %192 = tpu.matmul %191, %10, %cst_63 {dimension_numbers = #tpu.dot_dimension_numbers<[2], [1], [1], [2], [0, 0, 0, 1, 1, 2], [0], [0]>} : vector<2x2x32xf32>, vector<2x32x32xf32>, vector<2x2x32xf32> -> vector<2x2x32xf32>
    %cst_64 = arith.constant dense<0.000000e+00> : vector<2x2x32xf32>
    %193 = tpu.matmul %162, %11, %cst_64 {dimension_numbers = #tpu.dot_dimension_numbers<[2], [1], [1], [2], [0, 0, 0, 1, 1, 2], [0], [0]>} : vector<2x2x32xf32>, vector<2x32x32xf32>, vector<2x2x32xf32> -> vector<2x2x32xf32>
    %194 = arith.addf %192, %193 : vector<2x2x32xf32>
    %195 = math.tanh %194 : vector<2x2x32xf32>
    %196 = vector.extract_strided_slice %195 {offsets = [0, 0, 0], sizes = [1, 2, 32], strides = [1, 1, 1]} : vector<2x2x32xf32> to vector<1x2x32xf32>
    %197 = vector.shape_cast %196 : vector<1x2x32xf32> to vector<2x32xf32>
    %198 = vector.extract_strided_slice %195 {offsets = [1, 0, 0], sizes = [1, 2, 32], strides = [1, 1, 1]} : vector<2x2x32xf32> to vector<1x2x32xf32>
    %199 = vector.shape_cast %198 : vector<1x2x32xf32> to vector<2x32xf32>
    %c3 = arith.constant 3 : index
    %c0_65 = arith.constant 0 : index
    %c0_66 = arith.constant 0 : index
    %200 = vector.load %arg4[%c3, %c0_65, %c0_66] : memref<4x2x128xf32, #tpu.memory_space<vmem>>, vector<1x2x128xf32>
    %201 = vector.shape_cast %200 : vector<1x2x128xf32> to vector<2x128xf32>
    %cst_67 = arith.constant dense<0.000000e+00> : vector<2x2x128xf32>
    %202 = tpu.matmul %195, %7, %cst_67 {dimension_numbers = #tpu.dot_dimension_numbers<[2], [1], [1], [2], [0, 0, 0, 1, 1, 2], [0], [0]>} : vector<2x2x32xf32>, vector<2x32x128xf32>, vector<2x2x128xf32> -> vector<2x2x128xf32>
    %cst_68 = arith.constant dense<0.000000e+00> : vector<2x2x128xf32>
    %203 = tpu.matmul %162, %8, %cst_68 {dimension_numbers = #tpu.dot_dimension_numbers<[2], [1], [1], [2], [0, 0, 0, 1, 1, 2], [0], [0]>} : vector<2x2x32xf32>, vector<2x32x128xf32>, vector<2x2x128xf32> -> vector<2x2x128xf32>
    %204 = arith.addf %202, %203 : vector<2x2x128xf32>
    %205 = vector.shape_cast %201 : vector<2x128xf32> to vector<2x1x128xf32>
    %206 = vector.broadcast %205 : vector<2x1x128xf32> to vector<2x2x128xf32>
    %207 = arith.addf %204, %206 : vector<2x2x128xf32>
    %208 = arith.negf %207 : vector<2x2x128xf32>
    %209 = math.exp %208 : vector<2x2x128xf32>
    %cst_69 = arith.constant 1.000000e+00 : f32
    %210 = vector.broadcast %cst_69 : f32 to vector<2x2x128xf32>
    %211 = arith.addf %210, %209 : vector<2x2x128xf32>
    %212 = arith.divf %210, %211 : vector<2x2x128xf32>
    %213 = math.tanh %207 : vector<2x2x128xf32>
    %214 = vector.extract_strided_slice %212 {offsets = [0, 0, 32], sizes = [2, 2, 32], strides = [1, 1, 1]} : vector<2x2x128xf32> to vector<2x2x32xf32>
    %215 = arith.mulf %214, %159 : vector<2x2x32xf32>
    %216 = vector.extract_strided_slice %212 {offsets = [0, 0, 0], sizes = [2, 2, 32], strides = [1, 1, 1]} : vector<2x2x128xf32> to vector<2x2x32xf32>
    %217 = vector.extract_strided_slice %213 {offsets = [0, 0, 64], sizes = [2, 2, 32], strides = [1, 1, 1]} : vector<2x2x128xf32> to vector<2x2x32xf32>
    %218 = arith.mulf %216, %217 : vector<2x2x32xf32>
    %219 = arith.addf %215, %218 : vector<2x2x32xf32>
    %220 = vector.extract_strided_slice %212 {offsets = [0, 0, 96], sizes = [2, 2, 32], strides = [1, 1, 1]} : vector<2x2x128xf32> to vector<2x2x32xf32>
    %221 = math.tanh %219 : vector<2x2x32xf32>
    %222 = arith.mulf %220, %221 : vector<2x2x32xf32>
    %cst_70 = arith.constant dense<0.000000e+00> : vector<2x2x32xf32>
    %223 = tpu.matmul %222, %9, %cst_70 {dimension_numbers = #tpu.dot_dimension_numbers<[2], [1], [1], [2], [0, 0, 0, 1, 1, 2], [0], [0]>} : vector<2x2x32xf32>, vector<2x32x32xf32>, vector<2x2x32xf32> -> vector<2x2x32xf32>
    %224 = vector.shape_cast %223 : vector<2x2x32xf32> to vector<2x2x1x32xf32>
    %225 = vector.broadcast %6 : vector<1x2x8x32xf32> to vector<2x2x8x32xf32>
    %226 = vector.broadcast %224 : vector<2x2x1x32xf32> to vector<2x2x8x32xf32>
    %227 = arith.mulf %225, %226 : vector<2x2x8x32xf32>
    %cst_71 = arith.constant dense<0.000000e+00> : vector<2x2x8xf32>
    %228 = vector.multi_reduction <add>, %227, %cst_71 [3] : vector<2x2x8x32xf32> to vector<2x2x8xf32>
    %cst_72 = arith.constant -1.000000e+30 : f32
    %229 = vector.shape_cast %5 : vector<1x2x8xi1> to vector<1x2x8xi1>
    %230 = vector.broadcast %229 : vector<1x2x8xi1> to vector<2x2x8xi1>
    %231 = vector.broadcast %cst_72 : f32 to vector<2x2x8xf32>
    %232 = arith.select %230, %228, %231 : vector<2x2x8xi1>, vector<2x2x8xf32>
    %cst_73 = arith.constant dense<0xFF800000> : vector<2x2xf32>
    %233 = vector.multi_reduction <maximumf>, %232, %cst_73 [2] : vector<2x2x8xf32> to vector<2x2xf32>
    %234 = vector.shape_cast %233 : vector<2x2xf32> to vector<2x2x1xf32>
    %235 = vector.broadcast %234 : vector<2x2x1xf32> to vector<2x2x8xf32>
    %236 = arith.subf %232, %235 : vector<2x2x8xf32>
    %237 = math.exp %236 : vector<2x2x8xf32>
    %cst_74 = arith.constant dense<0.000000e+00> : vector<2x2xf32>
    %238 = vector.multi_reduction <add>, %237, %cst_74 [2] : vector<2x2x8xf32> to vector<2x2xf32>
    %239 = vector.shape_cast %238 : vector<2x2xf32> to vector<2x2x1xf32>
    %240 = tpu.reciprocal %239 {approx = true} : vector<2x2x1xf32> -> vector<2x2x1xf32>
    %241 = arith.mulf %239, %240 : vector<2x2x1xf32>
    %cst_75 = arith.constant 2.000000e+00 : f32
    %242 = vector.broadcast %cst_75 : f32 to vector<2x2x1xf32>
    %243 = arith.subf %242, %241 : vector<2x2x1xf32>
    %244 = arith.mulf %240, %243 : vector<2x2x1xf32>
    %245 = vector.broadcast %244 : vector<2x2x1xf32> to vector<2x2x8xf32>
    %246 = arith.mulf %237, %245 : vector<2x2x8xf32>
    %247 = vector.shape_cast %246 : vector<2x2x8xf32> to vector<2x2x8x1xf32>
    %248 = vector.broadcast %6 : vector<1x2x8x32xf32> to vector<2x2x8x32xf32>
    %249 = vector.broadcast %247 : vector<2x2x8x1xf32> to vector<2x2x8x32xf32>
    %250 = arith.mulf %248, %249 : vector<2x2x8x32xf32>
    %cst_76 = arith.constant dense<0.000000e+00> : vector<2x2x32xf32>
    %251 = vector.multi_reduction <add>, %250, %cst_76 [2] : vector<2x2x8x32xf32> to vector<2x2x32xf32>
    %cst_77 = arith.constant dense<0.000000e+00> : vector<2x2x32xf32>
    %252 = tpu.matmul %251, %10, %cst_77 {dimension_numbers = #tpu.dot_dimension_numbers<[2], [1], [1], [2], [0, 0, 0, 1, 1, 2], [0], [0]>} : vector<2x2x32xf32>, vector<2x32x32xf32>, vector<2x2x32xf32> -> vector<2x2x32xf32>
    %cst_78 = arith.constant dense<0.000000e+00> : vector<2x2x32xf32>
    %253 = tpu.matmul %222, %11, %cst_78 {dimension_numbers = #tpu.dot_dimension_numbers<[2], [1], [1], [2], [0, 0, 0, 1, 1, 2], [0], [0]>} : vector<2x2x32xf32>, vector<2x32x32xf32>, vector<2x2x32xf32> -> vector<2x2x32xf32>
    %254 = arith.addf %252, %253 : vector<2x2x32xf32>
    %255 = math.tanh %254 : vector<2x2x32xf32>
    %256 = vector.extract_strided_slice %255 {offsets = [0, 0, 0], sizes = [1, 2, 32], strides = [1, 1, 1]} : vector<2x2x32xf32> to vector<1x2x32xf32>
    %257 = vector.shape_cast %256 : vector<1x2x32xf32> to vector<2x32xf32>
    %258 = vector.extract_strided_slice %255 {offsets = [1, 0, 0], sizes = [1, 2, 32], strides = [1, 1, 1]} : vector<2x2x32xf32> to vector<1x2x32xf32>
    %259 = vector.shape_cast %258 : vector<1x2x32xf32> to vector<2x32xf32>
    %260 = tpu.concatenate %77, %259, %137, %199, %197, %139, %257, %79 in 1 : vector<2x32xf32>, vector<2x32xf32>, vector<2x32xf32>, vector<2x32xf32>, vector<2x32xf32>, vector<2x32xf32>, vector<2x32xf32>, vector<2x32xf32> -> vector<2x256xf32>
    %c0_79 = arith.constant 0 : index
    %c0_80 = arith.constant 0 : index
    %261 = vector.load %arg10[%c0_79, %c0_80] : memref<256x8xf32, #tpu.memory_space<vmem>>, vector<256x8xf32>
    %cst_81 = arith.constant dense<0.000000e+00> : vector<2x8xf32>
    %262 = tpu.matmul %260, %261, %cst_81 {dimension_numbers = #tpu.dot_dimension_numbers<[1], [0], [0], [1], [0, 0, 1, 1], [], []>} : vector<2x256xf32>, vector<256x8xf32>, vector<2x8xf32> -> vector<2x8xf32>
    %c0_82 = arith.constant 0 : index
    %c0_83 = arith.constant 0 : index
    %263 = vector.load %arg11[%c0_82, %c0_83] : memref<1x8xf32, #tpu.memory_space<vmem>>, vector<1x8xf32>
    %264 = vector.broadcast %263 : vector<1x8xf32> to vector<2x8xf32>
    %265 = arith.addf %262, %264 : vector<2x8xf32>
    %c0_84 = arith.constant 0 : index
    %c0_85 = arith.constant 0 : index
    %266 = vector.load %arg12[%c0_84, %c0_85] : memref<2x8xf32, #tpu.memory_space<vmem>>, vector<2x8xf32>
    tpu.vector_store %arg12[%c0_84, %c0_85], %265 {strides = array<i32>} : memref<2x8xf32, #tpu.memory_space<vmem>>, vector<2x8xf32>,
    return
  }
}

</mosaic_0001>

<llo_original>
// kernel: tpu_custom_call.1
$region0: #{tpu_custom_call.1}
  #allocation0 [shape = 'u32[]', space=smem, size = 0x4, offset = 0x4, fixed_abs, tag = 'smem constant byte address 0x4 - core index']
  #allocation1 [shape = 'u32[144,128]{1,0:T(1,128)}', space=vmem, size = 0x12000, scoped, tag = 'internal scratch']
  %s0 = inlined_call_operand.vmem [shape: f32[2,32], index: 0, kind: input, shape index: {}]
  %s1 = inlined_call_operand.hbm [shape: f32[2,32], index: 1, kind: input, shape index: {}]
  %s2 = inlined_call_operand.vmem [shape: f32[2,8,32], index: 2, kind: input, shape index: {}]
  %s3 = inlined_call_operand.vmem [shape: s32[2,1], index: 3, kind: input, shape index: {}]
  %s4 = inlined_call_operand.vmem [shape: f32[4,2,128], index: 4, kind: input, shape index: {}]
  %s5 = inlined_call_operand.vmem [shape: f32[2,32,128], index: 5, kind: input, shape index: {}]
  %s6 = inlined_call_operand.vmem [shape: f32[2,32,128], index: 6, kind: input, shape index: {}]
  %s7 = inlined_call_operand.vmem [shape: f32[2,32,32], index: 7, kind: input, shape index: {}]
  %s8 = inlined_call_operand.vmem [shape: f32[2,32,32], index: 8, kind: input, shape index: {}]
  %s9 = inlined_call_operand.hbm [shape: f32[2,32,32], index: 9, kind: input, shape index: {}]
  %s10 = inlined_call_operand.vmem [shape: f32[256,8], index: 10, kind: input, shape index: {}]
  %s11 = inlined_call_operand.vmem [shape: f32[1,8], index: 11, kind: input, shape index: {}]
  %s12 = inlined_call_operand.hbm [shape: f32[2,8], index: 12, kind: output, shape index: {}]
  %s13 = sld [smem:[#allocation0]]
  $region66: #{tpu_custom_call.1} parent=0
    _
  %s15 = ssub.s32 1, %s13
  %s16 = scalar_select 0, %s15, %s13
  $region1: #{tpu_custom_call.1} parent=0
    #allocation2 [shape = 'u8[1024]{0}', space=vmem, size = 0x400, scoped, tag = 'input window, operand 1, single buffered']
    #allocation3 [shape = 's32[1]{0}', space=sflag, size = 0x4, scoped, tag = 'scoped memory for tpu_custom_call.1']
    #allocation4 [shape = 's32[1]{0}', space=sflag, size = 0x4, scoped, tag = 'scoped memory for tpu_custom_call.1']
    #allocation5 [shape = 'u8[32768]{0}', space=vmem, size = 0x8000, scoped, tag = 'input window, operand 9, single buffered']
    #allocation6 [shape = 's32[1]{0}', space=sflag, size = 0x4, scoped, tag = 'scoped memory for tpu_custom_call.1']
    #allocation7 [shape = 'u8[1024]{0}', space=vmem, size = 0x400, scoped, tag = 'output window, operand 0, single buffered']
    %17 = vsyncpa [#allocation3], 0
    %18 = vsyncpa [#allocation6], 0
    %19 = vsyncpa [#allocation4], 0
    // Predicated region
    $region2: #{tpu_custom_call.1} parent=1 // pred_check
      _
    $region3: #{tpu_custom_call.1} parent=1 // pred_check_branch
      %21 = sbr.rel (0) target = $region5
    $region4: #{tpu_custom_call.1} parent=1 // pred_region
      _
    $region5: #{tpu_custom_call.1} parent=1 // pred_fallthru
      _
    // Predicated region
    $region6: #{tpu_custom_call.1} parent=1 // pred_check
      _
    $region7: #{tpu_custom_call.1} parent=1 // pred_check_branch
      %23 = sbr.rel (0) target = $region9
    $region8: #{tpu_custom_call.1} parent=1 // pred_region
      %s25 = ssub.s32 32, 32
      %26 = vsyncadd [#allocation3], %s25
      %s28 = sshll.u32 [#allocation2], 4
      %s29 = int_to_ptr.vmem [resolvable:$true] %s28
      %31 = dma.hbm_to_vmem [thread:$0]  %s1, 32, %s29, [#allocation3]
    $region9: #{tpu_custom_call.1} parent=1 // pred_fallthru
      _
    // Predicated region
    $region10: #{tpu_custom_call.1} parent=1 // pred_check
      _
    $region11: #{tpu_custom_call.1} parent=1 // pred_check_branch
      %33 = sbr.rel (0) target = $region13
    $region12: #{tpu_custom_call.1} parent=1 // pred_region
      _
    $region13: #{tpu_custom_call.1} parent=1 // pred_fallthru
      _
    // Predicated region
    $region14: #{tpu_custom_call.1} parent=1 // pred_check
      _
    $region15: #{tpu_custom_call.1} parent=1 // pred_check_branch
      %35 = sbr.rel (0) target = $region17
    $region16: #{tpu_custom_call.1} parent=1 // pred_region
      _
    $region17: #{tpu_custom_call.1} parent=1 // pred_fallthru
      _
    // Predicated region
    $region18: #{tpu_custom_call.1} parent=1 // pred_check
      _
    $region19: #{tpu_custom_call.1} parent=1 // pred_check_branch
      %37 = sbr.rel (0) target = $region21
    $region20: #{tpu_custom_call.1} parent=1 // pred_region
      _
    $region21: #{tpu_custom_call.1} parent=1 // pred_fallthru
      _
    // Predicated region
    $region22: #{tpu_custom_call.1} parent=1 // pred_check
      _
    $region23: #{tpu_custom_call.1} parent=1 // pred_check_branch
      %39 = sbr.rel (0) target = $region25
    $region24: #{tpu_custom_call.1} parent=1 // pred_region
      _
    $region25: #{tpu_custom_call.1} parent=1 // pred_fallthru
      _
    // Predicated region
    $region26: #{tpu_custom_call.1} parent=1 // pred_check
      _
    $region27: #{tpu_custom_call.1} parent=1 // pred_check_branch
      %41 = sbr.rel (0) target = $region29
    $region28: #{tpu_custom_call.1} parent=1 // pred_region
      _
    $region29: #{tpu_custom_call.1} parent=1 // pred_fallthru
      _
    // Predicated region
    $region30: #{tpu_custom_call.1} parent=1 // pred_check
      _
    $region31: #{tpu_custom_call.1} parent=1 // pred_check_branch
      %43 = sbr.rel (0) target = $region33
    $region32: #{tpu_custom_call.1} parent=1 // pred_region
      _
    $region33: #{tpu_custom_call.1} parent=1 // pred_fallthru
      _
    // Predicated region
    $region34: #{tpu_custom_call.1} parent=1 // pred_check
      _
    $region35: #{tpu_custom_call.1} parent=1 // pred_check_branch
      %45 = sbr.rel (0) target = $region37
    $region36: #{tpu_custom_call.1} parent=1 // pred_region
      _
    $region37: #{tpu_custom_call.1} parent=1 // pred_fallthru
      _
    // Predicated region
    $region38: #{tpu_custom_call.1} parent=1 // pred_check
      _
    $region39: #{tpu_custom_call.1} parent=1 // pred_check_branch
      %47 = sbr.rel (0) target = $region41
    $region40: #{tpu_custom_call.1} parent=1 // pred_region
      %s49 = ssub.s32 1024, 1024
      %50 = vsyncadd [#allocation6], %s49
      %s51 = sshll.u32 [#allocation5], 4
      %s52 = int_to_ptr.vmem [resolvable:$true] %s51
      %57 = dma.hbm_to_vmem [thread:$0]  %s9, 1024, %s52, [#allocation6], 128, 128, 8
    $region41: #{tpu_custom_call.1} parent=1 // pred_fallthru
      _
    // Predicated region
    $region42: #{tpu_custom_call.1} parent=1 // pred_check
      _
    $region43: #{tpu_custom_call.1} parent=1 // pred_check_branch
      %59 = sbr.rel (0) target = $region45
    $region44: #{tpu_custom_call.1} parent=1 // pred_region
      _
    $region45: #{tpu_custom_call.1} parent=1 // pred_fallthru
      _
    // Predicated region
    $region46: #{tpu_custom_call.1} parent=1 // pred_check
      _
    $region47: #{tpu_custom_call.1} parent=1 // pred_check_branch
      %61 = sbr.rel (0) target = $region49
    $region48: #{tpu_custom_call.1} parent=1 // pred_region
      _
    $region49: #{tpu_custom_call.1} parent=1 // pred_fallthru
      _
    // Predicated region
    $region50: #{tpu_custom_call.1} parent=1 // pred_check
      _
    $region51: #{tpu_custom_call.1} parent=1 // pred_check_branch
      %63 = sbr.rel (0) target = $region53
    $region52: #{tpu_custom_call.1} parent=1 // pred_region
      %64 = dma.done [#allocation3], 32
    $region53: #{tpu_custom_call.1} parent=1 // pred_fallthru
      _
    // Predicated region
    $region54: #{tpu_custom_call.1} parent=1 // pred_check
      _
    $region55: #{tpu_custom_call.1} parent=1 // pred_check_branch
      %66 = sbr.rel (0) target = $region57
    $region56: #{tpu_custom_call.1} parent=1 // pred_region
      %67 = dma.done [#allocation6], 1024
    $region57: #{tpu_custom_call.1} parent=1 // pred_fallthru
      _
    %v68 = vld [vmem:[%s2] sm:$0xff]
    %v69 = vld [vmem:[%s2 + $0x8] sm:$0xff]
    %v70 = vld [vmem:[%s3] sm:$0x3]
    %v71 = vlaneseq
    %v72 = vand.u32 %v71, 127
    %73 = vset.pattern.permute.xlu0 0
    %74 = vperm.xlu0 %73, %v70
    %v75 = vpop.permute.xlu0 %74
    %vm76 = vcmp.lt.s32.totalorder %v72, %v75
    %v77 = vld [vmem:[%s5] sm:$0xff]
    %v78 = vld [vmem:[%s5 + $0x8] sm:$0xff]
    %v79 = vld [vmem:[%s5 + $0x10] sm:$0xff]
    %v80 = vld [vmem:[%s5 + $0x18] sm:$0xff]
    %v81 = vld [vmem:[%s5 + $0x20] sm:$0xff]
    %v82 = vld [vmem:[%s5 + $0x28] sm:$0xff]
    %v83 = vld [vmem:[%s5 + $0x30] sm:$0xff]
    %v84 = vld [vmem:[%s5 + $0x38] sm:$0xff]
    %v85 = vld [vmem:[%s6] sm:$0xff]
    %v86 = vld [vmem:[%s6 + $0x8] sm:$0xff]
    %v87 = vld [vmem:[%s6 + $0x10] sm:$0xff]
    %v88 = vld [vmem:[%s6 + $0x18] sm:$0xff]
    %v89 = vld [vmem:[%s6 + $0x20] sm:$0xff]
    %v90 = vld [vmem:[%s6 + $0x28] sm:$0xff]
    %v91 = vld [vmem:[%s6 + $0x30] sm:$0xff]
    %v92 = vld [vmem:[%s6 + $0x38] sm:$0xff]
    %v93 = vld [vmem:[%s7] sm:$0xff]
    %v94 = vld [vmem:[%s7 + $0x8] sm:$0xff]
    %v95 = vld [vmem:[%s7 + $0x10] sm:$0xff]
    %v96 = vld [vmem:[%s7 + $0x18] sm:$0xff]
    %v97 = vld [vmem:[%s7 + $0x20] sm:$0xff]
    %v98 = vld [vmem:[%s7 + $0x28] sm:$0xff]
    %v99 = vld [vmem:[%s7 + $0x30] sm:$0xff]
    %v100 = vld [vmem:[%s7 + $0x38] sm:$0xff]
    %v101 = vld [vmem:[%s8] sm:$0xff]
    %v102 = vld [vmem:[%s8 + $0x8] sm:$0xff]
    %v103 = vld [vmem:[%s8 + $0x10] sm:$0xff]
    %v104 = vld [vmem:[%s8 + $0x18] sm:$0xff]
    %v105 = vld [vmem:[%s8 + $0x20] sm:$0xff]
    %v106 = vld [vmem:[%s8 + $0x28] sm:$0xff]
    %v107 = vld [vmem:[%s8 + $0x30] sm:$0xff]
    %v108 = vld [vmem:[%s8 + $0x38] sm:$0xff]
    %v109 = vld [vmem:[#allocation5] sm:$0xff]
    %v110 = vld [vmem:[#allocation5 + $0x8] sm:$0xff]
    %v111 = vld [vmem:[#allocation5 + $0x10] sm:$0xff]
    %v112 = vld [vmem:[#allocation5 + $0x18] sm:$0xff]
    %v113 = vld [vmem:[#allocation5 + $0x20] sm:$0xff]
    %v114 = vld [vmem:[#allocation5 + $0x28] sm:$0xff]
    %v115 = vld [vmem:[#allocation5 + $0x30] sm:$0xff]
    %v116 = vld [vmem:[#allocation5 + $0x38] sm:$0xff]
    %v117 = vld [vmem:[%s0] sm:$0x3]
    %v118 = vld [vmem:[#allocation2] sm:$0x3]
    %v119 = vld [vmem:[%s4] sm:$0x3]
    %vm120 = vcmask 261120
    %v122 = vsel %vm120, %v117, 0
    %124 = vmatprep.subr.mxu0 0.0
    %125 = vmatpush1.msra.mxu0 %v85
    %126 = vmatprep.subr.mxu0 0.0
    %127 = vmatpush1.msra.mxu0 %v86
    %128 = vmatprep.subr.mxu0 0.0
    %129 = vmatpush1.msra.mxu0 %v87
    %130 = vmatprep.subr.mxu0 0.0
    %131 = vmatpush1.msra.mxu0 %v88
    %132 = vmatprep.subr.mxu0 0.0
    %133 = vmatpush1.msra.mxu0 0.0
    %134 = vmatprep.subr.mxu0 0.0
    %135 = vmatpush1.msra.mxu0 0.0
    %136 = vmatprep.subr.mxu0 0.0
    %137 = vmatpush1.msra.mxu0 0.0
    %138 = vmatprep.subr.mxu0 0.0
    %139 = vmatpush1.msra.mxu0 0.0
    %140 = vmatprep.subr.mxu0 0.0
    %141 = vmatpush1.msra.mxu0 0.0
    %142 = vmatprep.subr.mxu0 0.0
    %143 = vmatpush1.msra.mxu0 0.0
    %144 = vmatprep.subr.mxu0 0.0
    %145 = vmatpush1.msra.mxu0 0.0
    %146 = vmatprep.subr.mxu0 0.0
    %147 = vmatpush1.msra.mxu0 0.0
    %148 = vmatprep.subr.mxu0 0.0
    %149 = vmatpush1.msra.mxu0 0.0
    %150 = vmatprep.subr.mxu0 0.0
    %151 = vmatpush1.msra.mxu0 0.0
    %152 = vmatprep.subr.mxu0 0.0
    %153 = vmatpush1.msra.mxu0 0.0
    %154 = vmatprep.subr.mxu0 0.0
    %155 = vmatpush1.msra.mxu0 0.0
    %156 = vmatprep.subr.mxu0 0.0
    %157 = vmatpush1.msra.mxu0 0.0
    %158 = vmatprep.subr.mxu0 0.0
    %159 = vmatpush1.msra.mxu0 0.0
    %160 = vmatprep.subr.mxu0 0.0
    %161 = vmatpush1.msra.mxu0 0.0
    %162 = vmatprep.subr.mxu0 0.0
    %163 = vmatpush1.msra.mxu0 0.0
    %164 = vmatprep.subr.mxu0 0.0
    %165 = vmatpush1.msra.mxu0 0.0
    %166 = vmatprep.subr.mxu0 0.0
    %167 = vmatpush1.msra.mxu0 0.0
    %168 = vmatprep.subr.mxu0 0.0
    %169 = vmatpush1.msra.mxu0 0.0
    %170 = vmatprep.subr.mxu0 0.0
    %171 = vmatpush1.msra.mxu0 0.0
    %172 = vmatprep.subr.mxu0 0.0
    %173 = vmatpush1.msra.mxu0 0.0
    %174 = vmatprep.subr.mxu0 0.0
    %175 = vmatpush1.msra.mxu0 0.0
    %176 = vmatprep.subr.mxu0 0.0
    %177 = vmatpush1.msra.mxu0 0.0
    %178 = vmatprep.subr.mxu0 0.0
    %179 = vmatpush1.msra.mxu0 0.0
    %180 = vmatprep.subr.mxu0 0.0
    %181 = vmatpush1.msra.mxu0 0.0
    %182 = vmatprep.subr.mxu0 0.0
    %183 = vmatpush1.msra.mxu0 0.0
    %184 = vmatprep.subr.mxu0 0.0
    %185 = vmatpush1.msra.mxu0 0.0
    %186 = vmatprep.subr.mxu0 0.0
    %187 = vmatpush1.msra.mxu0 0.0
    %188 = vmatprep.mubr.f32.mxu0 0.0
    %189 = vmatmul.mubr.f32.gmra.mrb[0].mxu0 %v122
    %v190 = vpop.f32.mrb[0].mxu0
    %v191 = vadd.f32 0.0, %v190
    %v192 = vpop.f32.mrb[0].mxu0
    %193 = vdwg.mxu0
    %194 = vmatprep.subr.mxu0 0.0
    %195 = vmatpush1.msra.mxu0 %v89
    %196 = vmatprep.subr.mxu0 0.0
    %197 = vmatpush1.msra.mxu0 %v90
    %198 = vmatprep.subr.mxu0 0.0
    %199 = vmatpush1.msra.mxu0 %v91
    %200 = vmatprep.subr.mxu0 0.0
    %201 = vmatpush1.msra.mxu0 %v92
    %202 = vmatprep.subr.mxu0 0.0
    %203 = vmatpush1.msra.mxu0 0.0
    %204 = vmatprep.subr.mxu0 0.0
    %205 = vmatpush1.msra.mxu0 0.0
    %206 = vmatprep.subr.mxu0 0.0
    %207 = vmatpush1.msra.mxu0 0.0
    %208 = vmatprep.subr.mxu0 0.0
    %209 = vmatpush1.msra.mxu0 0.0
    %210 = vmatprep.subr.mxu0 0.0
    %211 = vmatpush1.msra.mxu0 0.0
    %212 = vmatprep.subr.mxu0 0.0
    %213 = vmatpush1.msra.mxu0 0.0
    %214 = vmatprep.subr.mxu0 0.0
    %215 = vmatpush1.msra.mxu0 0.0
    %216 = vmatprep.subr.mxu0 0.0
    %217 = vmatpush1.msra.mxu0 0.0
    %218 = vmatprep.subr.mxu0 0.0
    %219 = vmatpush1.msra.mxu0 0.0
    %220 = vmatprep.subr.mxu0 0.0
    %221 = vmatpush1.msra.mxu0 0.0
    %222 = vmatprep.subr.mxu0 0.0
    %223 = vmatpush1.msra.mxu0 0.0
    %224 = vmatprep.subr.mxu0 0.0
    %225 = vmatpush1.msra.mxu0 0.0
    %226 = vmatprep.subr.mxu0 0.0
    %227 = vmatpush1.msra.mxu0 0.0
    %228 = vmatprep.subr.mxu0 0.0
    %229 = vmatpush1.msra.mxu0 0.0
    %230 = vmatprep.subr.mxu0 0.0
    %231 = vmatpush1.msra.mxu0 0.0
    %232 = vmatprep.subr.mxu0 0.0
    %233 = vmatpush1.msra.mxu0 0.0
    %234 = vmatprep.subr.mxu0 0.0
    %235 = vmatpush1.msra.mxu0 0.0
    %236 = vmatprep.subr.mxu0 0.0
    %237 = vmatpush1.msra.mxu0 0.0
    %238 = vmatprep.subr.mxu0 0.0
    %239 = vmatpush1.msra.mxu0 0.0
    %240 = vmatprep.subr.mxu0 0.0
    %241 = vmatpush1.msra.mxu0 0.0
    %242 = vmatprep.subr.mxu0 0.0
    %243 = vmatpush1.msra.mxu0 0.0
    %244 = vmatprep.subr.mxu0 0.0
    %245 = vmatpush1.msra.mxu0 0.0
    %246 = vmatprep.subr.mxu0 0.0
    %247 = vmatpush1.msra.mxu0 0.0
    %248 = vmatprep.subr.mxu0 0.0
    %249 = vmatpush1.msra.mxu0 0.0
    %250 = vmatprep.subr.mxu0 0.0
    %251 = vmatpush1.msra.mxu0 0.0
    %252 = vmatprep.subr.mxu0 0.0
    %253 = vmatpush1.msra.mxu0 0.0
    %254 = vmatprep.subr.mxu0 0.0
    %255 = vmatpush1.msra.mxu0 0.0
    %256 = vmatprep.subr.mxu0 0.0
    %257 = vmatpush1.msra.mxu0 0.0
    %258 = vmatprep.mubr.f32.mxu0 0.0
    %259 = vmatmul.mubr.f32.gmra.mrb[0].mxu0 %v122
    %v260 = vpop.f32.mrb[0].mxu0
    %v261 = vadd.f32 0.0, %v260
    %v262 = vpop.f32.mrb[0].mxu0
    %263 = vdwg.mxu0
    %264 = vmatprep.subr.mxu0 0.0
    %265 = vmatpush1.msra.mxu0 %v77
    %266 = vmatprep.subr.mxu0 0.0
    %267 = vmatpush1.msra.mxu0 %v78
    %268 = vmatprep.subr.mxu0 0.0
    %269 = vmatpush1.msra.mxu0 %v79
    %270 = vmatprep.subr.mxu0 0.0
    %271 = vmatpush1.msra.mxu0 %v80
    %272 = vmatprep.subr.mxu0 0.0
    %273 = vmatpush1.msra.mxu0 0.0
    %274 = vmatprep.subr.mxu0 0.0
    %275 = vmatpush1.msra.mxu0 0.0
    %276 = vmatprep.subr.mxu0 0.0
    %277 = vmatpush1.msra.mxu0 0.0
    %278 = vmatprep.subr.mxu0 0.0
    %279 = vmatpush1.msra.mxu0 0.0
    %280 = vmatprep.subr.mxu0 0.0
    %281 = vmatpush1.msra.mxu0 0.0
    %282 = vmatprep.subr.mxu0 0.0
    %283 = vmatpush1.msra.mxu0 0.0
    %284 = vmatprep.subr.mxu0 0.0
    %285 = vmatpush1.msra.mxu0 0.0
    %286 = vmatprep.subr.mxu0 0.0
    %287 = vmatpush1.msra.mxu0 0.0
    %288 = vmatprep.subr.mxu0 0.0
    %289 = vmatpush1.msra.mxu0 0.0
    %290 = vmatprep.subr.mxu0 0.0
    %291 = vmatpush1.msra.mxu0 0.0
    %292 = vmatprep.subr.mxu0 0.0
    %293 = vmatpush1.msra.mxu0 0.0
    %294 = vmatprep.subr.mxu0 0.0
    %295 = vmatpush1.msra.mxu0 0.0
    %296 = vmatprep.subr.mxu0 0.0
    %297 = vmatpush1.msra.mxu0 0.0
    %298 = vmatprep.subr.mxu0 0.0
    %299 = vmatpush1.msra.mxu0 0.0
    %300 = vmatprep.subr.mxu0 0.0
    %301 = vmatpush1.msra.mxu0 0.0
    %302 = vmatprep.subr.mxu0 0.0
    %303 = vmatpush1.msra.mxu0 0.0
    %304 = vmatprep.subr.mxu0 0.0
    %305 = vmatpush1.msra.mxu0 0.0
    %306 = vmatprep.subr.mxu0 0.0
    %307 = vmatpush1.msra.mxu0 0.0
    %308 = vmatprep.subr.mxu0 0.0
    %309 = vmatpush1.msra.mxu0 0.0
    %310 = vmatprep.subr.mxu0 0.0
    %311 = vmatpush1.msra.mxu0 0.0
    %312 = vmatprep.subr.mxu0 0.0
    %313 = vmatpush1.msra.mxu0 0.0
    %314 = vmatprep.subr.mxu0 0.0
    %315 = vmatpush1.msra.mxu0 0.0
    %316 = vmatprep.subr.mxu0 0.0
    %317 = vmatpush1.msra.mxu0 0.0
    %318 = vmatprep.subr.mxu0 0.0
    %319 = vmatpush1.msra.mxu0 0.0
    %320 = vmatprep.subr.mxu0 0.0
    %321 = vmatpush1.msra.mxu0 0.0
    %322 = vmatprep.subr.mxu0 0.0
    %323 = vmatpush1.msra.mxu0 0.0
    %324 = vmatprep.subr.mxu0 0.0
    %325 = vmatpush1.msra.mxu0 0.0
    %326 = vmatprep.subr.mxu0 0.0
    %327 = vmatpush1.msra.mxu0 0.0
    %328 = vmatprep.mubr.f32.mxu0 0.0
    %329 = vmatmul.mubr.f32.gmra.mrb[0].mxu0 %v122
    %v330 = vpop.f32.mrb[0].mxu0
    %v331 = vadd.f32 %v191, %v330
    %v332 = vpop.f32.mrb[0].mxu0
    %333 = vdwg.mxu0
    %334 = vmatprep.subr.mxu0 0.0
    %335 = vmatpush1.msra.mxu0 %v81
    %336 = vmatprep.subr.mxu0 0.0
    %337 = vmatpush1.msra.mxu0 %v82
    %338 = vmatprep.subr.mxu0 0.0
    %339 = vmatpush1.msra.mxu0 %v83
    %340 = vmatprep.subr.mxu0 0.0
    %341 = vmatpush1.msra.mxu0 %v84
    %342 = vmatprep.subr.mxu0 0.0
    %343 = vmatpush1.msra.mxu0 0.0
    %344 = vmatprep.subr.mxu0 0.0
    %345 = vmatpush1.msra.mxu0 0.0
    %346 = vmatprep.subr.mxu0 0.0
    %347 = vmatpush1.msra.mxu0 0.0
    %348 = vmatprep.subr.mxu0 0.0
    %349 = vmatpush1.msra.mxu0 0.0
    %350 = vmatprep.subr.mxu0 0.0
    %351 = vmatpush1.msra.mxu0 0.0
    %352 = vmatprep.subr.mxu0 0.0
    %353 = vmatpush1.msra.mxu0 0.0
    %354 = vmatprep.subr.mxu0 0.0
    %355 = vmatpush1.msra.mxu0 0.0
    %356 = vmatprep.subr.mxu0 0.0
    %357 = vmatpush1.msra.mxu0 0.0
    %358 = vmatprep.subr.mxu0 0.0
    %359 = vmatpush1.msra.mxu0 0.0
    %360 = vmatprep.subr.mxu0 0.0
    %361 = vmatpush1.msra.mxu0 0.0
    %362 = vmatprep.subr.mxu0 0.0
    %363 = vmatpush1.msra.mxu0 0.0
    %364 = vmatprep.subr.mxu0 0.0
    %365 = vmatpush1.msra.mxu0 0.0
    %366 = vmatprep.subr.mxu0 0.0
    %367 = vmatpush1.msra.mxu0 0.0
    %368 = vmatprep.subr.mxu0 0.0
    %369 = vmatpush1.msra.mxu0 0.0
    %370 = vmatprep.subr.mxu0 0.0
    %371 = vmatpush1.msra.mxu0 0.0
    %372 = vmatprep.subr.mxu0 0.0
    %373 = vmatpush1.msra.mxu0 0.0
    %374 = vmatprep.subr.mxu0 0.0
    %375 = vmatpush1.msra.mxu0 0.0
    %376 = vmatprep.subr.mxu0 0.0
    %377 = vmatpush1.msra.mxu0 0.0
    %378 = vmatprep.subr.mxu0 0.0
    %379 = vmatpush1.msra.mxu0 0.0
    %380 = vmatprep.subr.mxu0 0.0
    %381 = vmatpush1.msra.mxu0 0.0
    %382 = vmatprep.subr.mxu0 0.0
    %383 = vmatpush1.msra.mxu0 0.0
    %384 = vmatprep.subr.mxu0 0.0
    %385 = vmatpush1.msra.mxu0 0.0
    %386 = vmatprep.subr.mxu0 0.0
    %387 = vmatpush1.msra.mxu0 0.0
    %388 = vmatprep.subr.mxu0 0.0
    %389 = vmatpush1.msra.mxu0 0.0
    %390 = vmatprep.subr.mxu0 0.0
    %391 = vmatpush1.msra.mxu0 0.0
    %392 = vmatprep.subr.mxu0 0.0
    %393 = vmatpush1.msra.mxu0 0.0
    %394 = vmatprep.subr.mxu0 0.0
    %395 = vmatpush1.msra.mxu0 0.0
    %396 = vmatprep.subr.mxu0 0.0
    %397 = vmatpush1.msra.mxu0 0.0
    %398 = vmatprep.mubr.f32.mxu0 0.0
    %399 = vmatmul.mubr.f32.gmra.mrb[0].mxu0 %v122
    %v400 = vpop.f32.mrb[0].mxu0
    %v401 = vadd.f32 %v261, %v400
    %v402 = vpop.f32.mrb[0].mxu0
    %403 = vdwg.mxu0
    %v406 = vunpack.c.l.s4 1966171168
    %v407 = vunpack.c.0.s8 %v406
    %v408 = vlaneseq
    %v409 = vshrl.u32 %v408, 7
    %v410 = vsub.s32 %v407, %v409
    %v411 = vrot.slane %v119, %v410
    %v412 = vcombine.high %v411, %v411
    %v414 = vunpack.c.l.s4 1966171168
    %v415 = vunpack.c.0.s8 %v414
    %v416 = vlaneseq
    %v417 = vshrl.u32 %v416, 7
    %v418 = vsub.s32 %v415, %v417
    %v419 = vrot.slane %v411, %v418
    %v421 = vunpack.c.l.s4 1966171168
    %v422 = vunpack.c.0.s8 %v421
    %v423 = vlaneseq
    %v424 = vshrl.u32 %v423, 7
    %v425 = vsub.s32 %v422, %v424
    %v426 = vrot.slane %v412, %v425
    %v427 = vlaneseq
    %v428 = vshrl.u32 %v427, 7
    %v429 = vsub.s32 0, %v428
    %v430 = vrot.slane %v419, %v429
    %v431 = vlaneseq
    %v432 = vshrl.u32 %v431, 7
    %v433 = vsub.s32 0, %v432
    %v434 = vrot.slane %v426, %v433
    %v437 = vadd.f32 %v331, %v430
    %v438 = vadd.f32 %v401, %v434
    %v439 = vxor.u32 %v437, 2147483648
    %v440 = vxor.u32 %v438, 2147483648
    %v441 = vmul.f32 %v439, 1.442695
    %v442 = vpow.pop %v441
    %v443 = vmul.f32 %v440, 1.442695
    %v444 = vpow.pop %v443
    %v445 = vadd.f32 %v442, 1.0
    %v446 = vadd.f32 %v444, 1.0
    %v447 = vrcp.pop %v445
    %v448 = vmul.f32 1.0, %v447
    %v449 = vrcp.pop %v446
    %v450 = vmul.f32 1.0, %v449
    %v451 = vtanh.pop %v437
    %v452 = vtanh.pop %v438
    %454 = vrot.lane.b32.xlu0 %v118, 32
    %v455 = vpop.permute.xlu0 %454
    %v457 = vmul.f32 %v448, %v455
    %v458 = vmul.f32 %v450, %v455
    %461 = vrot.lane.b32.xlu0 %v451, 64
    %v462 = vpop.permute.xlu0 %461
    %463 = vrot.lane.b32.xlu0 %v452, 64
    %v464 = vpop.permute.xlu0 %463
    %v467 = vmul.f32 %v448, %v462
    %v468 = vmul.f32 %v450, %v464
    %471 = vrot.lane.b32.xlu0 %v467, 32
    %v472 = vpop.permute.xlu0 %471
    %473 = vrot.lane.b32.xlu0 %v468, 32
    %v474 = vpop.permute.xlu0 %473
    %v477 = vadd.f32 %v457, %v472
    %v478 = vadd.f32 %v458, %v474
    %v479 = vtanh.pop %v477
    %v480 = vtanh.pop %v478
    %483 = vrot.lane.b32.xlu0 %v479, 64
    %v484 = vpop.permute.xlu0 %483
    %485 = vrot.lane.b32.xlu0 %v480, 64
    %v486 = vpop.permute.xlu0 %485
    %v489 = vmul.f32 %v448, %v484
    %v490 = vmul.f32 %v450, %v486
    %492 = vrot.lane.b32.xlu0 %v489, 32
    %v493 = vpop.permute.xlu0 %492
    %v494 = vsel %vm120, %v493, 0
    %496 = vmatprep.subr.mxu0 0.0
    %497 = vmatpush1.msra.mxu0 %v93
    %498 = vmatprep.subr.mxu0 0.0
    %499 = vmatpush1.msra.mxu0 %v94
    %500 = vmatprep.subr.mxu0 0.0
    %501 = vmatpush1.msra.mxu0 %v95
    %502 = vmatprep.subr.mxu0 0.0
    %503 = vmatpush1.msra.mxu0 %v96
    %504 = vmatprep.subr.mxu0 0.0
    %505 = vmatpush1.msra.mxu0 0.0
    %506 = vmatprep.subr.mxu0 0.0
    %507 = vmatpush1.msra.mxu0 0.0
    %508 = vmatprep.subr.mxu0 0.0
    %509 = vmatpush1.msra.mxu0 0.0
    %510 = vmatprep.subr.mxu0 0.0
    %511 = vmatpush1.msra.mxu0 0.0
    %512 = vmatprep.subr.mxu0 0.0
    %513 = vmatpush1.msra.mxu0 0.0
    %514 = vmatprep.subr.mxu0 0.0
    %515 = vmatpush1.msra.mxu0 0.0
    %516 = vmatprep.subr.mxu0 0.0
    %517 = vmatpush1.msra.mxu0 0.0
    %518 = vmatprep.subr.mxu0 0.0
    %519 = vmatpush1.msra.mxu0 0.0
    %520 = vmatprep.subr.mxu0 0.0
    %521 = vmatpush1.msra.mxu0 0.0
    %522 = vmatprep.subr.mxu0 0.0
    %523 = vmatpush1.msra.mxu0 0.0
    %524 = vmatprep.subr.mxu0 0.0
    %525 = vmatpush1.msra.mxu0 0.0
    %526 = vmatprep.subr.mxu0 0.0
    %527 = vmatpush1.msra.mxu0 0.0
    %528 = vmatprep.subr.mxu0 0.0
    %529 = vmatpush1.msra.mxu0 0.0
    %530 = vmatprep.subr.mxu0 0.0
    %531 = vmatpush1.msra.mxu0 0.0
    %532 = vmatprep.subr.mxu0 0.0
    %533 = vmatpush1.msra.mxu0 0.0
    %534 = vmatprep.subr.mxu0 0.0
    %535 = vmatpush1.msra.mxu0 0.0
    %536 = vmatprep.subr.mxu0 0.0
    %537 = vmatpush1.msra.mxu0 0.0
    %538 = vmatprep.subr.mxu0 0.0
    %539 = vmatpush1.msra.mxu0 0.0
    %540 = vmatprep.subr.mxu0 0.0
    %541 = vmatpush1.msra.mxu0 0.0
    %542 = vmatprep.subr.mxu0 0.0
    %543 = vmatpush1.msra.mxu0 0.0
    %544 = vmatprep.subr.mxu0 0.0
    %545 = vmatpush1.msra.mxu0 0.0
    %546 = vmatprep.subr.mxu0 0.0
    %547 = vmatpush1.msra.mxu0 0.0
    %548 = vmatprep.subr.mxu0 0.0
    %549 = vmatpush1.msra.mxu0 0.0
    %550 = vmatprep.subr.mxu0 0.0
    %551 = vmatpush1.msra.mxu0 0.0
    %552 = vmatprep.subr.mxu0 0.0
    %553 = vmatpush1.msra.mxu0 0.0
    %554 = vmatprep.subr.mxu0 0.0
    %555 = vmatpush1.msra.mxu0 0.0
    %556 = vmatprep.subr.mxu0 0.0
    %557 = vmatpush1.msra.mxu0 0.0
    %558 = vmatprep.subr.mxu0 0.0
    %559 = vmatpush1.msra.mxu0 0.0
    %560 = vmatprep.mubr.f32.mxu0 0.0
    %561 = vmatmul.mubr.f32.gmra.mrb[0].mxu0 %v494
    %v562 = vpop.f32.mrb[0].mxu0
    %v563 = vadd.f32 0.0, %v562
    %v564 = vpop.f32.mrb[0].mxu0
    %565 = vdwg.mxu0
    %567 = vrot.lane.b32.xlu0 %v490, 32
    %v568 = vpop.permute.xlu0 %567
    %v569 = vsel %vm120, %v568, 0
    %571 = vmatprep.subr.mxu0 0.0
    %572 = vmatpush1.msra.mxu0 %v97
    %573 = vmatprep.subr.mxu0 0.0
    %574 = vmatpush1.msra.mxu0 %v98
    %575 = vmatprep.subr.mxu0 0.0
    %576 = vmatpush1.msra.mxu0 %v99
    %577 = vmatprep.subr.mxu0 0.0
    %578 = vmatpush1.msra.mxu0 %v100
    %579 = vmatprep.subr.mxu0 0.0
    %580 = vmatpush1.msra.mxu0 0.0
    %581 = vmatprep.subr.mxu0 0.0
    %582 = vmatpush1.msra.mxu0 0.0
    %583 = vmatprep.subr.mxu0 0.0
    %584 = vmatpush1.msra.mxu0 0.0
    %585 = vmatprep.subr.mxu0 0.0
    %586 = vmatpush1.msra.mxu0 0.0
    %587 = vmatprep.subr.mxu0 0.0
    %588 = vmatpush1.msra.mxu0 0.0
    %589 = vmatprep.subr.mxu0 0.0
    %590 = vmatpush1.msra.mxu0 0.0
    %591 = vmatprep.subr.mxu0 0.0
    %592 = vmatpush1.msra.mxu0 0.0
    %593 = vmatprep.subr.mxu0 0.0
    %594 = vmatpush1.msra.mxu0 0.0
    %595 = vmatprep.subr.mxu0 0.0
    %596 = vmatpush1.msra.mxu0 0.0
    %597 = vmatprep.subr.mxu0 0.0
    %598 = vmatpush1.msra.mxu0 0.0
    %599 = vmatprep.subr.mxu0 0.0
    %600 = vmatpush1.msra.mxu0 0.0
    %601 = vmatprep.subr.mxu0 0.0
    %602 = vmatpush1.msra.mxu0 0.0
    %603 = vmatprep.subr.mxu0 0.0
    %604 = vmatpush1.msra.mxu0 0.0
    %605 = vmatprep.subr.mxu0 0.0
    %606 = vmatpush1.msra.mxu0 0.0
    %607 = vmatprep.subr.mxu0 0.0
    %608 = vmatpush1.msra.mxu0 0.0
    %609 = vmatprep.subr.mxu0 0.0
    %610 = vmatpush1.msra.mxu0 0.0
    %611 = vmatprep.subr.mxu0 0.0
    %612 = vmatpush1.msra.mxu0 0.0
    %613 = vmatprep.subr.mxu0 0.0
    %614 = vmatpush1.msra.mxu0 0.0
    %615 = vmatprep.subr.mxu0 0.0
    %616 = vmatpush1.msra.mxu0 0.0
    %617 = vmatprep.subr.mxu0 0.0
    %618 = vmatpush1.msra.mxu0 0.0
    %619 = vmatprep.subr.mxu0 0.0
    %620 = vmatpush1.msra.mxu0 0.0
    %621 = vmatprep.subr.mxu0 0.0
    %622 = vmatpush1.msra.mxu0 0.0
    %623 = vmatprep.subr.mxu0 0.0
    %624 = vmatpush1.msra.mxu0 0.0
    %625 = vmatprep.subr.mxu0 0.0
    %626 = vmatpush1.msra.mxu0 0.0
    %627 = vmatprep.subr.mxu0 0.0
    %628 = vmatpush1.msra.mxu0 0.0
    %629 = vmatprep.subr.mxu0 0.0
    %630 = vmatpush1.msra.mxu0 0.0
    %631 = vmatprep.subr.mxu0 0.0
    %632 = vmatpush1.msra.mxu0 0.0
    %633 = vmatprep.subr.mxu0 0.0
    %634 = vmatpush1.msra.mxu0 0.0
    %635 = vmatprep.mubr.f32.mxu0 0.0
    %636 = vmatmul.mubr.f32.gmra.mrb[0].mxu0 %v569
    %v637 = vpop.f32.mrb[0].mxu0
    %v638 = vadd.f32 0.0, %v637
    %v639 = vpop.f32.mrb[0].mxu0
    %640 = vdwg.mxu0
    %v644 = vunpack.c.l.s4 1966171168
    %v645 = vunpack.c.0.s8 %v644
    %v646 = vlaneseq
    %v647 = vshrl.u32 %v646, 7
    %v648 = vsub.s32 %v645, %v647
    %v649 = vrot.slane %v563, %v648
    %v650 = vcombine.high %v649, %v649
    %v652 = vunpack.c.l.s4 1966171168
    %v653 = vunpack.c.0.s8 %v652
    %v654 = vlaneseq
    %v655 = vshrl.u32 %v654, 7
    %v656 = vsub.s32 %v653, %v655
    %v657 = vrot.slane %v649, %v656
    %v659 = vunpack.c.l.s4 1966171168
    %v660 = vunpack.c.0.s8 %v659
    %v661 = vlaneseq
    %v662 = vshrl.u32 %v661, 7
    %v663 = vsub.s32 %v660, %v662
    %v664 = vrot.slane %v650, %v663
    %v666 = vunpack.c.l.s4 1966171168
    %v667 = vunpack.c.0.s8 %v666
    %v668 = vlaneseq
    %v669 = vshrl.u32 %v668, 7
    %v670 = vsub.s32 %v667, %v669
    %v671 = vrot.slane %v638, %v670
    %v672 = vcombine.high %v671, %v671
    %v674 = vunpack.c.l.s4 1966171168
    %v675 = vunpack.c.0.s8 %v674
    %v676 = vlaneseq
    %v677 = vshrl.u32 %v676, 7
    %v678 = vsub.s32 %v675, %v677
    %v679 = vrot.slane %v671, %v678
    %v681 = vunpack.c.l.s4 1966171168
    %v682 = vunpack.c.0.s8 %v681
    %v683 = vlaneseq
    %v684 = vshrl.u32 %v683, 7
    %v685 = vsub.s32 %v682, %v684
    %v686 = vrot.slane %v672, %v685
    %v687 = vlaneseq
    %v688 = vshrl.u32 %v687, 7
    %v689 = vsub.s32 0, %v688
    %v690 = vrot.slane %v657, %v689
    %v691 = vlaneseq
    %v692 = vshrl.u32 %v691, 7
    %v693 = vsub.s32 0, %v692
    %v694 = vrot.slane %v664, %v693
    %v695 = vlaneseq
    %v696 = vshrl.u32 %v695, 7
    %v697 = vsub.s32 0, %v696
    %v698 = vrot.slane %v679, %v697
    %v699 = vlaneseq
    %v700 = vshrl.u32 %v699, 7
    %v701 = vsub.s32 0, %v700
    %v702 = vrot.slane %v686, %v701
    %v707 = vmul.f32 %v68, %v690
    %v708 = vmul.f32 %v69, %v694
    %v709 = vmul.f32 %v68, %v698
    %v710 = vmul.f32 %v69, %v702
    %v711 = vsel %vm120, %v707, 0.0
    %712 = vadd.xlane.f32.xlu0 %v711
    %v713 = vpop.xlane.xlu0 %712
    %v714 = vsel %vm120, %v708, 0.0
    %715 = vadd.xlane.f32.xlu0 %v714
    %v716 = vpop.xlane.xlu0 %715
    %v717 = vsel %vm120, %v709, 0.0
    %718 = vadd.xlane.f32.xlu0 %v717
    %v719 = vpop.xlane.xlu0 %718
    %v720 = vsel %vm120, %v710, 0.0
    %721 = vadd.xlane.f32.xlu0 %v720
    %v722 = vpop.xlane.xlu0 %721
    %v723 = vsel %vm76, 1, 0
    %vm724 = vcmp.eq.s32.totalorder %v723, 1
    %v729 = vlaneseq
    %v730 = vshrl.u32 %v729, 7
    %v731 = vsub.s32 %v72, %v730
    %v732 = vrot.slane %v713, %v731
    %v733 = vlaneseq
    %v734 = vshrl.u32 %v733, 7
    %v735 = vsub.s32 %v72, %v734
    %v736 = vrot.slane %v716, %v735
    %v737 = vlaneseq
    %v738 = vshrl.u32 %v737, 7
    %v739 = vsub.s32 %v72, %v738
    %v740 = vrot.slane %v719, %v739
    %v741 = vlaneseq
    %v742 = vshrl.u32 %v741, 7
    %v743 = vsub.s32 %v72, %v742
    %v744 = vrot.slane %v722, %v743
    %vm745 = vcmask 1041409
    %v746 = vsel %vm745, %v736, %v732
    %v747 = vsel %vm745, %v744, %v740
    %v750 = vsel %vm724, %v746, -1e+30
    %v751 = vsel %vm724, %v747, -1e+30
    %vm752 = vcmask 58368
    %v753 = vsel %vm752, %v750, -inf
    %754 = vmax.xlane.f32.xlu0 %v753
    %v755 = vpop.xlane.xlu0 %754
    %v756 = vsel %vm752, %v751, -inf
    %757 = vmax.xlane.f32.xlu0 %v756
    %v758 = vpop.xlane.xlu0 %757
    %v759 = vsub.f32 %v750, %v755
    %v760 = vsub.f32 %v751, %v758
    %v761 = vmul.f32 %v759, 1.442695
    %v762 = vpow.pop %v761
    %v763 = vmul.f32 %v760, 1.442695
    %v764 = vpow.pop %v763
    %v765 = vsel %vm752, %v762, 0.0
    %766 = vadd.xlane.f32.xlu0 %v765
    %v767 = vpop.xlane.xlu0 %766
    %v768 = vsel %vm752, %v764, 0.0
    %769 = vadd.xlane.f32.xlu0 %v768
    %v770 = vpop.xlane.xlu0 %769
    %v771 = vrcp.pop %v767
    %v772 = vrcp.pop %v770
    %v773 = vmul.f32 %v767, %v771
    %v774 = vmul.f32 %v770, %v772
    %v775 = vsub.f32 2.0, %v773
    %v776 = vsub.f32 2.0, %v774
    %v777 = vmul.f32 %v771, %v775
    %v778 = vmul.f32 %v772, %v776
    %v779 = vmul.f32 %v762, %v777
    %v780 = vmul.f32 %v764, %v778
    %v781 = vlaneseq
    %v782 = vshrl.u32 %v781, 7
    %v783 = vsub.s32 0, %v782
    %v784 = vrot.slane %v779, %v783
    %786 = vbcast.lane.b32.xlu0 %v784, 256
    %v787 = vpop.permute.xlu0 %786
    %v788 = vlaneseq
    %v789 = vshrl.u32 %v788, 7
    %v790 = vsub.s32 1, %v789
    %v791 = vrot.slane %v779, %v790
    %793 = vbcast.lane.b32.xlu0 %v791, 256
    %v794 = vpop.permute.xlu0 %793
    %v795 = vlaneseq
    %v796 = vshrl.u32 %v795, 7
    %v797 = vsub.s32 0, %v796
    %v798 = vrot.slane %v780, %v797
    %800 = vbcast.lane.b32.xlu0 %v798, 256
    %v801 = vpop.permute.xlu0 %800
    %v802 = vlaneseq
    %v803 = vshrl.u32 %v802, 7
    %v804 = vsub.s32 1, %v803
    %v805 = vrot.slane %v780, %v804
    %807 = vbcast.lane.b32.xlu0 %v805, 256
    %v808 = vpop.permute.xlu0 %807
    %v809 = vmul.f32 %v68, %v787
    %v810 = vmul.f32 %v69, %v794
    %v811 = vmul.f32 %v68, %v801
    %v812 = vmul.f32 %v69, %v808
    %v813 = vsel %vm120, %v809, 0.0
    %v814 = vrot.slane %v813, 4
    %v815 = vadd.f32 %v813, %v814
    %v816 = vrot.slane %v815, 2
    %v817 = vadd.f32 %v815, %v816
    %v818 = vrot.slane %v817, 1
    %v819 = vadd.f32 %v817, %v818
    %v820 = vsel %vm120, %v810, 0.0
    %v821 = vrot.slane %v820, 4
    %v822 = vadd.f32 %v820, %v821
    %v823 = vrot.slane %v822, 2
    %v824 = vadd.f32 %v822, %v823
    %v825 = vrot.slane %v824, 1
    %v826 = vadd.f32 %v824, %v825
    %v827 = vsel %vm120, %v811, 0.0
    %v828 = vrot.slane %v827, 4
    %v829 = vadd.f32 %v827, %v828
    %v830 = vrot.slane %v829, 2
    %v831 = vadd.f32 %v829, %v830
    %v832 = vrot.slane %v831, 1
    %v833 = vadd.f32 %v831, %v832
    %v834 = vsel %vm120, %v812, 0.0
    %v835 = vrot.slane %v834, 4
    %v836 = vadd.f32 %v834, %v835
    %v837 = vrot.slane %v836, 2
    %v838 = vadd.f32 %v836, %v837
    %v839 = vrot.slane %v838, 1
    %v840 = vadd.f32 %v838, %v839
    %841 = vmatprep.subr.mxu0 0.0
    %842 = vmatpush1.msra.mxu0 %v109
    %843 = vmatprep.subr.mxu0 0.0
    %844 = vmatpush1.msra.mxu0 %v110
    %845 = vmatprep.subr.mxu0 0.0
    %846 = vmatpush1.msra.mxu0 %v111
    %847 = vmatprep.subr.mxu0 0.0
    %848 = vmatpush1.msra.mxu0 %v112
    %849 = vmatprep.subr.mxu0 0.0
    %850 = vmatpush1.msra.mxu0 0.0
    %851 = vmatprep.subr.mxu0 0.0
    %852 = vmatpush1.msra.mxu0 0.0
    %853 = vmatprep.subr.mxu0 0.0
    %854 = vmatpush1.msra.mxu0 0.0
    %855 = vmatprep.subr.mxu0 0.0
    %856 = vmatpush1.msra.mxu0 0.0
    %857 = vmatprep.subr.mxu0 0.0
    %858 = vmatpush1.msra.mxu0 0.0
    %859 = vmatprep.subr.mxu0 0.0
    %860 = vmatpush1.msra.mxu0 0.0
    %861 = vmatprep.subr.mxu0 0.0
    %862 = vmatpush1.msra.mxu0 0.0
    %863 = vmatprep.subr.mxu0 0.0
    %864 = vmatpush1.msra.mxu0 0.0
    %865 = vmatprep.subr.mxu0 0.0
    %866 = vmatpush1.msra.mxu0 0.0
    %867 = vmatprep.subr.mxu0 0.0
    %868 = vmatpush1.msra.mxu0 0.0
    %869 = vmatprep.subr.mxu0 0.0
    %870 = vmatpush1.msra.mxu0 0.0
    %871 = vmatprep.subr.mxu0 0.0
    %872 = vmatpush1.msra.mxu0 0.0
    %873 = vmatprep.subr.mxu0 0.0
    %874 = vmatpush1.msra.mxu0 0.0
    %875 = vmatprep.subr.mxu0 0.0
    %876 = vmatpush1.msra.mxu0 0.0
    %877 = vmatprep.subr.mxu0 0.0
    %878 = vmatpush1.msra.mxu0 0.0
    %879 = vmatprep.subr.mxu0 0.0
    %880 = vmatpush1.msra.mxu0 0.0
    %881 = vmatprep.subr.mxu0 0.0
    %882 = vmatpush1.msra.mxu0 0.0
    %883 = vmatprep.subr.mxu0 0.0
    %884 = vmatpush1.msra.mxu0 0.0
    %885 = vmatprep.subr.mxu0 0.0
    %886 = vmatpush1.msra.mxu0 0.0
    %887 = vmatprep.subr.mxu0 0.0
    %888 = vmatpush1.msra.mxu0 0.0
    %889 = vmatprep.subr.mxu0 0.0
    %890 = vmatpush1.msra.mxu0 0.0
    %891 = vmatprep.subr.mxu0 0.0
    %892 = vmatpush1.msra.mxu0 0.0
    %893 = vmatprep.subr.mxu0 0.0
    %894 = vmatpush1.msra.mxu0 0.0
    %895 = vmatprep.subr.mxu0 0.0
    %896 = vmatpush1.msra.mxu0 0.0
    %897 = vmatprep.subr.mxu0 0.0
    %898 = vmatpush1.msra.mxu0 0.0
    %899 = vmatprep.subr.mxu0 0.0
    %900 = vmatpush1.msra.mxu0 0.0
    %901 = vmatprep.subr.mxu0 0.0
    %902 = vmatpush1.msra.mxu0 0.0
    %903 = vmatprep.subr.mxu0 0.0
    %904 = vmatpush1.msra.mxu0 0.0
    %905 = vmatprep.mubr.f32.mxu0 0.0
    %906 = vmatmul.mubr.f32.gmra.mrb[0].mxu0 %v494
    %v907 = vpop.f32.mrb[0].mxu0
    %v908 = vadd.f32 0.0, %v907
    %v909 = vpop.f32.mrb[0].mxu0
    %910 = vdwg.mxu0
    %911 = vmatprep.subr.mxu0 0.0
    %912 = vmatpush1.msra.mxu0 %v113
    %913 = vmatprep.subr.mxu0 0.0
    %914 = vmatpush1.msra.mxu0 %v114
    %915 = vmatprep.subr.mxu0 0.0
    %916 = vmatpush1.msra.mxu0 %v115
    %917 = vmatprep.subr.mxu0 0.0
    %918 = vmatpush1.msra.mxu0 %v116
    %919 = vmatprep.subr.mxu0 0.0
    %920 = vmatpush1.msra.mxu0 0.0
    %921 = vmatprep.subr.mxu0 0.0
    %922 = vmatpush1.msra.mxu0 0.0
    %923 = vmatprep.subr.mxu0 0.0
    %924 = vmatpush1.msra.mxu0 0.0
    %925 = vmatprep.subr.mxu0 0.0
    %926 = vmatpush1.msra.mxu0 0.0
    %927 = vmatprep.subr.mxu0 0.0
    %928 = vmatpush1.msra.mxu0 0.0
    %929 = vmatprep.subr.mxu0 0.0
    %930 = vmatpush1.msra.mxu0 0.0
    %931 = vmatprep.subr.mxu0 0.0
    %932 = vmatpush1.msra.mxu0 0.0
    %933 = vmatprep.subr.mxu0 0.0
    %934 = vmatpush1.msra.mxu0 0.0
    %935 = vmatprep.subr.mxu0 0.0
    %936 = vmatpush1.msra.mxu0 0.0
    %937 = vmatprep.subr.mxu0 0.0
    %938 = vmatpush1.msra.mxu0 0.0
    %939 = vmatprep.subr.mxu0 0.0
    %940 = vmatpush1.msra.mxu0 0.0
    %941 = vmatprep.subr.mxu0 0.0
    %942 = vmatpush1.msra.mxu0 0.0
    %943 = vmatprep.subr.mxu0 0.0
    %944 = vmatpush1.msra.mxu0 0.0
    %945 = vmatprep.subr.mxu0 0.0
    %946 = vmatpush1.msra.mxu0 0.0
    %947 = vmatprep.subr.mxu0 0.0
    %948 = vmatpush1.msra.mxu0 0.0
    %949 = vmatprep.subr.mxu0 0.0
    %950 = vmatpush1.msra.mxu0 0.0
    %951 = vmatprep.subr.mxu0 0.0
    %952 = vmatpush1.msra.mxu0 0.0
    %953 = vmatprep.subr.mxu0 0.0
    %954 = vmatpush1.msra.mxu0 0.0
    %955 = vmatprep.subr.mxu0 0.0
    %956 = vmatpush1.msra.mxu0 0.0
    %957 = vmatprep.subr.mxu0 0.0
    %958 = vmatpush1.msra.mxu0 0.0
    %959 = vmatprep.subr.mxu0 0.0
    %960 = vmatpush1.msra.mxu0 0.0
    %961 = vmatprep.subr.mxu0 0.0
    %962 = vmatpush1.msra.mxu0 0.0
    %963 = vmatprep.subr.mxu0 0.0
    %964 = vmatpush1.msra.mxu0 0.0
    %965 = vmatprep.subr.mxu0 0.0
    %966 = vmatpush1.msra.mxu0 0.0
    %967 = vmatprep.subr.mxu0 0.0
    %968 = vmatpush1.msra.mxu0 0.0
    %969 = vmatprep.subr.mxu0 0.0
    %970 = vmatpush1.msra.mxu0 0.0
    %971 = vmatprep.subr.mxu0 0.0
    %972 = vmatpush1.msra.mxu0 0.0
    %973 = vmatprep.subr.mxu0 0.0
    %974 = vmatpush1.msra.mxu0 0.0
    %975 = vmatprep.mubr.f32.mxu0 0.0
    %976 = vmatmul.mubr.f32.gmra.mrb[0].mxu0 %v569
    %v977 = vpop.f32.mrb[0].mxu0
    %v978 = vadd.f32 0.0, %v977
    %v979 = vpop.f32.mrb[0].mxu0
    %980 = vdwg.mxu0
    %v983 = vsel %vm745, %v826, %v819
    %v984 = vsel %vm120, %v983, 0
    %986 = vmatprep.subr.mxu0 0.0
    %987 = vmatpush1.msra.mxu0 %v101
    %988 = vmatprep.subr.mxu0 0.0
    %989 = vmatpush1.msra.mxu0 %v102
    %990 = vmatprep.subr.mxu0 0.0
    %991 = vmatpush1.msra.mxu0 %v103
    %992 = vmatprep.subr.mxu0 0.0
    %993 = vmatpush1.msra.mxu0 %v104
    %994 = vmatprep.subr.mxu0 0.0
    %995 = vmatpush1.msra.mxu0 0.0
    %996 = vmatprep.subr.mxu0 0.0
    %997 = vmatpush1.msra.mxu0 0.0
    %998 = vmatprep.subr.mxu0 0.0
    %999 = vmatpush1.msra.mxu0 0.0
    %1000 = vmatprep.subr.mxu0 0.0
    %1001 = vmatpush1.msra.mxu0 0.0
    %1002 = vmatprep.subr.mxu0 0.0
    %1003 = vmatpush1.msra.mxu0 0.0
    %1004 = vmatprep.subr.mxu0 0.0
    %1005 = vmatpush1.msra.mxu0 0.0
    %1006 = vmatprep.subr.mxu0 0.0
    %1007 = vmatpush1.msra.mxu0 0.0
    %1008 = vmatprep.subr.mxu0 0.0
    %1009 = vmatpush1.msra.mxu0 0.0
    %1010 = vmatprep.subr.mxu0 0.0
    %1011 = vmatpush1.msra.mxu0 0.0
    %1012 = vmatprep.subr.mxu0 0.0
    %1013 = vmatpush1.msra.mxu0 0.0
    %1014 = vmatprep.subr.mxu0 0.0
    %1015 = vmatpush1.msra.mxu0 0.0
    %1016 = vmatprep.subr.mxu0 0.0
    %1017 = vmatpush1.msra.mxu0 0.0
    %1018 = vmatprep.subr.mxu0 0.0
    %1019 = vmatpush1.msra.mxu0 0.0
    %1020 = vmatprep.subr.mxu0 0.0
    %1021 = vmatpush1.msra.mxu0 0.0
    %1022 = vmatprep.subr.mxu0 0.0
    %1023 = vmatpush1.msra.mxu0 0.0
    %1024 = vmatprep.subr.mxu0 0.0
    %1025 = vmatpush1.msra.mxu0 0.0
    %1026 = vmatprep.subr.mxu0 0.0
    %1027 = vmatpush1.msra.mxu0 0.0
    %1028 = vmatprep.subr.mxu0 0.0
    %1029 = vmatpush1.msra.mxu0 0.0
    %1030 = vmatprep.subr.mxu0 0.0
    %1031 = vmatpush1.msra.mxu0 0.0
    %1032 = vmatprep.subr.mxu0 0.0
    %1033 = vmatpush1.msra.mxu0 0.0
    %1034 = vmatprep.subr.mxu0 0.0
    %1035 = vmatpush1.msra.mxu0 0.0
    %1036 = vmatprep.subr.mxu0 0.0
    %1037 = vmatpush1.msra.mxu0 0.0
    %1038 = vmatprep.subr.mxu0 0.0
    %1039 = vmatpush1.msra.mxu0 0.0
    %1040 = vmatprep.subr.mxu0 0.0
    %1041 = vmatpush1.msra.mxu0 0.0
    %1042 = vmatprep.subr.mxu0 0.0
    %1043 = vmatpush1.msra.mxu0 0.0
    %1044 = vmatprep.subr.mxu0 0.0
    %1045 = vmatpush1.msra.mxu0 0.0
    %1046 = vmatprep.subr.mxu0 0.0
    %1047 = vmatpush1.msra.mxu0 0.0
    %1048 = vmatprep.subr.mxu0 0.0
    %1049 = vmatpush1.msra.mxu0 0.0
    %1050 = vmatprep.mubr.f32.mxu0 0.0
    %1051 = vmatmul.mubr.f32.gmra.mrb[0].mxu0 %v984
    %v1052 = vpop.f32.mrb[0].mxu0
    %v1053 = vadd.f32 %v908, %v1052
    %v1054 = vpop.f32.mrb[0].mxu0
    %1055 = vdwg.mxu0
    %v1058 = vsel %vm745, %v840, %v833
    %v1059 = vsel %vm120, %v1058, 0
    %1061 = vmatprep.subr.mxu0 0.0
    %1062 = vmatpush1.msra.mxu0 %v105
    %1063 = vmatprep.subr.mxu0 0.0
    %1064 = vmatpush1.msra.mxu0 %v106
    %1065 = vmatprep.subr.mxu0 0.0
    %1066 = vmatpush1.msra.mxu0 %v107
    %1067 = vmatprep.subr.mxu0 0.0
    %1068 = vmatpush1.msra.mxu0 %v108
    %1069 = vmatprep.subr.mxu0 0.0
    %1070 = vmatpush1.msra.mxu0 0.0
    %1071 = vmatprep.subr.mxu0 0.0
    %1072 = vmatpush1.msra.mxu0 0.0
    %1073 = vmatprep.subr.mxu0 0.0
    %1074 = vmatpush1.msra.mxu0 0.0
    %1075 = vmatprep.subr.mxu0 0.0
    %1076 = vmatpush1.msra.mxu0 0.0
    %1077 = vmatprep.subr.mxu0 0.0
    %1078 = vmatpush1.msra.mxu0 0.0
    %1079 = vmatprep.subr.mxu0 0.0
    %1080 = vmatpush1.msra.mxu0 0.0
    %1081 = vmatprep.subr.mxu0 0.0
    %1082 = vmatpush1.msra.mxu0 0.0
    %1083 = vmatprep.subr.mxu0 0.0
    %1084 = vmatpush1.msra.mxu0 0.0
    %1085 = vmatprep.subr.mxu0 0.0
    %1086 = vmatpush1.msra.mxu0 0.0
    %1087 = vmatprep.subr.mxu0 0.0
    %1088 = vmatpush1.msra.mxu0 0.0
    %1089 = vmatprep.subr.mxu0 0.0
    %1090 = vmatpush1.msra.mxu0 0.0
    %1091 = vmatprep.subr.mxu0 0.0
    %1092 = vmatpush1.msra.mxu0 0.0
    %1093 = vmatprep.subr.mxu0 0.0
    %1094 = vmatpush1.msra.mxu0 0.0
    %1095 = vmatprep.subr.mxu0 0.0
    %1096 = vmatpush1.msra.mxu0 0.0
    %1097 = vmatprep.subr.mxu0 0.0
    %1098 = vmatpush1.msra.mxu0 0.0
    %1099 = vmatprep.subr.mxu0 0.0
    %1100 = vmatpush1.msra.mxu0 0.0
    %1101 = vmatprep.subr.mxu0 0.0
    %1102 = vmatpush1.msra.mxu0 0.0
    %1103 = vmatprep.subr.mxu0 0.0
    %1104 = vmatpush1.msra.mxu0 0.0
    %1105 = vmatprep.subr.mxu0 0.0
    %1106 = vmatpush1.msra.mxu0 0.0
    %1107 = vmatprep.subr.mxu0 0.0
    %1108 = vmatpush1.msra.mxu0 0.0
    %1109 = vmatprep.subr.mxu0 0.0
    %1110 = vmatpush1.msra.mxu0 0.0
    %1111 = vmatprep.subr.mxu0 0.0
    %1112 = vmatpush1.msra.mxu0 0.0
    %1113 = vmatprep.subr.mxu0 0.0
    %1114 = vmatpush1.msra.mxu0 0.0
    %1115 = vmatprep.subr.mxu0 0.0
    %1116 = vmatpush1.msra.mxu0 0.0
    %1117 = vmatprep.subr.mxu0 0.0
    %1118 = vmatpush1.msra.mxu0 0.0
    %1119 = vmatprep.subr.mxu0 0.0
    %1120 = vmatpush1.msra.mxu0 0.0
    %1121 = vmatprep.subr.mxu0 0.0
    %1122 = vmatpush1.msra.mxu0 0.0
    %1123 = vmatprep.subr.mxu0 0.0
    %1124 = vmatpush1.msra.mxu0 0.0
    %1125 = vmatprep.mubr.f32.mxu0 0.0
    %1126 = vmatmul.mubr.f32.gmra.mrb[0].mxu0 %v1059
    %v1127 = vpop.f32.mrb[0].mxu0
    %v1128 = vadd.f32 %v978, %v1127
    %v1129 = vpop.f32.mrb[0].mxu0
    %1130 = vdwg.mxu0
    %v1131 = vtanh.pop %v1053
    %v1132 = vtanh.pop %v1128
    %s1133 = scalar_lea.vmem %s4, 2
    %v1134 = vld [vmem:[%s1133] sm:$0x3]
    %1135 = vmatprep.subr.mxu0 0.0
    %1136 = vmatpush1.msra.mxu0 %v85
    %1137 = vmatprep.subr.mxu0 0.0
    %1138 = vmatpush1.msra.mxu0 %v86
    %1139 = vmatprep.subr.mxu0 0.0
    %1140 = vmatpush1.msra.mxu0 %v87
    %1141 = vmatprep.subr.mxu0 0.0
    %1142 = vmatpush1.msra.mxu0 %v88
    %1143 = vmatprep.subr.mxu0 0.0
    %1144 = vmatpush1.msra.mxu0 0.0
    %1145 = vmatprep.subr.mxu0 0.0
    %1146 = vmatpush1.msra.mxu0 0.0
    %1147 = vmatprep.subr.mxu0 0.0
    %1148 = vmatpush1.msra.mxu0 0.0
    %1149 = vmatprep.subr.mxu0 0.0
    %1150 = vmatpush1.msra.mxu0 0.0
    %1151 = vmatprep.subr.mxu0 0.0
    %1152 = vmatpush1.msra.mxu0 0.0
    %1153 = vmatprep.subr.mxu0 0.0
    %1154 = vmatpush1.msra.mxu0 0.0
    %1155 = vmatprep.subr.mxu0 0.0
    %1156 = vmatpush1.msra.mxu0 0.0
    %1157 = vmatprep.subr.mxu0 0.0
    %1158 = vmatpush1.msra.mxu0 0.0
    %1159 = vmatprep.subr.mxu0 0.0
    %1160 = vmatpush1.msra.mxu0 0.0
    %1161 = vmatprep.subr.mxu0 0.0
    %1162 = vmatpush1.msra.mxu0 0.0
    %1163 = vmatprep.subr.mxu0 0.0
    %1164 = vmatpush1.msra.mxu0 0.0
    %1165 = vmatprep.subr.mxu0 0.0
    %1166 = vmatpush1.msra.mxu0 0.0
    %1167 = vmatprep.subr.mxu0 0.0
    %1168 = vmatpush1.msra.mxu0 0.0
    %1169 = vmatprep.subr.mxu0 0.0
    %1170 = vmatpush1.msra.mxu0 0.0
    %1171 = vmatprep.subr.mxu0 0.0
    %1172 = vmatpush1.msra.mxu0 0.0
    %1173 = vmatprep.subr.mxu0 0.0
    %1174 = vmatpush1.msra.mxu0 0.0
    %1175 = vmatprep.subr.mxu0 0.0
    %1176 = vmatpush1.msra.mxu0 0.0
    %1177 = vmatprep.subr.mxu0 0.0
    %1178 = vmatpush1.msra.mxu0 0.0
    %1179 = vmatprep.subr.mxu0 0.0
    %1180 = vmatpush1.msra.mxu0 0.0
    %1181 = vmatprep.subr.mxu0 0.0
    %1182 = vmatpush1.msra.mxu0 0.0
    %1183 = vmatprep.subr.mxu0 0.0
    %1184 = vmatpush1.msra.mxu0 0.0
    %1185 = vmatprep.subr.mxu0 0.0
    %1186 = vmatpush1.msra.mxu0 0.0
    %1187 = vmatprep.subr.mxu0 0.0
    %1188 = vmatpush1.msra.mxu0 0.0
    %1189 = vmatprep.subr.mxu0 0.0
    %1190 = vmatpush1.msra.mxu0 0.0
    %1191 = vmatprep.subr.mxu0 0.0
    %1192 = vmatpush1.msra.mxu0 0.0
    %1193 = vmatprep.subr.mxu0 0.0
    %1194 = vmatpush1.msra.mxu0 0.0
    %1195 = vmatprep.subr.mxu0 0.0
    %1196 = vmatpush1.msra.mxu0 0.0
    %1197 = vmatprep.subr.mxu0 0.0
    %1198 = vmatpush1.msra.mxu0 0.0
    %1199 = vmatprep.mubr.f32.mxu0 0.0
    %1200 = vmatmul.mubr.f32.gmra.mrb[0].mxu0 %v494
    %v1201 = vpop.f32.mrb[0].mxu0
    %v1202 = vadd.f32 0.0, %v1201
    %v1203 = vpop.f32.mrb[0].mxu0
    %1204 = vdwg.mxu0
    %1205 = vmatprep.subr.mxu0 0.0
    %1206 = vmatpush1.msra.mxu0 %v89
    %1207 = vmatprep.subr.mxu0 0.0
    %1208 = vmatpush1.msra.mxu0 %v90
    %1209 = vmatprep.subr.mxu0 0.0
    %1210 = vmatpush1.msra.mxu0 %v91
    %1211 = vmatprep.subr.mxu0 0.0
    %1212 = vmatpush1.msra.mxu0 %v92
    %1213 = vmatprep.subr.mxu0 0.0
    %1214 = vmatpush1.msra.mxu0 0.0
    %1215 = vmatprep.subr.mxu0 0.0
    %1216 = vmatpush1.msra.mxu0 0.0
    %1217 = vmatprep.subr.mxu0 0.0
    %1218 = vmatpush1.msra.mxu0 0.0
    %1219 = vmatprep.subr.mxu0 0.0
    %1220 = vmatpush1.msra.mxu0 0.0
    %1221 = vmatprep.subr.mxu0 0.0
    %1222 = vmatpush1.msra.mxu0 0.0
    %1223 = vmatprep.subr.mxu0 0.0
    %1224 = vmatpush1.msra.mxu0 0.0
    %1225 = vmatprep.subr.mxu0 0.0
    %1226 = vmatpush1.msra.mxu0 0.0
    %1227 = vmatprep.subr.mxu0 0.0
    %1228 = vmatpush1.msra.mxu0 0.0
    %1229 = vmatprep.subr.mxu0 0.0
    %1230 = vmatpush1.msra.mxu0 0.0
    %1231 = vmatprep.subr.mxu0 0.0
    %1232 = vmatpush1.msra.mxu0 0.0
    %1233 = vmatprep.subr.mxu0 0.0
    %1234 = vmatpush1.msra.mxu0 0.0
    %1235 = vmatprep.subr.mxu0 0.0
    %1236 = vmatpush1.msra.mxu0 0.0
    %1237 = vmatprep.subr.mxu0 0.0
    %1238 = vmatpush1.msra.mxu0 0.0
    %1239 = vmatprep.subr.mxu0 0.0
    %1240 = vmatpush1.msra.mxu0 0.0
    %1241 = vmatprep.subr.mxu0 0.0
    %1242 = vmatpush1.msra.mxu0 0.0
    %1243 = vmatprep.subr.mxu0 0.0
    %1244 = vmatpush1.msra.mxu0 0.0
    %1245 = vmatprep.subr.mxu0 0.0
    %1246 = vmatpush1.msra.mxu0 0.0
    %1247 = vmatprep.subr.mxu0 0.0
    %1248 = vmatpush1.msra.mxu0 0.0
    %1249 = vmatprep.subr.mxu0 0.0
    %1250 = vmatpush1.msra.mxu0 0.0
    %1251 = vmatprep.subr.mxu0 0.0
    %1252 = vmatpush1.msra.mxu0 0.0
    %1253 = vmatprep.subr.mxu0 0.0
    %1254 = vmatpush1.msra.mxu0 0.0
    %1255 = vmatprep.subr.mxu0 0.0
    %1256 = vmatpush1.msra.mxu0 0.0
    %1257 = vmatprep.subr.mxu0 0.0
    %1258 = vmatpush1.msra.mxu0 0.0
    %1259 = vmatprep.subr.mxu0 0.0
    %1260 = vmatpush1.msra.mxu0 0.0
    %1261 = vmatprep.subr.mxu0 0.0
    %1262 = vmatpush1.msra.mxu0 0.0
    %1263 = vmatprep.subr.mxu0 0.0
    %1264 = vmatpush1.msra.mxu0 0.0
    %1265 = vmatprep.subr.mxu0 0.0
    %1266 = vmatpush1.msra.mxu0 0.0
    %1267 = vmatprep.subr.mxu0 0.0
    %1268 = vmatpush1.msra.mxu0 0.0
    %1269 = vmatprep.mubr.f32.mxu0 0.0
    %1270 = vmatmul.mubr.f32.gmra.mrb[0].mxu0 %v569
    %v1271 = vpop.f32.mrb[0].mxu0
    %v1272 = vadd.f32 0.0, %v1271
    %v1273 = vpop.f32.mrb[0].mxu0
    %1274 = vdwg.mxu0
    %v1276 = vsel %vm120, %v1131, 0
    %1278 = vmatprep.subr.mxu0 0.0
    %1279 = vmatpush1.msra.mxu0 %v77
    %1280 = vmatprep.subr.mxu0 0.0
    %1281 = vmatpush1.msra.mxu0 %v78
    %1282 = vmatprep.subr.mxu0 0.0
    %1283 = vmatpush1.msra.mxu0 %v79
    %1284 = vmatprep.subr.mxu0 0.0
    %1285 = vmatpush1.msra.mxu0 %v80
    %1286 = vmatprep.subr.mxu0 0.0
    %1287 = vmatpush1.msra.mxu0 0.0
    %1288 = vmatprep.subr.mxu0 0.0
    %1289 = vmatpush1.msra.mxu0 0.0
    %1290 = vmatprep.subr.mxu0 0.0
    %1291 = vmatpush1.msra.mxu0 0.0
    %1292 = vmatprep.subr.mxu0 0.0
    %1293 = vmatpush1.msra.mxu0 0.0
    %1294 = vmatprep.subr.mxu0 0.0
    %1295 = vmatpush1.msra.mxu0 0.0
    %1296 = vmatprep.subr.mxu0 0.0
    %1297 = vmatpush1.msra.mxu0 0.0
    %1298 = vmatprep.subr.mxu0 0.0
    %1299 = vmatpush1.msra.mxu0 0.0
    %1300 = vmatprep.subr.mxu0 0.0
    %1301 = vmatpush1.msra.mxu0 0.0
    %1302 = vmatprep.subr.mxu0 0.0
    %1303 = vmatpush1.msra.mxu0 0.0
    %1304 = vmatprep.subr.mxu0 0.0
    %1305 = vmatpush1.msra.mxu0 0.0
    %1306 = vmatprep.subr.mxu0 0.0
    %1307 = vmatpush1.msra.mxu0 0.0
    %1308 = vmatprep.subr.mxu0 0.0
    %1309 = vmatpush1.msra.mxu0 0.0
    %1310 = vmatprep.subr.mxu0 0.0
    %1311 = vmatpush1.msra.mxu0 0.0
    %1312 = vmatprep.subr.mxu0 0.0
    %1313 = vmatpush1.msra.mxu0 0.0
    %1314 = vmatprep.subr.mxu0 0.0
    %1315 = vmatpush1.msra.mxu0 0.0
    %1316 = vmatprep.subr.mxu0 0.0
    %1317 = vmatpush1.msra.mxu0 0.0
    %1318 = vmatprep.subr.mxu0 0.0
    %1319 = vmatpush1.msra.mxu0 0.0
    %1320 = vmatprep.subr.mxu0 0.0
    %1321 = vmatpush1.msra.mxu0 0.0
    %1322 = vmatprep.subr.mxu0 0.0
    %1323 = vmatpush1.msra.mxu0 0.0
    %1324 = vmatprep.subr.mxu0 0.0
    %1325 = vmatpush1.msra.mxu0 0.0
    %1326 = vmatprep.subr.mxu0 0.0
    %1327 = vmatpush1.msra.mxu0 0.0
    %1328 = vmatprep.subr.mxu0 0.0
    %1329 = vmatpush1.msra.mxu0 0.0
    %1330 = vmatprep.subr.mxu0 0.0
    %1331 = vmatpush1.msra.mxu0 0.0
    %1332 = vmatprep.subr.mxu0 0.0
    %1333 = vmatpush1.msra.mxu0 0.0
    %1334 = vmatprep.subr.mxu0 0.0
    %1335 = vmatpush1.msra.mxu0 0.0
    %1336 = vmatprep.subr.mxu0 0.0
    %1337 = vmatpush1.msra.mxu0 0.0
    %1338 = vmatprep.subr.mxu0 0.0
    %1339 = vmatpush1.msra.mxu0 0.0
    %1340 = vmatprep.subr.mxu0 0.0
    %1341 = vmatpush1.msra.mxu0 0.0
    %1342 = vmatprep.mubr.f32.mxu0 0.0
    %1343 = vmatmul.mubr.f32.gmra.mrb[0].mxu0 %v1276
    %v1344 = vpop.f32.mrb[0].mxu0
    %v1345 = vadd.f32 %v1202, %v1344
    %v1346 = vpop.f32.mrb[0].mxu0
    %1347 = vdwg.mxu0
    %v1349 = vsel %vm120, %v1132, 0
    %1351 = vmatprep.subr.mxu0 0.0
    %1352 = vmatpush1.msra.mxu0 %v81
    %1353 = vmatprep.subr.mxu0 0.0
    %1354 = vmatpush1.msra.mxu0 %v82
    %1355 = vmatprep.subr.mxu0 0.0
    %1356 = vmatpush1.msra.mxu0 %v83
    %1357 = vmatprep.subr.mxu0 0.0
    %1358 = vmatpush1.msra.mxu0 %v84
    %1359 = vmatprep.subr.mxu0 0.0
    %1360 = vmatpush1.msra.mxu0 0.0
    %1361 = vmatprep.subr.mxu0 0.0
    %1362 = vmatpush1.msra.mxu0 0.0
    %1363 = vmatprep.subr.mxu0 0.0
    %1364 = vmatpush1.msra.mxu0 0.0
    %1365 = vmatprep.subr.mxu0 0.0
    %1366 = vmatpush1.msra.mxu0 0.0
    %1367 = vmatprep.subr.mxu0 0.0
    %1368 = vmatpush1.msra.mxu0 0.0
    %1369 = vmatprep.subr.mxu0 0.0
    %1370 = vmatpush1.msra.mxu0 0.0
    %1371 = vmatprep.subr.mxu0 0.0
    %1372 = vmatpush1.msra.mxu0 0.0
    %1373 = vmatprep.subr.mxu0 0.0
    %1374 = vmatpush1.msra.mxu0 0.0
    %1375 = vmatprep.subr.mxu0 0.0
    %1376 = vmatpush1.msra.mxu0 0.0
    %1377 = vmatprep.subr.mxu0 0.0
    %1378 = vmatpush1.msra.mxu0 0.0
    %1379 = vmatprep.subr.mxu0 0.0
    %1380 = vmatpush1.msra.mxu0 0.0
    %1381 = vmatprep.subr.mxu0 0.0
    %1382 = vmatpush1.msra.mxu0 0.0
    %1383 = vmatprep.subr.mxu0 0.0
    %1384 = vmatpush1.msra.mxu0 0.0
    %1385 = vmatprep.subr.mxu0 0.0
    %1386 = vmatpush1.msra.mxu0 0.0
    %1387 = vmatprep.subr.mxu0 0.0
    %1388 = vmatpush1.msra.mxu0 0.0
    %1389 = vmatprep.subr.mxu0 0.0
    %1390 = vmatpush1.msra.mxu0 0.0
    %1391 = vmatprep.subr.mxu0 0.0
    %1392 = vmatpush1.msra.mxu0 0.0
    %1393 = vmatprep.subr.mxu0 0.0
    %1394 = vmatpush1.msra.mxu0 0.0
    %1395 = vmatprep.subr.mxu0 0.0
    %1396 = vmatpush1.msra.mxu0 0.0
    %1397 = vmatprep.subr.mxu0 0.0
    %1398 = vmatpush1.msra.mxu0 0.0
    %1399 = vmatprep.subr.mxu0 0.0
    %1400 = vmatpush1.msra.mxu0 0.0
    %1401 = vmatprep.subr.mxu0 0.0
    %1402 = vmatpush1.msra.mxu0 0.0
    %1403 = vmatprep.subr.mxu0 0.0
    %1404 = vmatpush1.msra.mxu0 0.0
    %1405 = vmatprep.subr.mxu0 0.0
    %1406 = vmatpush1.msra.mxu0 0.0
    %1407 = vmatprep.subr.mxu0 0.0
    %1408 = vmatpush1.msra.mxu0 0.0
    %1409 = vmatprep.subr.mxu0 0.0
    %1410 = vmatpush1.msra.mxu0 0.0
    %1411 = vmatprep.subr.mxu0 0.0
    %1412 = vmatpush1.msra.mxu0 0.0
    %1413 = vmatprep.subr.mxu0 0.0
    %1414 = vmatpush1.msra.mxu0 0.0
    %1415 = vmatprep.mubr.f32.mxu0 0.0
    %1416 = vmatmul.mubr.f32.gmra.mrb[0].mxu0 %v1349
    %v1417 = vpop.f32.mrb[0].mxu0
    %v1418 = vadd.f32 %v1272, %v1417
    %v1419 = vpop.f32.mrb[0].mxu0
    %1420 = vdwg.mxu0
    %v1423 = vunpack.c.l.s4 1966171168
    %v1424 = vunpack.c.0.s8 %v1423
    %v1425 = vlaneseq
    %v1426 = vshrl.u32 %v1425, 7
    %v1427 = vsub.s32 %v1424, %v1426
    %v1428 = vrot.slane %v1134, %v1427
    %v1429 = vcombine.high %v1428, %v1428
    %v1431 = vunpack.c.l.s4 1966171168
    %v1432 = vunpack.c.0.s8 %v1431
    %v1433 = vlaneseq
    %v1434 = vshrl.u32 %v1433, 7
    %v1435 = vsub.s32 %v1432, %v1434
    %v1436 = vrot.slane %v1428, %v1435
    %v1438 = vunpack.c.l.s4 1966171168
    %v1439 = vunpack.c.0.s8 %v1438
    %v1440 = vlaneseq
    %v1441 = vshrl.u32 %v1440, 7
    %v1442 = vsub.s32 %v1439, %v1441
    %v1443 = vrot.slane %v1429, %v1442
    %v1444 = vlaneseq
    %v1445 = vshrl.u32 %v1444, 7
    %v1446 = vsub.s32 0, %v1445
    %v1447 = vrot.slane %v1436, %v1446
    %v1448 = vlaneseq
    %v1449 = vshrl.u32 %v1448, 7
    %v1450 = vsub.s32 0, %v1449
    %v1451 = vrot.slane %v1443, %v1450
    %v1454 = vadd.f32 %v1345, %v1447
    %v1455 = vadd.f32 %v1418, %v1451
    %v1456 = vxor.u32 %v1454, 2147483648
    %v1457 = vxor.u32 %v1455, 2147483648
    %v1458 = vmul.f32 %v1456, 1.442695
    %v1459 = vpow.pop %v1458
    %v1460 = vmul.f32 %v1457, 1.442695
    %v1461 = vpow.pop %v1460
    %v1462 = vadd.f32 %v1459, 1.0
    %v1463 = vadd.f32 %v1461, 1.0
    %v1464 = vrcp.pop %v1462
    %v1465 = vmul.f32 1.0, %v1464
    %v1466 = vrcp.pop %v1463
    %v1467 = vmul.f32 1.0, %v1466
    %v1468 = vtanh.pop %v1454
    %v1469 = vtanh.pop %v1455
    %v1470 = vmul.f32 %v1465, %v477
    %v1471 = vmul.f32 %v1467, %v478
    %1474 = vrot.lane.b32.xlu0 %v1468, 64
    %v1475 = vpop.permute.xlu0 %1474
    %1476 = vrot.lane.b32.xlu0 %v1469, 64
    %v1477 = vpop.permute.xlu0 %1476
    %v1480 = vmul.f32 %v1465, %v1475
    %v1481 = vmul.f32 %v1467, %v1477
    %1484 = vrot.lane.b32.xlu0 %v1480, 32
    %v1485 = vpop.permute.xlu0 %1484
    %1486 = vrot.lane.b32.xlu0 %v1481, 32
    %v1487 = vpop.permute.xlu0 %1486
    %v1490 = vadd.f32 %v1470, %v1485
    %v1491 = vadd.f32 %v1471, %v1487
    %v1492 = vtanh.pop %v1490
    %v1493 = vtanh.pop %v1491
    %1496 = vrot.lane.b32.xlu0 %v1492, 64
    %v1497 = vpop.permute.xlu0 %1496
    %1498 = vrot.lane.b32.xlu0 %v1493, 64
    %v1499 = vpop.permute.xlu0 %1498
    %v1502 = vmul.f32 %v1465, %v1497
    %v1503 = vmul.f32 %v1467, %v1499
    %1505 = vrot.lane.b32.xlu0 %v1502, 32
    %v1506 = vpop.permute.xlu0 %1505
    %v1507 = vsel %vm120, %v1506, 0
    %1509 = vmatprep.subr.mxu0 0.0
    %1510 = vmatpush1.msra.mxu0 %v93
    %1511 = vmatprep.subr.mxu0 0.0
    %1512 = vmatpush1.msra.mxu0 %v94
    %1513 = vmatprep.subr.mxu0 0.0
    %1514 = vmatpush1.msra.mxu0 %v95
    %1515 = vmatprep.subr.mxu0 0.0
    %1516 = vmatpush1.msra.mxu0 %v96
    %1517 = vmatprep.subr.mxu0 0.0
    %1518 = vmatpush1.msra.mxu0 0.0
    %1519 = vmatprep.subr.mxu0 0.0
    %1520 = vmatpush1.msra.mxu0 0.0
    %1521 = vmatprep.subr.mxu0 0.0
    %1522 = vmatpush1.msra.mxu0 0.0
    %1523 = vmatprep.subr.mxu0 0.0
    %1524 = vmatpush1.msra.mxu0 0.0
    %1525 = vmatprep.subr.mxu0 0.0
    %1526 = vmatpush1.msra.mxu0 0.0
    %1527 = vmatprep.subr.mxu0 0.0
    %1528 = vmatpush1.msra.mxu0 0.0
    %1529 = vmatprep.subr.mxu0 0.0
    %1530 = vmatpush1.msra.mxu0 0.0
    %1531 = vmatprep.subr.mxu0 0.0
    %1532 = vmatpush1.msra.mxu0 0.0
    %1533 = vmatprep.subr.mxu0 0.0
    %1534 = vmatpush1.msra.mxu0 0.0
    %1535 = vmatprep.subr.mxu0 0.0
    %1536 = vmatpush1.msra.mxu0 0.0
    %1537 = vmatprep.subr.mxu0 0.0
    %1538 = vmatpush1.msra.mxu0 0.0
    %1539 = vmatprep.subr.mxu0 0.0
    %1540 = vmatpush1.msra.mxu0 0.0
    %1541 = vmatprep.subr.mxu0 0.0
    %1542 = vmatpush1.msra.mxu0 0.0
    %1543 = vmatprep.subr.mxu0 0.0
    %1544 = vmatpush1.msra.mxu0 0.0
    %1545 = vmatprep.subr.mxu0 0.0
    %1546 = vmatpush1.msra.mxu0 0.0
    %1547 = vmatprep.subr.mxu0 0.0
    %1548 = vmatpush1.msra.mxu0 0.0
    %1549 = vmatprep.subr.mxu0 0.0
    %1550 = vmatpush1.msra.mxu0 0.0
    %1551 = vmatprep.subr.mxu0 0.0
    %1552 = vmatpush1.msra.mxu0 0.0
    %1553 = vmatprep.subr.mxu0 0.0
    %1554 = vmatpush1.msra.mxu0 0.0
    %1555 = vmatprep.subr.mxu0 0.0
    %1556 = vmatpush1.msra.mxu0 0.0
    %1557 = vmatprep.subr.mxu0 0.0
    %1558 = vmatpush1.msra.mxu0 0.0
    %1559 = vmatprep.subr.mxu0 0.0
    %1560 = vmatpush1.msra.mxu0 0.0
    %1561 = vmatprep.subr.mxu0 0.0
    %1562 = vmatpush1.msra.mxu0 0.0
    %1563 = vmatprep.subr.mxu0 0.0
    %1564 = vmatpush1.msra.mxu0 0.0
    %1565 = vmatprep.subr.mxu0 0.0
    %1566 = vmatpush1.msra.mxu0 0.0
    %1567 = vmatprep.subr.mxu0 0.0
    %1568 = vmatpush1.msra.mxu0 0.0
    %1569 = vmatprep.subr.mxu0 0.0
    %1570 = vmatpush1.msra.mxu0 0.0
    %1571 = vmatprep.subr.mxu0 0.0
    %1572 = vmatpush1.msra.mxu0 0.0
    %1573 = vmatprep.mubr.f32.mxu0 0.0
    %1574 = vmatmul.mubr.f32.gmra.mrb[0].mxu0 %v1507
    %v1575 = vpop.f32.mrb[0].mxu0
    %v1576 = vadd.f32 0.0, %v1575
    %v1577 = vpop.f32.mrb[0].mxu0
    %1578 = vdwg.mxu0
    %1580 = vrot.lane.b32.xlu0 %v1503, 32
    %v1581 = vpop.permute.xlu0 %1580
    %v1582 = vsel %vm120, %v1581, 0
    %1584 = vmatprep.subr.mxu0 0.0
    %1585 = vmatpush1.msra.mxu0 %v97
    %1586 = vmatprep.subr.mxu0 0.0
    %1587 = vmatpush1.msra.mxu0 %v98
    %1588 = vmatprep.subr.mxu0 0.0
    %1589 = vmatpush1.msra.mxu0 %v99
    %1590 = vmatprep.subr.mxu0 0.0
    %1591 = vmatpush1.msra.mxu0 %v100
    %1592 = vmatprep.subr.mxu0 0.0
    %1593 = vmatpush1.msra.mxu0 0.0
    %1594 = vmatprep.subr.mxu0 0.0
    %1595 = vmatpush1.msra.mxu0 0.0
    %1596 = vmatprep.subr.mxu0 0.0
    %1597 = vmatpush1.msra.mxu0 0.0
    %1598 = vmatprep.subr.mxu0 0.0
    %1599 = vmatpush1.msra.mxu0 0.0
    %1600 = vmatprep.subr.mxu0 0.0
    %1601 = vmatpush1.msra.mxu0 0.0
    %1602 = vmatprep.subr.mxu0 0.0
    %1603 = vmatpush1.msra.mxu0 0.0
    %1604 = vmatprep.subr.mxu0 0.0
    %1605 = vmatpush1.msra.mxu0 0.0
    %1606 = vmatprep.subr.mxu0 0.0
    %1607 = vmatpush1.msra.mxu0 0.0
    %1608 = vmatprep.subr.mxu0 0.0
    %1609 = vmatpush1.msra.mxu0 0.0
    %1610 = vmatprep.subr.mxu0 0.0
    %1611 = vmatpush1.msra.mxu0 0.0
    %1612 = vmatprep.subr.mxu0 0.0
    %1613 = vmatpush1.msra.mxu0 0.0
    %1614 = vmatprep.subr.mxu0 0.0
    %1615 = vmatpush1.msra.mxu0 0.0
    %1616 = vmatprep.subr.mxu0 0.0
    %1617 = vmatpush1.msra.mxu0 0.0
    %1618 = vmatprep.subr.mxu0 0.0
    %1619 = vmatpush1.msra.mxu0 0.0
    %1620 = vmatprep.subr.mxu0 0.0
    %1621 = vmatpush1.msra.mxu0 0.0
    %1622 = vmatprep.subr.mxu0 0.0
    %1623 = vmatpush1.msra.mxu0 0.0
    %1624 = vmatprep.subr.mxu0 0.0
    %1625 = vmatpush1.msra.mxu0 0.0
    %1626 = vmatprep.subr.mxu0 0.0
    %1627 = vmatpush1.msra.mxu0 0.0
    %1628 = vmatprep.subr.mxu0 0.0
    %1629 = vmatpush1.msra.mxu0 0.0
    %1630 = vmatprep.subr.mxu0 0.0
    %1631 = vmatpush1.msra.mxu0 0.0
    %1632 = vmatprep.subr.mxu0 0.0
    %1633 = vmatpush1.msra.mxu0 0.0
    %1634 = vmatprep.subr.mxu0 0.0
    %1635 = vmatpush1.msra.mxu0 0.0
    %1636 = vmatprep.subr.mxu0 0.0
    %1637 = vmatpush1.msra.mxu0 0.0
    %1638 = vmatprep.subr.mxu0 0.0
    %1639 = vmatpush1.msra.mxu0 0.0
    %1640 = vmatprep.subr.mxu0 0.0
    %1641 = vmatpush1.msra.mxu0 0.0
    %1642 = vmatprep.subr.mxu0 0.0
    %1643 = vmatpush1.msra.mxu0 0.0
    %1644 = vmatprep.subr.mxu0 0.0
    %1645 = vmatpush1.msra.mxu0 0.0
    %1646 = vmatprep.subr.mxu0 0.0
    %1647 = vmatpush1.msra.mxu0 0.0
    %1648 = vmatprep.mubr.f32.mxu0 0.0
    %1649 = vmatmul.mubr.f32.gmra.mrb[0].mxu0 %v1582
    %v1650 = vpop.f32.mrb[0].mxu0
    %v1651 = vadd.f32 0.0, %v1650
    %v1652 = vpop.f32.mrb[0].mxu0
    %1653 = vdwg.mxu0
    %v1657 = vunpack.c.l.s4 1966171168
    %v1658 = vunpack.c.0.s8 %v1657
    %v1659 = vlaneseq
    %v1660 = vshrl.u32 %v1659, 7
    %v1661 = vsub.s32 %v1658, %v1660
    %v1662 = vrot.slane %v1576, %v1661
    %v1663 = vcombine.high %v1662, %v1662
    %v1665 = vunpack.c.l.s4 1966171168
    %v1666 = vunpack.c.0.s8 %v1665
    %v1667 = vlaneseq
    %v1668 = vshrl.u32 %v1667, 7
    %v1669 = vsub.s32 %v1666, %v1668
    %v1670 = vrot.slane %v1662, %v1669
    %v1672 = vunpack.c.l.s4 1966171168
    %v1673 = vunpack.c.0.s8 %v1672
    %v1674 = vlaneseq
    %v1675 = vshrl.u32 %v1674, 7
    %v1676 = vsub.s32 %v1673, %v1675
    %v1677 = vrot.slane %v1663, %v1676
    %v1679 = vunpack.c.l.s4 1966171168
    %v1680 = vunpack.c.0.s8 %v1679
    %v1681 = vlaneseq
    %v1682 = vshrl.u32 %v1681, 7
    %v1683 = vsub.s32 %v1680, %v1682
    %v1684 = vrot.slane %v1651, %v1683
    %v1685 = vcombine.high %v1684, %v1684
    %v1687 = vunpack.c.l.s4 1966171168
    %v1688 = vunpack.c.0.s8 %v1687
    %v1689 = vlaneseq
    %v1690 = vshrl.u32 %v1689, 7
    %v1691 = vsub.s32 %v1688, %v1690
    %v1692 = vrot.slane %v1684, %v1691
    %v1694 = vunpack.c.l.s4 1966171168
    %v1695 = vunpack.c.0.s8 %v1694
    %v1696 = vlaneseq
    %v1697 = vshrl.u32 %v1696, 7
    %v1698 = vsub.s32 %v1695, %v1697
    %v1699 = vrot.slane %v1685, %v1698
    %v1700 = vlaneseq
    %v1701 = vshrl.u32 %v1700, 7
    %v1702 = vsub.s32 0, %v1701
    %v1703 = vrot.slane %v1670, %v1702
    %v1704 = vlaneseq
    %v1705 = vshrl.u32 %v1704, 7
    %v1706 = vsub.s32 0, %v1705
    %v1707 = vrot.slane %v1677, %v1706
    %v1708 = vlaneseq
    %v1709 = vshrl.u32 %v1708, 7
    %v1710 = vsub.s32 0, %v1709
    %v1711 = vrot.slane %v1692, %v1710
    %v1712 = vlaneseq
    %v1713 = vshrl.u32 %v1712, 7
    %v1714 = vsub.s32 0, %v1713
    %v1715 = vrot.slane %v1699, %v1714
    %v1720 = vmul.f32 %v68, %v1703
    %v1721 = vmul.f32 %v69, %v1707
    %v1722 = vmul.f32 %v68, %v1711
    %v1723 = vmul.f32 %v69, %v1715
    %v1724 = vsel %vm120, %v1720, 0.0
    %1725 = vadd.xlane.f32.xlu0 %v1724
    %v1726 = vpop.xlane.xlu0 %1725
    %v1727 = vsel %vm120, %v1721, 0.0
    %1728 = vadd.xlane.f32.xlu0 %v1727
    %v1729 = vpop.xlane.xlu0 %1728
    %v1730 = vsel %vm120, %v1722, 0.0
    %1731 = vadd.xlane.f32.xlu0 %v1730
    %v1732 = vpop.xlane.xlu0 %1731
    %v1733 = vsel %vm120, %v1723, 0.0
    %1734 = vadd.xlane.f32.xlu0 %v1733
    %v1735 = vpop.xlane.xlu0 %1734
    %v1740 = vlaneseq
    %v1741 = vshrl.u32 %v1740, 7
    %v1742 = vsub.s32 %v72, %v1741
    %v1743 = vrot.slane %v1726, %v1742
    %v1744 = vlaneseq
    %v1745 = vshrl.u32 %v1744, 7
    %v1746 = vsub.s32 %v72, %v1745
    %v1747 = vrot.slane %v1729, %v1746
    %v1748 = vlaneseq
    %v1749 = vshrl.u32 %v1748, 7
    %v1750 = vsub.s32 %v72, %v1749
    %v1751 = vrot.slane %v1732, %v1750
    %v1752 = vlaneseq
    %v1753 = vshrl.u32 %v1752, 7
    %v1754 = vsub.s32 %v72, %v1753
    %v1755 = vrot.slane %v1735, %v1754
    %v1756 = vsel %vm745, %v1747, %v1743
    %v1757 = vsel %vm745, %v1755, %v1751
    %v1760 = vsel %vm724, %v1756, -1e+30
    %v1761 = vsel %vm724, %v1757, -1e+30
    %v1762 = vsel %vm752, %v1760, -inf
    %1763 = vmax.xlane.f32.xlu0 %v1762
    %v1764 = vpop.xlane.xlu0 %1763
    %v1765 = vsel %vm752, %v1761, -inf
    %1766 = vmax.xlane.f32.xlu0 %v1765
    %v1767 = vpop.xlane.xlu0 %1766
    %v1768 = vsub.f32 %v1760, %v1764
    %v1769 = vsub.f32 %v1761, %v1767
    %v1770 = vmul.f32 %v1768, 1.442695
    %v1771 = vpow.pop %v1770
    %v1772 = vmul.f32 %v1769, 1.442695
    %v1773 = vpow.pop %v1772
    %v1774 = vsel %vm752, %v1771, 0.0
    %1775 = vadd.xlane.f32.xlu0 %v1774
    %v1776 = vpop.xlane.xlu0 %1775
    %v1777 = vsel %vm752, %v1773, 0.0
    %1778 = vadd.xlane.f32.xlu0 %v1777
    %v1779 = vpop.xlane.xlu0 %1778
    %v1780 = vrcp.pop %v1776
    %v1781 = vrcp.pop %v1779
    %v1782 = vmul.f32 %v1776, %v1780
    %v1783 = vmul.f32 %v1779, %v1781
    %v1784 = vsub.f32 2.0, %v1782
    %v1785 = vsub.f32 2.0, %v1783
    %v1786 = vmul.f32 %v1780, %v1784
    %v1787 = vmul.f32 %v1781, %v1785
    %v1788 = vmul.f32 %v1771, %v1786
    %v1789 = vmul.f32 %v1773, %v1787
    %v1790 = vlaneseq
    %v1791 = vshrl.u32 %v1790, 7
    %v1792 = vsub.s32 0, %v1791
    %v1793 = vrot.slane %v1788, %v1792
    %1795 = vbcast.lane.b32.xlu0 %v1793, 256
    %v1796 = vpop.permute.xlu0 %1795
    %v1797 = vlaneseq
    %v1798 = vshrl.u32 %v1797, 7
    %v1799 = vsub.s32 1, %v1798
    %v1800 = vrot.slane %v1788, %v1799
    %1802 = vbcast.lane.b32.xlu0 %v1800, 256
    %v1803 = vpop.permute.xlu0 %1802
    %v1804 = vlaneseq
    %v1805 = vshrl.u32 %v1804, 7
    %v1806 = vsub.s32 0, %v1805
    %v1807 = vrot.slane %v1789, %v1806
    %1809 = vbcast.lane.b32.xlu0 %v1807, 256
    %v1810 = vpop.permute.xlu0 %1809
    %v1811 = vlaneseq
    %v1812 = vshrl.u32 %v1811, 7
    %v1813 = vsub.s32 1, %v1812
    %v1814 = vrot.slane %v1789, %v1813
    %1816 = vbcast.lane.b32.xlu0 %v1814, 256
    %v1817 = vpop.permute.xlu0 %1816
    %v1818 = vmul.f32 %v68, %v1796
    %v1819 = vmul.f32 %v69, %v1803
    %v1820 = vmul.f32 %v68, %v1810
    %v1821 = vmul.f32 %v69, %v1817
    %v1822 = vsel %vm120, %v1818, 0.0
    %v1823 = vrot.slane %v1822, 4
    %v1824 = vadd.f32 %v1822, %v1823
    %v1825 = vrot.slane %v1824, 2
    %v1826 = vadd.f32 %v1824, %v1825
    %v1827 = vrot.slane %v1826, 1
    %v1828 = vadd.f32 %v1826, %v1827
    %v1829 = vsel %vm120, %v1819, 0.0
    %v1830 = vrot.slane %v1829, 4
    %v1831 = vadd.f32 %v1829, %v1830
    %v1832 = vrot.slane %v1831, 2
    %v1833 = vadd.f32 %v1831, %v1832
    %v1834 = vrot.slane %v1833, 1
    %v1835 = vadd.f32 %v1833, %v1834
    %v1836 = vsel %vm120, %v1820, 0.0
    %v1837 = vrot.slane %v1836, 4
    %v1838 = vadd.f32 %v1836, %v1837
    %v1839 = vrot.slane %v1838, 2
    %v1840 = vadd.f32 %v1838, %v1839
    %v1841 = vrot.slane %v1840, 1
    %v1842 = vadd.f32 %v1840, %v1841
    %v1843 = vsel %vm120, %v1821, 0.0
    %v1844 = vrot.slane %v1843, 4
    %v1845 = vadd.f32 %v1843, %v1844
    %v1846 = vrot.slane %v1845, 2
    %v1847 = vadd.f32 %v1845, %v1846
    %v1848 = vrot.slane %v1847, 1
    %v1849 = vadd.f32 %v1847, %v1848
    %1850 = vmatprep.subr.mxu0 0.0
    %1851 = vmatpush1.msra.mxu0 %v109
    %1852 = vmatprep.subr.mxu0 0.0
    %1853 = vmatpush1.msra.mxu0 %v110
    %1854 = vmatprep.subr.mxu0 0.0
    %1855 = vmatpush1.msra.mxu0 %v111
    %1856 = vmatprep.subr.mxu0 0.0
    %1857 = vmatpush1.msra.mxu0 %v112
    %1858 = vmatprep.subr.mxu0 0.0
    %1859 = vmatpush1.msra.mxu0 0.0
    %1860 = vmatprep.subr.mxu0 0.0
    %1861 = vmatpush1.msra.mxu0 0.0
    %1862 = vmatprep.subr.mxu0 0.0
    %1863 = vmatpush1.msra.mxu0 0.0
    %1864 = vmatprep.subr.mxu0 0.0
    %1865 = vmatpush1.msra.mxu0 0.0
    %1866 = vmatprep.subr.mxu0 0.0
    %1867 = vmatpush1.msra.mxu0 0.0
    %1868 = vmatprep.subr.mxu0 0.0
    %1869 = vmatpush1.msra.mxu0 0.0
    %1870 = vmatprep.subr.mxu0 0.0
    %1871 = vmatpush1.msra.mxu0 0.0
    %1872 = vmatprep.subr.mxu0 0.0
    %1873 = vmatpush1.msra.mxu0 0.0
    %1874 = vmatprep.subr.mxu0 0.0
    %1875 = vmatpush1.msra.mxu0 0.0
    %1876 = vmatprep.subr.mxu0 0.0
    %1877 = vmatpush1.msra.mxu0 0.0
    %1878 = vmatprep.subr.mxu0 0.0
    %1879 = vmatpush1.msra.mxu0 0.0
    %1880 = vmatprep.subr.mxu0 0.0
    %1881 = vmatpush1.msra.mxu0 0.0
    %1882 = vmatprep.subr.mxu0 0.0
    %1883 = vmatpush1.msra.mxu0 0.0
    %1884 = vmatprep.subr.mxu0 0.0
    %1885 = vmatpush1.msra.mxu0 0.0
    %1886 = vmatprep.subr.mxu0 0.0
    %1887 = vmatpush1.msra.mxu0 0.0
    %1888 = vmatprep.subr.mxu0 0.0
    %1889 = vmatpush1.msra.mxu0 0.0
    %1890 = vmatprep.subr.mxu0 0.0
    %1891 = vmatpush1.msra.mxu0 0.0
    %1892 = vmatprep.subr.mxu0 0.0
    %1893 = vmatpush1.msra.mxu0 0.0
    %1894 = vmatprep.subr.mxu0 0.0
    %1895 = vmatpush1.msra.mxu0 0.0
    %1896 = vmatprep.subr.mxu0 0.0
    %1897 = vmatpush1.msra.mxu0 0.0
    %1898 = vmatprep.subr.mxu0 0.0
    %1899 = vmatpush1.msra.mxu0 0.0
    %1900 = vmatprep.subr.mxu0 0.0
    %1901 = vmatpush1.msra.mxu0 0.0
    %1902 = vmatprep.subr.mxu0 0.0
    %1903 = vmatpush1.msra.mxu0 0.0
    %1904 = vmatprep.subr.mxu0 0.0
    %1905 = vmatpush1.msra.mxu0 0.0
    %1906 = vmatprep.subr.mxu0 0.0
    %1907 = vmatpush1.msra.mxu0 0.0
    %1908 = vmatprep.subr.mxu0 0.0
    %1909 = vmatpush1.msra.mxu0 0.0
    %1910 = vmatprep.subr.mxu0 0.0
    %1911 = vmatpush1.msra.mxu0 0.0
    %1912 = vmatprep.subr.mxu0 0.0
    %1913 = vmatpush1.msra.mxu0 0.0
    %1914 = vmatprep.mubr.f32.mxu0 0.0
    %1915 = vmatmul.mubr.f32.gmra.mrb[0].mxu0 %v1507
    %v1916 = vpop.f32.mrb[0].mxu0
    %v1917 = vadd.f32 0.0, %v1916
    %v1918 = vpop.f32.mrb[0].mxu0
    %1919 = vdwg.mxu0
    %1920 = vmatprep.subr.mxu0 0.0
    %1921 = vmatpush1.msra.mxu0 %v113
    %1922 = vmatprep.subr.mxu0 0.0
    %1923 = vmatpush1.msra.mxu0 %v114
    %1924 = vmatprep.subr.mxu0 0.0
    %1925 = vmatpush1.msra.mxu0 %v115
    %1926 = vmatprep.subr.mxu0 0.0
    %1927 = vmatpush1.msra.mxu0 %v116
    %1928 = vmatprep.subr.mxu0 0.0
    %1929 = vmatpush1.msra.mxu0 0.0
    %1930 = vmatprep.subr.mxu0 0.0
    %1931 = vmatpush1.msra.mxu0 0.0
    %1932 = vmatprep.subr.mxu0 0.0
    %1933 = vmatpush1.msra.mxu0 0.0
    %1934 = vmatprep.subr.mxu0 0.0
    %1935 = vmatpush1.msra.mxu0 0.0
    %1936 = vmatprep.subr.mxu0 0.0
    %1937 = vmatpush1.msra.mxu0 0.0
    %1938 = vmatprep.subr.mxu0 0.0
    %1939 = vmatpush1.msra.mxu0 0.0
    %1940 = vmatprep.subr.mxu0 0.0
    %1941 = vmatpush1.msra.mxu0 0.0
    %1942 = vmatprep.subr.mxu0 0.0
    %1943 = vmatpush1.msra.mxu0 0.0
    %1944 = vmatprep.subr.mxu0 0.0
    %1945 = vmatpush1.msra.mxu0 0.0
    %1946 = vmatprep.subr.mxu0 0.0
    %1947 = vmatpush1.msra.mxu0 0.0
    %1948 = vmatprep.subr.mxu0 0.0
    %1949 = vmatpush1.msra.mxu0 0.0
    %1950 = vmatprep.subr.mxu0 0.0
    %1951 = vmatpush1.msra.mxu0 0.0
    %1952 = vmatprep.subr.mxu0 0.0
    %1953 = vmatpush1.msra.mxu0 0.0
    %1954 = vmatprep.subr.mxu0 0.0
    %1955 = vmatpush1.msra.mxu0 0.0
    %1956 = vmatprep.subr.mxu0 0.0
    %1957 = vmatpush1.msra.mxu0 0.0
    %1958 = vmatprep.subr.mxu0 0.0
    %1959 = vmatpush1.msra.mxu0 0.0
    %1960 = vmatprep.subr.mxu0 0.0
    %1961 = vmatpush1.msra.mxu0 0.0
    %1962 = vmatprep.subr.mxu0 0.0
    %1963 = vmatpush1.msra.mxu0 0.0
    %1964 = vmatprep.subr.mxu0 0.0
    %1965 = vmatpush1.msra.mxu0 0.0
    %1966 = vmatprep.subr.mxu0 0.0
    %1967 = vmatpush1.msra.mxu0 0.0
    %1968 = vmatprep.subr.mxu0 0.0
    %1969 = vmatpush1.msra.mxu0 0.0
    %1970 = vmatprep.subr.mxu0 0.0
    %1971 = vmatpush1.msra.mxu0 0.0
    %1972 = vmatprep.subr.mxu0 0.0
    %1973 = vmatpush1.msra.mxu0 0.0
    %1974 = vmatprep.subr.mxu0 0.0
    %1975 = vmatpush1.msra.mxu0 0.0
    %1976 = vmatprep.subr.mxu0 0.0
    %1977 = vmatpush1.msra.mxu0 0.0
    %1978 = vmatprep.subr.mxu0 0.0
    %1979 = vmatpush1.msra.mxu0 0.0
    %1980 = vmatprep.subr.mxu0 0.0
    %1981 = vmatpush1.msra.mxu0 0.0
    %1982 = vmatprep.subr.mxu0 0.0
    %1983 = vmatpush1.msra.mxu0 0.0
    %1984 = vmatprep.mubr.f32.mxu0 0.0
    %1985 = vmatmul.mubr.f32.gmra.mrb[0].mxu0 %v1582
    %v1986 = vpop.f32.mrb[0].mxu0
    %v1987 = vadd.f32 0.0, %v1986
    %v1988 = vpop.f32.mrb[0].mxu0
    %1989 = vdwg.mxu0
    %v1992 = vsel %vm745, %v1835, %v1828
    %v1993 = vsel %vm120, %v1992, 0
    %1995 = vmatprep.subr.mxu0 0.0
    %1996 = vmatpush1.msra.mxu0 %v101
    %1997 = vmatprep.subr.mxu0 0.0
    %1998 = vmatpush1.msra.mxu0 %v102
    %1999 = vmatprep.subr.mxu0 0.0
    %2000 = vmatpush1.msra.mxu0 %v103
    %2001 = vmatprep.subr.mxu0 0.0
    %2002 = vmatpush1.msra.mxu0 %v104
    %2003 = vmatprep.subr.mxu0 0.0
    %2004 = vmatpush1.msra.mxu0 0.0
    %2005 = vmatprep.subr.mxu0 0.0
    %2006 = vmatpush1.msra.mxu0 0.0
    %2007 = vmatprep.subr.mxu0 0.0
    %2008 = vmatpush1.msra.mxu0 0.0
    %2009 = vmatprep.subr.mxu0 0.0
    %2010 = vmatpush1.msra.mxu0 0.0
    %2011 = vmatprep.subr.mxu0 0.0
    %2012 = vmatpush1.msra.mxu0 0.0
    %2013 = vmatprep.subr.mxu0 0.0
    %2014 = vmatpush1.msra.mxu0 0.0
    %2015 = vmatprep.subr.mxu0 0.0
    %2016 = vmatpush1.msra.mxu0 0.0
    %2017 = vmatprep.subr.mxu0 0.0
    %2018 = vmatpush1.msra.mxu0 0.0
    %2019 = vmatprep.subr.mxu0 0.0
    %2020 = vmatpush1.msra.mxu0 0.0
    %2021 = vmatprep.subr.mxu0 0.0
    %2022 = vmatpush1.msra.mxu0 0.0
    %2023 = vmatprep.subr.mxu0 0.0
    %2024 = vmatpush1.msra.mxu0 0.0
    %2025 = vmatprep.subr.mxu0 0.0
    %2026 = vmatpush1.msra.mxu0 0.0
    %2027 = vmatprep.subr.mxu0 0.0
    %2028 = vmatpush1.msra.mxu0 0.0
    %2029 = vmatprep.subr.mxu0 0.0
    %2030 = vmatpush1.msra.mxu0 0.0
    %2031 = vmatprep.subr.mxu0 0.0
    %2032 = vmatpush1.msra.mxu0 0.0
    %2033 = vmatprep.subr.mxu0 0.0
    %2034 = vmatpush1.msra.mxu0 0.0
    %2035 = vmatprep.subr.mxu0 0.0
    %2036 = vmatpush1.msra.mxu0 0.0
    %2037 = vmatprep.subr.mxu0 0.0
    %2038 = vmatpush1.msra.mxu0 0.0
    %2039 = vmatprep.subr.mxu0 0.0
    %2040 = vmatpush1.msra.mxu0 0.0
    %2041 = vmatprep.subr.mxu0 0.0
    %2042 = vmatpush1.msra.mxu0 0.0
    %2043 = vmatprep.subr.mxu0 0.0
    %2044 = vmatpush1.msra.mxu0 0.0
    %2045 = vmatprep.subr.mxu0 0.0
    %2046 = vmatpush1.msra.mxu0 0.0
    %2047 = vmatprep.subr.mxu0 0.0
    %2048 = vmatpush1.msra.mxu0 0.0
    %2049 = vmatprep.subr.mxu0 0.0
    %2050 = vmatpush1.msra.mxu0 0.0
    %2051 = vmatprep.subr.mxu0 0.0
    %2052 = vmatpush1.msra.mxu0 0.0
    %2053 = vmatprep.subr.mxu0 0.0
    %2054 = vmatpush1.msra.mxu0 0.0
    %2055 = vmatprep.subr.mxu0 0.0
    %2056 = vmatpush1.msra.mxu0 0.0
    %2057 = vmatprep.subr.mxu0 0.0
    %2058 = vmatpush1.msra.mxu0 0.0
    %2059 = vmatprep.mubr.f32.mxu0 0.0
    %2060 = vmatmul.mubr.f32.gmra.mrb[0].mxu0 %v1993
    %v2061 = vpop.f32.mrb[0].mxu0
    %v2062 = vadd.f32 %v1917, %v2061
    %v2063 = vpop.f32.mrb[0].mxu0
    %2064 = vdwg.mxu0
    %v2067 = vsel %vm745, %v1849, %v1842
    %v2068 = vsel %vm120, %v2067, 0
    %2070 = vmatprep.subr.mxu0 0.0
    %2071 = vmatpush1.msra.mxu0 %v105
    %2072 = vmatprep.subr.mxu0 0.0
    %2073 = vmatpush1.msra.mxu0 %v106
    %2074 = vmatprep.subr.mxu0 0.0
    %2075 = vmatpush1.msra.mxu0 %v107
    %2076 = vmatprep.subr.mxu0 0.0
    %2077 = vmatpush1.msra.mxu0 %v108
    %2078 = vmatprep.subr.mxu0 0.0
    %2079 = vmatpush1.msra.mxu0 0.0
    %2080 = vmatprep.subr.mxu0 0.0
    %2081 = vmatpush1.msra.mxu0 0.0
    %2082 = vmatprep.subr.mxu0 0.0
    %2083 = vmatpush1.msra.mxu0 0.0
    %2084 = vmatprep.subr.mxu0 0.0
    %2085 = vmatpush1.msra.mxu0 0.0
    %2086 = vmatprep.subr.mxu0 0.0
    %2087 = vmatpush1.msra.mxu0 0.0
    %2088 = vmatprep.subr.mxu0 0.0
    %2089 = vmatpush1.msra.mxu0 0.0
    %2090 = vmatprep.subr.mxu0 0.0
    %2091 = vmatpush1.msra.mxu0 0.0
    %2092 = vmatprep.subr.mxu0 0.0
    %2093 = vmatpush1.msra.mxu0 0.0
    %2094 = vmatprep.subr.mxu0 0.0
    %2095 = vmatpush1.msra.mxu0 0.0
    %2096 = vmatprep.subr.mxu0 0.0
    %2097 = vmatpush1.msra.mxu0 0.0
    %2098 = vmatprep.subr.mxu0 0.0
    %2099 = vmatpush1.msra.mxu0 0.0
    %2100 = vmatprep.subr.mxu0 0.0
    %2101 = vmatpush1.msra.mxu0 0.0
    %2102 = vmatprep.subr.mxu0 0.0
    %2103 = vmatpush1.msra.mxu0 0.0
    %2104 = vmatprep.subr.mxu0 0.0
    %2105 = vmatpush1.msra.mxu0 0.0
    %2106 = vmatprep.subr.mxu0 0.0
    %2107 = vmatpush1.msra.mxu0 0.0
    %2108 = vmatprep.subr.mxu0 0.0
    %2109 = vmatpush1.msra.mxu0 0.0
    %2110 = vmatprep.subr.mxu0 0.0
    %2111 = vmatpush1.msra.mxu0 0.0
    %2112 = vmatprep.subr.mxu0 0.0
    %2113 = vmatpush1.msra.mxu0 0.0
    %2114 = vmatprep.subr.mxu0 0.0
    %2115 = vmatpush1.msra.mxu0 0.0
    %2116 = vmatprep.subr.mxu0 0.0
    %2117 = vmatpush1.msra.mxu0 0.0
    %2118 = vmatprep.subr.mxu0 0.0
    %2119 = vmatpush1.msra.mxu0 0.0
    %2120 = vmatprep.subr.mxu0 0.0
    %2121 = vmatpush1.msra.mxu0 0.0
    %2122 = vmatprep.subr.mxu0 0.0
    %2123 = vmatpush1.msra.mxu0 0.0
    %2124 = vmatprep.subr.mxu0 0.0
    %2125 = vmatpush1.msra.mxu0 0.0
    %2126 = vmatprep.subr.mxu0 0.0
    %2127 = vmatpush1.msra.mxu0 0.0
    %2128 = vmatprep.subr.mxu0 0.0
    %2129 = vmatpush1.msra.mxu0 0.0
    %2130 = vmatprep.subr.mxu0 0.0
    %2131 = vmatpush1.msra.mxu0 0.0
    %2132 = vmatprep.subr.mxu0 0.0
    %2133 = vmatpush1.msra.mxu0 0.0
    %2134 = vmatprep.mubr.f32.mxu0 0.0
    %2135 = vmatmul.mubr.f32.gmra.mrb[0].mxu0 %v2068
    %v2136 = vpop.f32.mrb[0].mxu0
    %v2137 = vadd.f32 %v1987, %v2136
    %v2138 = vpop.f32.mrb[0].mxu0
    %2139 = vdwg.mxu0
    %v2140 = vtanh.pop %v2062
    %v2141 = vtanh.pop %v2137
    %s2142 = scalar_lea.vmem %s4, 4
    %v2143 = vld [vmem:[%s2142] sm:$0x3]
    %2144 = vmatprep.subr.mxu0 0.0
    %2145 = vmatpush1.msra.mxu0 %v85
    %2146 = vmatprep.subr.mxu0 0.0
    %2147 = vmatpush1.msra.mxu0 %v86
    %2148 = vmatprep.subr.mxu0 0.0
    %2149 = vmatpush1.msra.mxu0 %v87
    %2150 = vmatprep.subr.mxu0 0.0
    %2151 = vmatpush1.msra.mxu0 %v88
    %2152 = vmatprep.subr.mxu0 0.0
    %2153 = vmatpush1.msra.mxu0 0.0
    %2154 = vmatprep.subr.mxu0 0.0
    %2155 = vmatpush1.msra.mxu0 0.0
    %2156 = vmatprep.subr.mxu0 0.0
    %2157 = vmatpush1.msra.mxu0 0.0
    %2158 = vmatprep.subr.mxu0 0.0
    %2159 = vmatpush1.msra.mxu0 0.0
    %2160 = vmatprep.subr.mxu0 0.0
    %2161 = vmatpush1.msra.mxu0 0.0
    %2162 = vmatprep.subr.mxu0 0.0
    %2163 = vmatpush1.msra.mxu0 0.0
    %2164 = vmatprep.subr.mxu0 0.0
    %2165 = vmatpush1.msra.mxu0 0.0
    %2166 = vmatprep.subr.mxu0 0.0
    %2167 = vmatpush1.msra.mxu0 0.0
    %2168 = vmatprep.subr.mxu0 0.0
    %2169 = vmatpush1.msra.mxu0 0.0
    %2170 = vmatprep.subr.mxu0 0.0
    %2171 = vmatpush1.msra.mxu0 0.0
    %2172 = vmatprep.subr.mxu0 0.0
    %2173 = vmatpush1.msra.mxu0 0.0
    %2174 = vmatprep.subr.mxu0 0.0
    %2175 = vmatpush1.msra.mxu0 0.0
    %2176 = vmatprep.subr.mxu0 0.0
    %2177 = vmatpush1.msra.mxu0 0.0
    %2178 = vmatprep.subr.mxu0 0.0
    %2179 = vmatpush1.msra.mxu0 0.0
    %2180 = vmatprep.subr.mxu0 0.0
    %2181 = vmatpush1.msra.mxu0 0.0
    %2182 = vmatprep.subr.mxu0 0.0
    %2183 = vmatpush1.msra.mxu0 0.0
    %2184 = vmatprep.subr.mxu0 0.0
    %2185 = vmatpush1.msra.mxu0 0.0
    %2186 = vmatprep.subr.mxu0 0.0
    %2187 = vmatpush1.msra.mxu0 0.0
    %2188 = vmatprep.subr.mxu0 0.0
    %2189 = vmatpush1.msra.mxu0 0.0
    %2190 = vmatprep.subr.mxu0 0.0
    %2191 = vmatpush1.msra.mxu0 0.0
    %2192 = vmatprep.subr.mxu0 0.0
    %2193 = vmatpush1.msra.mxu0 0.0
    %2194 = vmatprep.subr.mxu0 0.0
    %2195 = vmatpush1.msra.mxu0 0.0
    %2196 = vmatprep.subr.mxu0 0.0
    %2197 = vmatpush1.msra.mxu0 0.0
    %2198 = vmatprep.subr.mxu0 0.0
    %2199 = vmatpush1.msra.mxu0 0.0
    %2200 = vmatprep.subr.mxu0 0.0
    %2201 = vmatpush1.msra.mxu0 0.0
    %2202 = vmatprep.subr.mxu0 0.0
    %2203 = vmatpush1.msra.mxu0 0.0
    %2204 = vmatprep.subr.mxu0 0.0
    %2205 = vmatpush1.msra.mxu0 0.0
    %2206 = vmatprep.subr.mxu0 0.0
    %2207 = vmatpush1.msra.mxu0 0.0
    %2208 = vmatprep.mubr.f32.mxu0 0.0
    %2209 = vmatmul.mubr.f32.gmra.mrb[0].mxu0 %v1507
    %v2210 = vpop.f32.mrb[0].mxu0
    %v2211 = vadd.f32 0.0, %v2210
    %v2212 = vpop.f32.mrb[0].mxu0
    %2213 = vdwg.mxu0
    %2214 = vmatprep.subr.mxu0 0.0
    %2215 = vmatpush1.msra.mxu0 %v89
    %2216 = vmatprep.subr.mxu0 0.0
    %2217 = vmatpush1.msra.mxu0 %v90
    %2218 = vmatprep.subr.mxu0 0.0
    %2219 = vmatpush1.msra.mxu0 %v91
    %2220 = vmatprep.subr.mxu0 0.0
    %2221 = vmatpush1.msra.mxu0 %v92
    %2222 = vmatprep.subr.mxu0 0.0
    %2223 = vmatpush1.msra.mxu0 0.0
    %2224 = vmatprep.subr.mxu0 0.0
    %2225 = vmatpush1.msra.mxu0 0.0
    %2226 = vmatprep.subr.mxu0 0.0
    %2227 = vmatpush1.msra.mxu0 0.0
    %2228 = vmatprep.subr.mxu0 0.0
    %2229 = vmatpush1.msra.mxu0 0.0
    %2230 = vmatprep.subr.mxu0 0.0
    %2231 = vmatpush1.msra.mxu0 0.0
    %2232 = vmatprep.subr.mxu0 0.0
    %2233 = vmatpush1.msra.mxu0 0.0
    %2234 = vmatprep.subr.mxu0 0.0
    %2235 = vmatpush1.msra.mxu0 0.0
    %2236 = vmatprep.subr.mxu0 0.0
    %2237 = vmatpush1.msra.mxu0 0.0
    %2238 = vmatprep.subr.mxu0 0.0
    %2239 = vmatpush1.msra.mxu0 0.0
    %2240 = vmatprep.subr.mxu0 0.0
    %2241 = vmatpush1.msra.mxu0 0.0
    %2242 = vmatprep.subr.mxu0 0.0
    %2243 = vmatpush1.msra.mxu0 0.0
    %2244 = vmatprep.subr.mxu0 0.0
    %2245 = vmatpush1.msra.mxu0 0.0
    %2246 = vmatprep.subr.mxu0 0.0
    %2247 = vmatpush1.msra.mxu0 0.0
    %2248 = vmatprep.subr.mxu0 0.0
    %2249 = vmatpush1.msra.mxu0 0.0
    %2250 = vmatprep.subr.mxu0 0.0
    %2251 = vmatpush1.msra.mxu0 0.0
    %2252 = vmatprep.subr.mxu0 0.0
    %2253 = vmatpush1.msra.mxu0 0.0
    %2254 = vmatprep.subr.mxu0 0.0
    %2255 = vmatpush1.msra.mxu0 0.0
    %2256 = vmatprep.subr.mxu0 0.0
    %2257 = vmatpush1.msra.mxu0 0.0
    %2258 = vmatprep.subr.mxu0 0.0
    %2259 = vmatpush1.msra.mxu0 0.0
    %2260 = vmatprep.subr.mxu0 0.0
    %2261 = vmatpush1.msra.mxu0 0.0
    %2262 = vmatprep.subr.mxu0 0.0
    %2263 = vmatpush1.msra.mxu0 0.0
    %2264 = vmatprep.subr.mxu0 0.0
    %2265 = vmatpush1.msra.mxu0 0.0
    %2266 = vmatprep.subr.mxu0 0.0
    %2267 = vmatpush1.msra.mxu0 0.0
    %2268 = vmatprep.subr.mxu0 0.0
    %2269 = vmatpush1.msra.mxu0 0.0
    %2270 = vmatprep.subr.mxu0 0.0
    %2271 = vmatpush1.msra.mxu0 0.0
    %2272 = vmatprep.subr.mxu0 0.0
    %2273 = vmatpush1.msra.mxu0 0.0
    %2274 = vmatprep.subr.mxu0 0.0
    %2275 = vmatpush1.msra.mxu0 0.0
    %2276 = vmatprep.subr.mxu0 0.0
    %2277 = vmatpush1.msra.mxu0 0.0
    %2278 = vmatprep.mubr.f32.mxu0 0.0
    %2279 = vmatmul.mubr.f32.gmra.mrb[0].mxu0 %v1582
    %v2280 = vpop.f32.mrb[0].mxu0
    %v2281 = vadd.f32 0.0, %v2280
    %v2282 = vpop.f32.mrb[0].mxu0
    %2283 = vdwg.mxu0
    %v2285 = vsel %vm120, %v2140, 0
    %2287 = vmatprep.subr.mxu0 0.0
    %2288 = vmatpush1.msra.mxu0 %v77
    %2289 = vmatprep.subr.mxu0 0.0
    %2290 = vmatpush1.msra.mxu0 %v78
    %2291 = vmatprep.subr.mxu0 0.0
    %2292 = vmatpush1.msra.mxu0 %v79
    %2293 = vmatprep.subr.mxu0 0.0
    %2294 = vmatpush1.msra.mxu0 %v80
    %2295 = vmatprep.subr.mxu0 0.0
    %2296 = vmatpush1.msra.mxu0 0.0
    %2297 = vmatprep.subr.mxu0 0.0
    %2298 = vmatpush1.msra.mxu0 0.0
    %2299 = vmatprep.subr.mxu0 0.0
    %2300 = vmatpush1.msra.mxu0 0.0
    %2301 = vmatprep.subr.mxu0 0.0
    %2302 = vmatpush1.msra.mxu0 0.0
    %2303 = vmatprep.subr.mxu0 0.0
    %2304 = vmatpush1.msra.mxu0 0.0
    %2305 = vmatprep.subr.mxu0 0.0
    %2306 = vmatpush1.msra.mxu0 0.0
    %2307 = vmatprep.subr.mxu0 0.0
    %2308 = vmatpush1.msra.mxu0 0.0
    %2309 = vmatprep.subr.mxu0 0.0
    %2310 = vmatpush1.msra.mxu0 0.0
    %2311 = vmatprep.subr.mxu0 0.0
    %2312 = vmatpush1.msra.mxu0 0.0
    %2313 = vmatprep.subr.mxu0 0.0
    %2314 = vmatpush1.msra.mxu0 0.0
    %2315 = vmatprep.subr.mxu0 0.0
    %2316 = vmatpush1.msra.mxu0 0.0
    %2317 = vmatprep.subr.mxu0 0.0
    %2318 = vmatpush1.msra.mxu0 0.0
    %2319 = vmatprep.subr.mxu0 0.0
    %2320 = vmatpush1.msra.mxu0 0.0
    %2321 = vmatprep.subr.mxu0 0.0
    %2322 = vmatpush1.msra.mxu0 0.0
    %2323 = vmatprep.subr.mxu0 0.0
    %2324 = vmatpush1.msra.mxu0 0.0
    %2325 = vmatprep.subr.mxu0 0.0
    %2326 = vmatpush1.msra.mxu0 0.0
    %2327 = vmatprep.subr.mxu0 0.0
    %2328 = vmatpush1.msra.mxu0 0.0
    %2329 = vmatprep.subr.mxu0 0.0
    %2330 = vmatpush1.msra.mxu0 0.0
    %2331 = vmatprep.subr.mxu0 0.0
    %2332 = vmatpush1.msra.mxu0 0.0
    %2333 = vmatprep.subr.mxu0 0.0
    %2334 = vmatpush1.msra.mxu0 0.0
    %2335 = vmatprep.subr.mxu0 0.0
    %2336 = vmatpush1.msra.mxu0 0.0
    %2337 = vmatprep.subr.mxu0 0.0
    %2338 = vmatpush1.msra.mxu0 0.0
    %2339 = vmatprep.subr.mxu0 0.0
    %2340 = vmatpush1.msra.mxu0 0.0
    %2341 = vmatprep.subr.mxu0 0.0
    %2342 = vmatpush1.msra.mxu0 0.0
    %2343 = vmatprep.subr.mxu0 0.0
    %2344 = vmatpush1.msra.mxu0 0.0
    %2345 = vmatprep.subr.mxu0 0.0
    %2346 = vmatpush1.msra.mxu0 0.0
    %2347 = vmatprep.subr.mxu0 0.0
    %2348 = vmatpush1.msra.mxu0 0.0
    %2349 = vmatprep.subr.mxu0 0.0
    %2350 = vmatpush1.msra.mxu0 0.0
    %2351 = vmatprep.mubr.f32.mxu0 0.0
    %2352 = vmatmul.mubr.f32.gmra.mrb[0].mxu0 %v2285
    %v2353 = vpop.f32.mrb[0].mxu0
    %v2354 = vadd.f32 %v2211, %v2353
    %v2355 = vpop.f32.mrb[0].mxu0
    %2356 = vdwg.mxu0
    %v2358 = vsel %vm120, %v2141, 0
    %2360 = vmatprep.subr.mxu0 0.0
    %2361 = vmatpush1.msra.mxu0 %v81
    %2362 = vmatprep.subr.mxu0 0.0
    %2363 = vmatpush1.msra.mxu0 %v82
    %2364 = vmatprep.subr.mxu0 0.0
    %2365 = vmatpush1.msra.mxu0 %v83
    %2366 = vmatprep.subr.mxu0 0.0
    %2367 = vmatpush1.msra.mxu0 %v84
    %2368 = vmatprep.subr.mxu0 0.0
    %2369 = vmatpush1.msra.mxu0 0.0
    %2370 = vmatprep.subr.mxu0 0.0
    %2371 = vmatpush1.msra.mxu0 0.0
    %2372 = vmatprep.subr.mxu0 0.0
    %2373 = vmatpush1.msra.mxu0 0.0
    %2374 = vmatprep.subr.mxu0 0.0
    %2375 = vmatpush1.msra.mxu0 0.0
    %2376 = vmatprep.subr.mxu0 0.0
    %2377 = vmatpush1.msra.mxu0 0.0
    %2378 = vmatprep.subr.mxu0 0.0
    %2379 = vmatpush1.msra.mxu0 0.0
    %2380 = vmatprep.subr.mxu0 0.0
    %2381 = vmatpush1.msra.mxu0 0.0
    %2382 = vmatprep.subr.mxu0 0.0
    %2383 = vmatpush1.msra.mxu0 0.0
    %2384 = vmatprep.subr.mxu0 0.0
    %2385 = vmatpush1.msra.mxu0 0.0
    %2386 = vmatprep.subr.mxu0 0.0
    %2387 = vmatpush1.msra.mxu0 0.0
    %2388 = vmatprep.subr.mxu0 0.0
    %2389 = vmatpush1.msra.mxu0 0.0
    %2390 = vmatprep.subr.mxu0 0.0
    %2391 = vmatpush1.msra.mxu0 0.0
    %2392 = vmatprep.subr.mxu0 0.0
    %2393 = vmatpush1.msra.mxu0 0.0
    %2394 = vmatprep.subr.mxu0 0.0
    %2395 = vmatpush1.msra.mxu0 0.0
    %2396 = vmatprep.subr.mxu0 0.0
    %2397 = vmatpush1.msra.mxu0 0.0
    %2398 = vmatprep.subr.mxu0 0.0
    %2399 = vmatpush1.msra.mxu0 0.0
    %2400 = vmatprep.subr.mxu0 0.0
    %2401 = vmatpush1.msra.mxu0 0.0
    %2402 = vmatprep.subr.mxu0 0.0
    %2403 = vmatpush1.msra.mxu0 0.0
    %2404 = vmatprep.subr.mxu0 0.0
    %2405 = vmatpush1.msra.mxu0 0.0
    %2406 = vmatprep.subr.mxu0 0.0
    %2407 = vmatpush1.msra.mxu0 0.0
    %2408 = vmatprep.subr.mxu0 0.0
    %2409 = vmatpush1.msra.mxu0 0.0
    %2410 = vmatprep.subr.mxu0 0.0
    %2411 = vmatpush1.msra.mxu0 0.0
    %2412 = vmatprep.subr.mxu0 0.0
    %2413 = vmatpush1.msra.mxu0 0.0
    %2414 = vmatprep.subr.mxu0 0.0
    %2415 = vmatpush1.msra.mxu0 0.0
    %2416 = vmatprep.subr.mxu0 0.0
    %2417 = vmatpush1.msra.mxu0 0.0
    %2418 = vmatprep.subr.mxu0 0.0
    %2419 = vmatpush1.msra.mxu0 0.0
    %2420 = vmatprep.subr.mxu0 0.0
    %2421 = vmatpush1.msra.mxu0 0.0
    %2422 = vmatprep.subr.mxu0 0.0
    %2423 = vmatpush1.msra.mxu0 0.0
    %2424 = vmatprep.mubr.f32.mxu0 0.0
    %2425 = vmatmul.mubr.f32.gmra.mrb[0].mxu0 %v2358
    %v2426 = vpop.f32.mrb[0].mxu0
    %v2427 = vadd.f32 %v2281, %v2426
    %v2428 = vpop.f32.mrb[0].mxu0
    %2429 = vdwg.mxu0
    %v2432 = vunpack.c.l.s4 1966171168
    %v2433 = vunpack.c.0.s8 %v2432
    %v2434 = vlaneseq
    %v2435 = vshrl.u32 %v2434, 7
    %v2436 = vsub.s32 %v2433, %v2435
    %v2437 = vrot.slane %v2143, %v2436
    %v2438 = vcombine.high %v2437, %v2437
    %v2440 = vunpack.c.l.s4 1966171168
    %v2441 = vunpack.c.0.s8 %v2440
    %v2442 = vlaneseq
    %v2443 = vshrl.u32 %v2442, 7
    %v2444 = vsub.s32 %v2441, %v2443
    %v2445 = vrot.slane %v2437, %v2444
    %v2447 = vunpack.c.l.s4 1966171168
    %v2448 = vunpack.c.0.s8 %v2447
    %v2449 = vlaneseq
    %v2450 = vshrl.u32 %v2449, 7
    %v2451 = vsub.s32 %v2448, %v2450
    %v2452 = vrot.slane %v2438, %v2451
    %v2453 = vlaneseq
    %v2454 = vshrl.u32 %v2453, 7
    %v2455 = vsub.s32 0, %v2454
    %v2456 = vrot.slane %v2445, %v2455
    %v2457 = vlaneseq
    %v2458 = vshrl.u32 %v2457, 7
    %v2459 = vsub.s32 0, %v2458
    %v2460 = vrot.slane %v2452, %v2459
    %v2463 = vadd.f32 %v2354, %v2456
    %v2464 = vadd.f32 %v2427, %v2460
    %v2465 = vxor.u32 %v2463, 2147483648
    %v2466 = vxor.u32 %v2464, 2147483648
    %v2467 = vmul.f32 %v2465, 1.442695
    %v2468 = vpow.pop %v2467
    %v2469 = vmul.f32 %v2466, 1.442695
    %v2470 = vpow.pop %v2469
    %v2471 = vadd.f32 %v2468, 1.0
    %v2472 = vadd.f32 %v2470, 1.0
    %v2473 = vrcp.pop %v2471
    %v2474 = vmul.f32 1.0, %v2473
    %v2475 = vrcp.pop %v2472
    %v2476 = vmul.f32 1.0, %v2475
    %v2477 = vtanh.pop %v2463
    %v2478 = vtanh.pop %v2464
    %v2479 = vmul.f32 %v2474, %v1490
    %v2480 = vmul.f32 %v2476, %v1491
    %2483 = vrot.lane.b32.xlu0 %v2477, 64
    %v2484 = vpop.permute.xlu0 %2483
    %2485 = vrot.lane.b32.xlu0 %v2478, 64
    %v2486 = vpop.permute.xlu0 %2485
    %v2489 = vmul.f32 %v2474, %v2484
    %v2490 = vmul.f32 %v2476, %v2486
    %2493 = vrot.lane.b32.xlu0 %v2489, 32
    %v2494 = vpop.permute.xlu0 %2493
    %2495 = vrot.lane.b32.xlu0 %v2490, 32
    %v2496 = vpop.permute.xlu0 %2495
    %v2499 = vadd.f32 %v2479, %v2494
    %v2500 = vadd.f32 %v2480, %v2496
    %v2501 = vtanh.pop %v2499
    %v2502 = vtanh.pop %v2500
    %2505 = vrot.lane.b32.xlu0 %v2501, 64
    %v2506 = vpop.permute.xlu0 %2505
    %2507 = vrot.lane.b32.xlu0 %v2502, 64
    %v2508 = vpop.permute.xlu0 %2507
    %v2511 = vmul.f32 %v2474, %v2506
    %v2512 = vmul.f32 %v2476, %v2508
    %2514 = vrot.lane.b32.xlu0 %v2511, 32
    %v2515 = vpop.permute.xlu0 %2514
    %v2516 = vsel %vm120, %v2515, 0
    %2518 = vmatprep.subr.mxu0 0.0
    %2519 = vmatpush1.msra.mxu0 %v93
    %2520 = vmatprep.subr.mxu0 0.0
    %2521 = vmatpush1.msra.mxu0 %v94
    %2522 = vmatprep.subr.mxu0 0.0
    %2523 = vmatpush1.msra.mxu0 %v95
    %2524 = vmatprep.subr.mxu0 0.0
    %2525 = vmatpush1.msra.mxu0 %v96
    %2526 = vmatprep.subr.mxu0 0.0
    %2527 = vmatpush1.msra.mxu0 0.0
    %2528 = vmatprep.subr.mxu0 0.0
    %2529 = vmatpush1.msra.mxu0 0.0
    %2530 = vmatprep.subr.mxu0 0.0
    %2531 = vmatpush1.msra.mxu0 0.0
    %2532 = vmatprep.subr.mxu0 0.0
    %2533 = vmatpush1.msra.mxu0 0.0
    %2534 = vmatprep.subr.mxu0 0.0
    %2535 = vmatpush1.msra.mxu0 0.0
    %2536 = vmatprep.subr.mxu0 0.0
    %2537 = vmatpush1.msra.mxu0 0.0
    %2538 = vmatprep.subr.mxu0 0.0
    %2539 = vmatpush1.msra.mxu0 0.0
    %2540 = vmatprep.subr.mxu0 0.0
    %2541 = vmatpush1.msra.mxu0 0.0
    %2542 = vmatprep.subr.mxu0 0.0
    %2543 = vmatpush1.msra.mxu0 0.0
    %2544 = vmatprep.subr.mxu0 0.0
    %2545 = vmatpush1.msra.mxu0 0.0
    %2546 = vmatprep.subr.mxu0 0.0
    %2547 = vmatpush1.msra.mxu0 0.0
    %2548 = vmatprep.subr.mxu0 0.0
    %2549 = vmatpush1.msra.mxu0 0.0
    %2550 = vmatprep.subr.mxu0 0.0
    %2551 = vmatpush1.msra.mxu0 0.0
    %2552 = vmatprep.subr.mxu0 0.0
    %2553 = vmatpush1.msra.mxu0 0.0
    %2554 = vmatprep.subr.mxu0 0.0
    %2555 = vmatpush1.msra.mxu0 0.0
    %2556 = vmatprep.subr.mxu0 0.0
    %2557 = vmatpush1.msra.mxu0 0.0
    %2558 = vmatprep.subr.mxu0 0.0
    %2559 = vmatpush1.msra.mxu0 0.0
    %2560 = vmatprep.subr.mxu0 0.0
    %2561 = vmatpush1.msra.mxu0 0.0
    %2562 = vmatprep.subr.mxu0 0.0
    %2563 = vmatpush1.msra.mxu0 0.0
    %2564 = vmatprep.subr.mxu0 0.0
    %2565 = vmatpush1.msra.mxu0 0.0
    %2566 = vmatprep.subr.mxu0 0.0
    %2567 = vmatpush1.msra.mxu0 0.0
    %2568 = vmatprep.subr.mxu0 0.0
    %2569 = vmatpush1.msra.mxu0 0.0
    %2570 = vmatprep.subr.mxu0 0.0
    %2571 = vmatpush1.msra.mxu0 0.0
    %2572 = vmatprep.subr.mxu0 0.0
    %2573 = vmatpush1.msra.mxu0 0.0
    %2574 = vmatprep.subr.mxu0 0.0
    %2575 = vmatpush1.msra.mxu0 0.0
    %2576 = vmatprep.subr.mxu0 0.0
    %2577 = vmatpush1.msra.mxu0 0.0
    %2578 = vmatprep.subr.mxu0 0.0
    %2579 = vmatpush1.msra.mxu0 0.0
    %2580 = vmatprep.subr.mxu0 0.0
    %2581 = vmatpush1.msra.mxu0 0.0
    %2582 = vmatprep.mubr.f32.mxu0 0.0
    %2583 = vmatmul.mubr.f32.gmra.mrb[0].mxu0 %v2516
    %v2584 = vpop.f32.mrb[0].mxu0
    %v2585 = vadd.f32 0.0, %v2584
    %v2586 = vpop.f32.mrb[0].mxu0
    %2587 = vdwg.mxu0
    %2589 = vrot.lane.b32.xlu0 %v2512, 32
    %v2590 = vpop.permute.xlu0 %2589
    %v2591 = vsel %vm120, %v2590, 0
    %2593 = vmatprep.subr.mxu0 0.0
    %2594 = vmatpush1.msra.mxu0 %v97
    %2595 = vmatprep.subr.mxu0 0.0
    %2596 = vmatpush1.msra.mxu0 %v98
    %2597 = vmatprep.subr.mxu0 0.0
    %2598 = vmatpush1.msra.mxu0 %v99
    %2599 = vmatprep.subr.mxu0 0.0
    %2600 = vmatpush1.msra.mxu0 %v100
    %2601 = vmatprep.subr.mxu0 0.0
    %2602 = vmatpush1.msra.mxu0 0.0
    %2603 = vmatprep.subr.mxu0 0.0
    %2604 = vmatpush1.msra.mxu0 0.0
    %2605 = vmatprep.subr.mxu0 0.0
    %2606 = vmatpush1.msra.mxu0 0.0
    %2607 = vmatprep.subr.mxu0 0.0
    %2608 = vmatpush1.msra.mxu0 0.0
    %2609 = vmatprep.subr.mxu0 0.0
    %2610 = vmatpush1.msra.mxu0 0.0
    %2611 = vmatprep.subr.mxu0 0.0
    %2612 = vmatpush1.msra.mxu0 0.0
    %2613 = vmatprep.subr.mxu0 0.0
    %2614 = vmatpush1.msra.mxu0 0.0
    %2615 = vmatprep.subr.mxu0 0.0
    %2616 = vmatpush1.msra.mxu0 0.0
    %2617 = vmatprep.subr.mxu0 0.0
    %2618 = vmatpush1.msra.mxu0 0.0
    %2619 = vmatprep.subr.mxu0 0.0
    %2620 = vmatpush1.msra.mxu0 0.0
    %2621 = vmatprep.subr.mxu0 0.0
    %2622 = vmatpush1.msra.mxu0 0.0
    %2623 = vmatprep.subr.mxu0 0.0
    %2624 = vmatpush1.msra.mxu0 0.0
    %2625 = vmatprep.subr.mxu0 0.0
    %2626 = vmatpush1.msra.mxu0 0.0
    %2627 = vmatprep.subr.mxu0 0.0
    %2628 = vmatpush1.msra.mxu0 0.0
    %2629 = vmatprep.subr.mxu0 0.0
    %2630 = vmatpush1.msra.mxu0 0.0
    %2631 = vmatprep.subr.mxu0 0.0
    %2632 = vmatpush1.msra.mxu0 0.0
    %2633 = vmatprep.subr.mxu0 0.0
    %2634 = vmatpush1.msra.mxu0 0.0
    %2635 = vmatprep.subr.mxu0 0.0
    %2636 = vmatpush1.msra.mxu0 0.0
    %2637 = vmatprep.subr.mxu0 0.0
    %2638 = vmatpush1.msra.mxu0 0.0
    %2639 = vmatprep.subr.mxu0 0.0
    %2640 = vmatpush1.msra.mxu0 0.0
    %2641 = vmatprep.subr.mxu0 0.0
    %2642 = vmatpush1.msra.mxu0 0.0
    %2643 = vmatprep.subr.mxu0 0.0
    %2644 = vmatpush1.msra.mxu0 0.0
    %2645 = vmatprep.subr.mxu0 0.0
    %2646 = vmatpush1.msra.mxu0 0.0
    %2647 = vmatprep.subr.mxu0 0.0
    %2648 = vmatpush1.msra.mxu0 0.0
    %2649 = vmatprep.subr.mxu0 0.0
    %2650 = vmatpush1.msra.mxu0 0.0
    %2651 = vmatprep.subr.mxu0 0.0
    %2652 = vmatpush1.msra.mxu0 0.0
    %2653 = vmatprep.subr.mxu0 0.0
    %2654 = vmatpush1.msra.mxu0 0.0
    %2655 = vmatprep.subr.mxu0 0.0
    %2656 = vmatpush1.msra.mxu0 0.0
    %2657 = vmatprep.mubr.f32.mxu0 0.0
    %2658 = vmatmul.mubr.f32.gmra.mrb[0].mxu0 %v2591
    %v2659 = vpop.f32.mrb[0].mxu0
    %v2660 = vadd.f32 0.0, %v2659
    %v2661 = vpop.f32.mrb[0].mxu0
    %2662 = vdwg.mxu0
    %v2666 = vunpack.c.l.s4 1966171168
    %v2667 = vunpack.c.0.s8 %v2666
    %v2668 = vlaneseq
    %v2669 = vshrl.u32 %v2668, 7
    %v2670 = vsub.s32 %v2667, %v2669
    %v2671 = vrot.slane %v2585, %v2670
    %v2672 = vcombine.high %v2671, %v2671
    %v2674 = vunpack.c.l.s4 1966171168
    %v2675 = vunpack.c.0.s8 %v2674
    %v2676 = vlaneseq
    %v2677 = vshrl.u32 %v2676, 7
    %v2678 = vsub.s32 %v2675, %v2677
    %v2679 = vrot.slane %v2671, %v2678
    %v2681 = vunpack.c.l.s4 1966171168
    %v2682 = vunpack.c.0.s8 %v2681
    %v2683 = vlaneseq
    %v2684 = vshrl.u32 %v2683, 7
    %v2685 = vsub.s32 %v2682, %v2684
    %v2686 = vrot.slane %v2672, %v2685
    %v2688 = vunpack.c.l.s4 1966171168
    %v2689 = vunpack.c.0.s8 %v2688
    %v2690 = vlaneseq
    %v2691 = vshrl.u32 %v2690, 7
    %v2692 = vsub.s32 %v2689, %v2691
    %v2693 = vrot.slane %v2660, %v2692
    %v2694 = vcombine.high %v2693, %v2693
    %v2696 = vunpack.c.l.s4 1966171168
    %v2697 = vunpack.c.0.s8 %v2696
    %v2698 = vlaneseq
    %v2699 = vshrl.u32 %v2698, 7
    %v2700 = vsub.s32 %v2697, %v2699
    %v2701 = vrot.slane %v2693, %v2700
    %v2703 = vunpack.c.l.s4 1966171168
    %v2704 = vunpack.c.0.s8 %v2703
    %v2705 = vlaneseq
    %v2706 = vshrl.u32 %v2705, 7
    %v2707 = vsub.s32 %v2704, %v2706
    %v2708 = vrot.slane %v2694, %v2707
    %v2709 = vlaneseq
    %v2710 = vshrl.u32 %v2709, 7
    %v2711 = vsub.s32 0, %v2710
    %v2712 = vrot.slane %v2679, %v2711
    %v2713 = vlaneseq
    %v2714 = vshrl.u32 %v2713, 7
    %v2715 = vsub.s32 0, %v2714
    %v2716 = vrot.slane %v2686, %v2715
    %v2717 = vlaneseq
    %v2718 = vshrl.u32 %v2717, 7
    %v2719 = vsub.s32 0, %v2718
    %v2720 = vrot.slane %v2701, %v2719
    %v2721 = vlaneseq
    %v2722 = vshrl.u32 %v2721, 7
    %v2723 = vsub.s32 0, %v2722
    %v2724 = vrot.slane %v2708, %v2723
    %v2729 = vmul.f32 %v68, %v2712
    %v2730 = vmul.f32 %v69, %v2716
    %v2731 = vmul.f32 %v68, %v2720
    %v2732 = vmul.f32 %v69, %v2724
    %v2733 = vsel %vm120, %v2729, 0.0
    %2734 = vadd.xlane.f32.xlu0 %v2733
    %v2735 = vpop.xlane.xlu0 %2734
    %v2736 = vsel %vm120, %v2730, 0.0
    %2737 = vadd.xlane.f32.xlu0 %v2736
    %v2738 = vpop.xlane.xlu0 %2737
    %v2739 = vsel %vm120, %v2731, 0.0
    %2740 = vadd.xlane.f32.xlu0 %v2739
    %v2741 = vpop.xlane.xlu0 %2740
    %v2742 = vsel %vm120, %v2732, 0.0
    %2743 = vadd.xlane.f32.xlu0 %v2742
    %v2744 = vpop.xlane.xlu0 %2743
    %v2749 = vlaneseq
    %v2750 = vshrl.u32 %v2749, 7
    %v2751 = vsub.s32 %v72, %v2750
    %v2752 = vrot.slane %v2735, %v2751
    %v2753 = vlaneseq
    %v2754 = vshrl.u32 %v2753, 7
    %v2755 = vsub.s32 %v72, %v2754
    %v2756 = vrot.slane %v2738, %v2755
    %v2757 = vlaneseq
    %v2758 = vshrl.u32 %v2757, 7
    %v2759 = vsub.s32 %v72, %v2758
    %v2760 = vrot.slane %v2741, %v2759
    %v2761 = vlaneseq
    %v2762 = vshrl.u32 %v2761, 7
    %v2763 = vsub.s32 %v72, %v2762
    %v2764 = vrot.slane %v2744, %v2763
    %v2765 = vsel %vm745, %v2756, %v2752
    %v2766 = vsel %vm745, %v2764, %v2760
    %v2769 = vsel %vm724, %v2765, -1e+30
    %v2770 = vsel %vm724, %v2766, -1e+30
    %v2771 = vsel %vm752, %v2769, -inf
    %2772 = vmax.xlane.f32.xlu0 %v2771
    %v2773 = vpop.xlane.xlu0 %2772
    %v2774 = vsel %vm752, %v2770, -inf
    %2775 = vmax.xlane.f32.xlu0 %v2774
    %v2776 = vpop.xlane.xlu0 %2775
    %v2777 = vsub.f32 %v2769, %v2773
    %v2778 = vsub.f32 %v2770, %v2776
    %v2779 = vmul.f32 %v2777, 1.442695
    %v2780 = vpow.pop %v2779
    %v2781 = vmul.f32 %v2778, 1.442695
    %v2782 = vpow.pop %v2781
    %v2783 = vsel %vm752, %v2780, 0.0
    %2784 = vadd.xlane.f32.xlu0 %v2783
    %v2785 = vpop.xlane.xlu0 %2784
    %v2786 = vsel %vm752, %v2782, 0.0
    %2787 = vadd.xlane.f32.xlu0 %v2786
    %v2788 = vpop.xlane.xlu0 %2787
    %v2789 = vrcp.pop %v2785
    %v2790 = vrcp.pop %v2788
    %v2791 = vmul.f32 %v2785, %v2789
    %v2792 = vmul.f32 %v2788, %v2790
    %v2793 = vsub.f32 2.0, %v2791
    %v2794 = vsub.f32 2.0, %v2792
    %v2795 = vmul.f32 %v2789, %v2793
    %v2796 = vmul.f32 %v2790, %v2794
    %v2797 = vmul.f32 %v2780, %v2795
    %v2798 = vmul.f32 %v2782, %v2796
    %v2799 = vlaneseq
    %v2800 = vshrl.u32 %v2799, 7
    %v2801 = vsub.s32 0, %v2800
    %v2802 = vrot.slane %v2797, %v2801
    %2804 = vbcast.lane.b32.xlu0 %v2802, 256
    %v2805 = vpop.permute.xlu0 %2804
    %v2806 = vlaneseq
    %v2807 = vshrl.u32 %v2806, 7
    %v2808 = vsub.s32 1, %v2807
    %v2809 = vrot.slane %v2797, %v2808
    %2811 = vbcast.lane.b32.xlu0 %v2809, 256
    %v2812 = vpop.permute.xlu0 %2811
    %v2813 = vlaneseq
    %v2814 = vshrl.u32 %v2813, 7
    %v2815 = vsub.s32 0, %v2814
    %v2816 = vrot.slane %v2798, %v2815
    %2818 = vbcast.lane.b32.xlu0 %v2816, 256
    %v2819 = vpop.permute.xlu0 %2818
    %v2820 = vlaneseq
    %v2821 = vshrl.u32 %v2820, 7
    %v2822 = vsub.s32 1, %v2821
    %v2823 = vrot.slane %v2798, %v2822
    %2825 = vbcast.lane.b32.xlu0 %v2823, 256
    %v2826 = vpop.permute.xlu0 %2825
    %v2827 = vmul.f32 %v68, %v2805
    %v2828 = vmul.f32 %v69, %v2812
    %v2829 = vmul.f32 %v68, %v2819
    %v2830 = vmul.f32 %v69, %v2826
    %v2831 = vsel %vm120, %v2827, 0.0
    %v2832 = vrot.slane %v2831, 4
    %v2833 = vadd.f32 %v2831, %v2832
    %v2834 = vrot.slane %v2833, 2
    %v2835 = vadd.f32 %v2833, %v2834
    %v2836 = vrot.slane %v2835, 1
    %v2837 = vadd.f32 %v2835, %v2836
    %v2838 = vsel %vm120, %v2828, 0.0
    %v2839 = vrot.slane %v2838, 4
    %v2840 = vadd.f32 %v2838, %v2839
    %v2841 = vrot.slane %v2840, 2
    %v2842 = vadd.f32 %v2840, %v2841
    %v2843 = vrot.slane %v2842, 1
    %v2844 = vadd.f32 %v2842, %v2843
    %v2845 = vsel %vm120, %v2829, 0.0
    %v2846 = vrot.slane %v2845, 4
    %v2847 = vadd.f32 %v2845, %v2846
    %v2848 = vrot.slane %v2847, 2
    %v2849 = vadd.f32 %v2847, %v2848
    %v2850 = vrot.slane %v2849, 1
    %v2851 = vadd.f32 %v2849, %v2850
    %v2852 = vsel %vm120, %v2830, 0.0
    %v2853 = vrot.slane %v2852, 4
    %v2854 = vadd.f32 %v2852, %v2853
    %v2855 = vrot.slane %v2854, 2
    %v2856 = vadd.f32 %v2854, %v2855
    %v2857 = vrot.slane %v2856, 1
    %v2858 = vadd.f32 %v2856, %v2857
    %2859 = vmatprep.subr.mxu0 0.0
    %2860 = vmatpush1.msra.mxu0 %v109
    %2861 = vmatprep.subr.mxu0 0.0
    %2862 = vmatpush1.msra.mxu0 %v110
    %2863 = vmatprep.subr.mxu0 0.0
    %2864 = vmatpush1.msra.mxu0 %v111
    %2865 = vmatprep.subr.mxu0 0.0
    %2866 = vmatpush1.msra.mxu0 %v112
    %2867 = vmatprep.subr.mxu0 0.0
    %2868 = vmatpush1.msra.mxu0 0.0
    %2869 = vmatprep.subr.mxu0 0.0
    %2870 = vmatpush1.msra.mxu0 0.0
    %2871 = vmatprep.subr.mxu0 0.0
    %2872 = vmatpush1.msra.mxu0 0.0
    %2873 = vmatprep.subr.mxu0 0.0
    %2874 = vmatpush1.msra.mxu0 0.0
    %2875 = vmatprep.subr.mxu0 0.0
    %2876 = vmatpush1.msra.mxu0 0.0
    %2877 = vmatprep.subr.mxu0 0.0
    %2878 = vmatpush1.msra.mxu0 0.0
    %2879 = vmatprep.subr.mxu0 0.0
    %2880 = vmatpush1.msra.mxu0 0.0
    %2881 = vmatprep.subr.mxu0 0.0
    %2882 = vmatpush1.msra.mxu0 0.0
    %2883 = vmatprep.subr.mxu0 0.0
    %2884 = vmatpush1.msra.mxu0 0.0
    %2885 = vmatprep.subr.mxu0 0.0
    %2886 = vmatpush1.msra.mxu0 0.0
    %2887 = vmatprep.subr.mxu0 0.0
    %2888 = vmatpush1.msra.mxu0 0.0
    %2889 = vmatprep.subr.mxu0 0.0
    %2890 = vmatpush1.msra.mxu0 0.0
    %2891 = vmatprep.subr.mxu0 0.0
    %2892 = vmatpush1.msra.mxu0 0.0
    %2893 = vmatprep.subr.mxu0 0.0
    %2894 = vmatpush1.msra.mxu0 0.0
    %2895 = vmatprep.subr.mxu0 0.0
    %2896 = vmatpush1.msra.mxu0 0.0
    %2897 = vmatprep.subr.mxu0 0.0
    %2898 = vmatpush1.msra.mxu0 0.0
    %2899 = vmatprep.subr.mxu0 0.0
    %2900 = vmatpush1.msra.mxu0 0.0
    %2901 = vmatprep.subr.mxu0 0.0
    %2902 = vmatpush1.msra.mxu0 0.0
    %2903 = vmatprep.subr.mxu0 0.0
    %2904 = vmatpush1.msra.mxu0 0.0
    %2905 = vmatprep.subr.mxu0 0.0
    %2906 = vmatpush1.msra.mxu0 0.0
    %2907 = vmatprep.subr.mxu0 0.0
    %2908 = vmatpush1.msra.mxu0 0.0
    %2909 = vmatprep.subr.mxu0 0.0
    %2910 = vmatpush1.msra.mxu0 0.0
    %2911 = vmatprep.subr.mxu0 0.0
    %2912 = vmatpush1.msra.mxu0 0.0
    %2913 = vmatprep.subr.mxu0 0.0
    %2914 = vmatpush1.msra.mxu0 0.0
    %2915 = vmatprep.subr.mxu0 0.0
    %2916 = vmatpush1.msra.mxu0 0.0
    %2917 = vmatprep.subr.mxu0 0.0
    %2918 = vmatpush1.msra.mxu0 0.0
    %2919 = vmatprep.subr.mxu0 0.0
    %2920 = vmatpush1.msra.mxu0 0.0
    %2921 = vmatprep.subr.mxu0 0.0
    %2922 = vmatpush1.msra.mxu0 0.0
    %2923 = vmatprep.mubr.f32.mxu0 0.0
    %2924 = vmatmul.mubr.f32.gmra.mrb[0].mxu0 %v2516
    %v2925 = vpop.f32.mrb[0].mxu0
    %v2926 = vadd.f32 0.0, %v2925
    %v2927 = vpop.f32.mrb[0].mxu0
    %2928 = vdwg.mxu0
    %2929 = vmatprep.subr.mxu0 0.0
    %2930 = vmatpush1.msra.mxu0 %v113
    %2931 = vmatprep.subr.mxu0 0.0
    %2932 = vmatpush1.msra.mxu0 %v114
    %2933 = vmatprep.subr.mxu0 0.0
    %2934 = vmatpush1.msra.mxu0 %v115
    %2935 = vmatprep.subr.mxu0 0.0
    %2936 = vmatpush1.msra.mxu0 %v116
    %2937 = vmatprep.subr.mxu0 0.0
    %2938 = vmatpush1.msra.mxu0 0.0
    %2939 = vmatprep.subr.mxu0 0.0
    %2940 = vmatpush1.msra.mxu0 0.0
    %2941 = vmatprep.subr.mxu0 0.0
    %2942 = vmatpush1.msra.mxu0 0.0
    %2943 = vmatprep.subr.mxu0 0.0
    %2944 = vmatpush1.msra.mxu0 0.0
    %2945 = vmatprep.subr.mxu0 0.0
    %2946 = vmatpush1.msra.mxu0 0.0
    %2947 = vmatprep.subr.mxu0 0.0
    %2948 = vmatpush1.msra.mxu0 0.0
    %2949 = vmatprep.subr.mxu0 0.0
    %2950 = vmatpush1.msra.mxu0 0.0
    %2951 = vmatprep.subr.mxu0 0.0
    %2952 = vmatpush1.msra.mxu0 0.0
    %2953 = vmatprep.subr.mxu0 0.0
    %2954 = vmatpush1.msra.mxu0 0.0
    %2955 = vmatprep.subr.mxu0 0.0
    %2956 = vmatpush1.msra.mxu0 0.0
    %2957 = vmatprep.subr.mxu0 0.0
    %2958 = vmatpush1.msra.mxu0 0.0
    %2959 = vmatprep.subr.mxu0 0.0
    %2960 = vmatpush1.msra.mxu0 0.0
    %2961 = vmatprep.subr.mxu0 0.0
    %2962 = vmatpush1.msra.mxu0 0.0
    %2963 = vmatprep.subr.mxu0 0.0
    %2964 = vmatpush1.msra.mxu0 0.0
    %2965 = vmatprep.subr.mxu0 0.0
    %2966 = vmatpush1.msra.mxu0 0.0
    %2967 = vmatprep.subr.mxu0 0.0
    %2968 = vmatpush1.msra.mxu0 0.0
    %2969 = vmatprep.subr.mxu0 0.0
    %2970 = vmatpush1.msra.mxu0 0.0
    %2971 = vmatprep.subr.mxu0 0.0
    %2972 = vmatpush1.msra.mxu0 0.0
    %2973 = vmatprep.subr.mxu0 0.0
    %2974 = vmatpush1.msra.mxu0 0.0
    %2975 = vmatprep.subr.mxu0 0.0
    %2976 = vmatpush1.msra.mxu0 0.0
    %2977 = vmatprep.subr.mxu0 0.0
    %2978 = vmatpush1.msra.mxu0 0.0
    %2979 = vmatprep.subr.mxu0 0.0
    %2980 = vmatpush1.msra.mxu0 0.0
    %2981 = vmatprep.subr.mxu0 0.0
    %2982 = vmatpush1.msra.mxu0 0.0
    %2983 = vmatprep.subr.mxu0 0.0
    %2984 = vmatpush1.msra.mxu0 0.0
    %2985 = vmatprep.subr.mxu0 0.0
    %2986 = vmatpush1.msra.mxu0 0.0
    %2987 = vmatprep.subr.mxu0 0.0
    %2988 = vmatpush1.msra.mxu0 0.0
    %2989 = vmatprep.subr.mxu0 0.0
    %2990 = vmatpush1.msra.mxu0 0.0
    %2991 = vmatprep.subr.mxu0 0.0
    %2992 = vmatpush1.msra.mxu0 0.0
    %2993 = vmatprep.mubr.f32.mxu0 0.0
    %2994 = vmatmul.mubr.f32.gmra.mrb[0].mxu0 %v2591
    %v2995 = vpop.f32.mrb[0].mxu0
    %v2996 = vadd.f32 0.0, %v2995
    %v2997 = vpop.f32.mrb[0].mxu0
    %2998 = vdwg.mxu0
    %v3001 = vsel %vm745, %v2844, %v2837
    %v3002 = vsel %vm120, %v3001, 0
    %3004 = vmatprep.subr.mxu0 0.0
    %3005 = vmatpush1.msra.mxu0 %v101
    %3006 = vmatprep.subr.mxu0 0.0
    %3007 = vmatpush1.msra.mxu0 %v102
    %3008 = vmatprep.subr.mxu0 0.0
    %3009 = vmatpush1.msra.mxu0 %v103
    %3010 = vmatprep.subr.mxu0 0.0
    %3011 = vmatpush1.msra.mxu0 %v104
    %3012 = vmatprep.subr.mxu0 0.0
    %3013 = vmatpush1.msra.mxu0 0.0
    %3014 = vmatprep.subr.mxu0 0.0
    %3015 = vmatpush1.msra.mxu0 0.0
    %3016 = vmatprep.subr.mxu0 0.0
    %3017 = vmatpush1.msra.mxu0 0.0
    %3018 = vmatprep.subr.mxu0 0.0
    %3019 = vmatpush1.msra.mxu0 0.0
    %3020 = vmatprep.subr.mxu0 0.0
    %3021 = vmatpush1.msra.mxu0 0.0
    %3022 = vmatprep.subr.mxu0 0.0
    %3023 = vmatpush1.msra.mxu0 0.0
    %3024 = vmatprep.subr.mxu0 0.0
    %3025 = vmatpush1.msra.mxu0 0.0
    %3026 = vmatprep.subr.mxu0 0.0
    %3027 = vmatpush1.msra.mxu0 0.0
    %3028 = vmatprep.subr.mxu0 0.0
    %3029 = vmatpush1.msra.mxu0 0.0
    %3030 = vmatprep.subr.mxu0 0.0
    %3031 = vmatpush1.msra.mxu0 0.0
    %3032 = vmatprep.subr.mxu0 0.0
    %3033 = vmatpush1.msra.mxu0 0.0
    %3034 = vmatprep.subr.mxu0 0.0
    %3035 = vmatpush1.msra.mxu0 0.0
    %3036 = vmatprep.subr.mxu0 0.0
    %3037 = vmatpush1.msra.mxu0 0.0
    %3038 = vmatprep.subr.mxu0 0.0
    %3039 = vmatpush1.msra.mxu0 0.0
    %3040 = vmatprep.subr.mxu0 0.0
    %3041 = vmatpush1.msra.mxu0 0.0
    %3042 = vmatprep.subr.mxu0 0.0
    %3043 = vmatpush1.msra.mxu0 0.0
    %3044 = vmatprep.subr.mxu0 0.0
    %3045 = vmatpush1.msra.mxu0 0.0
    %3046 = vmatprep.subr.mxu0 0.0
    %3047 = vmatpush1.msra.mxu0 0.0
    %3048 = vmatprep.subr.mxu0 0.0
    %3049 = vmatpush1.msra.mxu0 0.0
    %3050 = vmatprep.subr.mxu0 0.0
    %3051 = vmatpush1.msra.mxu0 0.0
    %3052 = vmatprep.subr.mxu0 0.0
    %3053 = vmatpush1.msra.mxu0 0.0
    %3054 = vmatprep.subr.mxu0 0.0
    %3055 = vmatpush1.msra.mxu0 0.0
    %3056 = vmatprep.subr.mxu0 0.0
    %3057 = vmatpush1.msra.mxu0 0.0
    %3058 = vmatprep.subr.mxu0 0.0
    %3059 = vmatpush1.msra.mxu0 0.0
    %3060 = vmatprep.subr.mxu0 0.0
    %3061 = vmatpush1.msra.mxu0 0.0
    %3062 = vmatprep.subr.mxu0 0.0
    %3063 = vmatpush1.msra.mxu0 0.0
    %3064 = vmatprep.subr.mxu0 0.0
    %3065 = vmatpush1.msra.mxu0 0.0
    %3066 = vmatprep.subr.mxu0 0.0
    %3067 = vmatpush1.msra.mxu0 0.0
    %3068 = vmatprep.mubr.f32.mxu0 0.0
    %3069 = vmatmul.mubr.f32.gmra.mrb[0].mxu0 %v3002
    %v3070 = vpop.f32.mrb[0].mxu0
    %v3071 = vadd.f32 %v2926, %v3070
    %v3072 = vpop.f32.mrb[0].mxu0
    %3073 = vdwg.mxu0
    %v3076 = vsel %vm745, %v2858, %v2851
    %v3077 = vsel %vm120, %v3076, 0
    %3079 = vmatprep.subr.mxu0 0.0
    %3080 = vmatpush1.msra.mxu0 %v105
    %3081 = vmatprep.subr.mxu0 0.0
    %3082 = vmatpush1.msra.mxu0 %v106
    %3083 = vmatprep.subr.mxu0 0.0
    %3084 = vmatpush1.msra.mxu0 %v107
    %3085 = vmatprep.subr.mxu0 0.0
    %3086 = vmatpush1.msra.mxu0 %v108
    %3087 = vmatprep.subr.mxu0 0.0
    %3088 = vmatpush1.msra.mxu0 0.0
    %3089 = vmatprep.subr.mxu0 0.0
    %3090 = vmatpush1.msra.mxu0 0.0
    %3091 = vmatprep.subr.mxu0 0.0
    %3092 = vmatpush1.msra.mxu0 0.0
    %3093 = vmatprep.subr.mxu0 0.0
    %3094 = vmatpush1.msra.mxu0 0.0
    %3095 = vmatprep.subr.mxu0 0.0
    %3096 = vmatpush1.msra.mxu0 0.0
    %3097 = vmatprep.subr.mxu0 0.0
    %3098 = vmatpush1.msra.mxu0 0.0
    %3099 = vmatprep.subr.mxu0 0.0
    %3100 = vmatpush1.msra.mxu0 0.0
    %3101 = vmatprep.subr.mxu0 0.0
    %3102 = vmatpush1.msra.mxu0 0.0
    %3103 = vmatprep.subr.mxu0 0.0
    %3104 = vmatpush1.msra.mxu0 0.0
    %3105 = vmatprep.subr.mxu0 0.0
    %3106 = vmatpush1.msra.mxu0 0.0
    %3107 = vmatprep.subr.mxu0 0.0
    %3108 = vmatpush1.msra.mxu0 0.0
    %3109 = vmatprep.subr.mxu0 0.0
    %3110 = vmatpush1.msra.mxu0 0.0
    %3111 = vmatprep.subr.mxu0 0.0
    %3112 = vmatpush1.msra.mxu0 0.0
    %3113 = vmatprep.subr.mxu0 0.0
    %3114 = vmatpush1.msra.mxu0 0.0
    %3115 = vmatprep.subr.mxu0 0.0
    %3116 = vmatpush1.msra.mxu0 0.0
    %3117 = vmatprep.subr.mxu0 0.0
    %3118 = vmatpush1.msra.mxu0 0.0
    %3119 = vmatprep.subr.mxu0 0.0
    %3120 = vmatpush1.msra.mxu0 0.0
    %3121 = vmatprep.subr.mxu0 0.0
    %3122 = vmatpush1.msra.mxu0 0.0
    %3123 = vmatprep.subr.mxu0 0.0
    %3124 = vmatpush1.msra.mxu0 0.0
    %3125 = vmatprep.subr.mxu0 0.0
    %3126 = vmatpush1.msra.mxu0 0.0
    %3127 = vmatprep.subr.mxu0 0.0
    %3128 = vmatpush1.msra.mxu0 0.0
    %3129 = vmatprep.subr.mxu0 0.0
    %3130 = vmatpush1.msra.mxu0 0.0
    %3131 = vmatprep.subr.mxu0 0.0
    %3132 = vmatpush1.msra.mxu0 0.0
    %3133 = vmatprep.subr.mxu0 0.0
    %3134 = vmatpush1.msra.mxu0 0.0
    %3135 = vmatprep.subr.mxu0 0.0
    %3136 = vmatpush1.msra.mxu0 0.0
    %3137 = vmatprep.subr.mxu0 0.0
    %3138 = vmatpush1.msra.mxu0 0.0
    %3139 = vmatprep.subr.mxu0 0.0
    %3140 = vmatpush1.msra.mxu0 0.0
    %3141 = vmatprep.subr.mxu0 0.0
    %3142 = vmatpush1.msra.mxu0 0.0
    %3143 = vmatprep.mubr.f32.mxu0 0.0
    %3144 = vmatmul.mubr.f32.gmra.mrb[0].mxu0 %v3077
    %v3145 = vpop.f32.mrb[0].mxu0
    %v3146 = vadd.f32 %v2996, %v3145
    %v3147 = vpop.f32.mrb[0].mxu0
    %3148 = vdwg.mxu0
    %v3149 = vtanh.pop %v3071
    %v3150 = vtanh.pop %v3146
    %s3151 = scalar_lea.vmem %s4, 6
    %v3152 = vld [vmem:[%s3151] sm:$0x3]
    %3153 = vmatprep.subr.mxu0 0.0
    %3154 = vmatpush1.msra.mxu0 %v85
    %3155 = vmatprep.subr.mxu0 0.0
    %3156 = vmatpush1.msra.mxu0 %v86
    %3157 = vmatprep.subr.mxu0 0.0
    %3158 = vmatpush1.msra.mxu0 %v87
    %3159 = vmatprep.subr.mxu0 0.0
    %3160 = vmatpush1.msra.mxu0 %v88
    %3161 = vmatprep.subr.mxu0 0.0
    %3162 = vmatpush1.msra.mxu0 0.0
    %3163 = vmatprep.subr.mxu0 0.0
    %3164 = vmatpush1.msra.mxu0 0.0
    %3165 = vmatprep.subr.mxu0 0.0
    %3166 = vmatpush1.msra.mxu0 0.0
    %3167 = vmatprep.subr.mxu0 0.0
    %3168 = vmatpush1.msra.mxu0 0.0
    %3169 = vmatprep.subr.mxu0 0.0
    %3170 = vmatpush1.msra.mxu0 0.0
    %3171 = vmatprep.subr.mxu0 0.0
    %3172 = vmatpush1.msra.mxu0 0.0
    %3173 = vmatprep.subr.mxu0 0.0
    %3174 = vmatpush1.msra.mxu0 0.0
    %3175 = vmatprep.subr.mxu0 0.0
    %3176 = vmatpush1.msra.mxu0 0.0
    %3177 = vmatprep.subr.mxu0 0.0
    %3178 = vmatpush1.msra.mxu0 0.0
    %3179 = vmatprep.subr.mxu0 0.0
    %3180 = vmatpush1.msra.mxu0 0.0
    %3181 = vmatprep.subr.mxu0 0.0
    %3182 = vmatpush1.msra.mxu0 0.0
    %3183 = vmatprep.subr.mxu0 0.0
    %3184 = vmatpush1.msra.mxu0 0.0
    %3185 = vmatprep.subr.mxu0 0.0
    %3186 = vmatpush1.msra.mxu0 0.0
    %3187 = vmatprep.subr.mxu0 0.0
    %3188 = vmatpush1.msra.mxu0 0.0
    %3189 = vmatprep.subr.mxu0 0.0
    %3190 = vmatpush1.msra.mxu0 0.0
    %3191 = vmatprep.subr.mxu0 0.0
    %3192 = vmatpush1.msra.mxu0 0.0
    %3193 = vmatprep.subr.mxu0 0.0
    %3194 = vmatpush1.msra.mxu0 0.0
    %3195 = vmatprep.subr.mxu0 0.0
    %3196 = vmatpush1.msra.mxu0 0.0
    %3197 = vmatprep.subr.mxu0 0.0
    %3198 = vmatpush1.msra.mxu0 0.0
    %3199 = vmatprep.subr.mxu0 0.0
    %3200 = vmatpush1.msra.mxu0 0.0
    %3201 = vmatprep.subr.mxu0 0.0
    %3202 = vmatpush1.msra.mxu0 0.0
    %3203 = vmatprep.subr.mxu0 0.0
    %3204 = vmatpush1.msra.mxu0 0.0
    %3205 = vmatprep.subr.mxu0 0.0
    %3206 = vmatpush1.msra.mxu0 0.0
    %3207 = vmatprep.subr.mxu0 0.0
    %3208 = vmatpush1.msra.mxu0 0.0
    %3209 = vmatprep.subr.mxu0 0.0
    %3210 = vmatpush1.msra.mxu0 0.0
    %3211 = vmatprep.subr.mxu0 0.0
    %3212 = vmatpush1.msra.mxu0 0.0
    %3213 = vmatprep.subr.mxu0 0.0
    %3214 = vmatpush1.msra.mxu0 0.0
    %3215 = vmatprep.subr.mxu0 0.0
    %3216 = vmatpush1.msra.mxu0 0.0
    %3217 = vmatprep.mubr.f32.mxu0 0.0
    %3218 = vmatmul.mubr.f32.gmra.mrb[0].mxu0 %v2516
    %v3219 = vpop.f32.mrb[0].mxu0
    %v3220 = vadd.f32 0.0, %v3219
    %v3221 = vpop.f32.mrb[0].mxu0
    %3222 = vdwg.mxu0
    %3223 = vmatprep.subr.mxu0 0.0
    %3224 = vmatpush1.msra.mxu0 %v89
    %3225 = vmatprep.subr.mxu0 0.0
    %3226 = vmatpush1.msra.mxu0 %v90
    %3227 = vmatprep.subr.mxu0 0.0
    %3228 = vmatpush1.msra.mxu0 %v91
    %3229 = vmatprep.subr.mxu0 0.0
    %3230 = vmatpush1.msra.mxu0 %v92
    %3231 = vmatprep.subr.mxu0 0.0
    %3232 = vmatpush1.msra.mxu0 0.0
    %3233 = vmatprep.subr.mxu0 0.0
    %3234 = vmatpush1.msra.mxu0 0.0
    %3235 = vmatprep.subr.mxu0 0.0
    %3236 = vmatpush1.msra.mxu0 0.0
    %3237 = vmatprep.subr.mxu0 0.0
    %3238 = vmatpush1.msra.mxu0 0.0
    %3239 = vmatprep.subr.mxu0 0.0
    %3240 = vmatpush1.msra.mxu0 0.0
    %3241 = vmatprep.subr.mxu0 0.0
    %3242 = vmatpush1.msra.mxu0 0.0
    %3243 = vmatprep.subr.mxu0 0.0
    %3244 = vmatpush1.msra.mxu0 0.0
    %3245 = vmatprep.subr.mxu0 0.0
    %3246 = vmatpush1.msra.mxu0 0.0
    %3247 = vmatprep.subr.mxu0 0.0
    %3248 = vmatpush1.msra.mxu0 0.0
    %3249 = vmatprep.subr.mxu0 0.0
    %3250 = vmatpush1.msra.mxu0 0.0
    %3251 = vmatprep.subr.mxu0 0.0
    %3252 = vmatpush1.msra.mxu0 0.0
    %3253 = vmatprep.subr.mxu0 0.0
    %3254 = vmatpush1.msra.mxu0 0.0
    %3255 = vmatprep.subr.mxu0 0.0
    %3256 = vmatpush1.msra.mxu0 0.0
    %3257 = vmatprep.subr.mxu0 0.0
    %3258 = vmatpush1.msra.mxu0 0.0
    %3259 = vmatprep.subr.mxu0 0.0
    %3260 = vmatpush1.msra.mxu0 0.0
    %3261 = vmatprep.subr.mxu0 0.0
    %3262 = vmatpush1.msra.mxu0 0.0
    %3263 = vmatprep.subr.mxu0 0.0
    %3264 = vmatpush1.msra.mxu0 0.0
    %3265 = vmatprep.subr.mxu0 0.0
    %3266 = vmatpush1.msra.mxu0 0.0
    %3267 = vmatprep.subr.mxu0 0.0
    %3268 = vmatpush1.msra.mxu0 0.0
    %3269 = vmatprep.subr.mxu0 0.0
    %3270 = vmatpush1.msra.mxu0 0.0
    %3271 = vmatprep.subr.mxu0 0.0
    %3272 = vmatpush1.msra.mxu0 0.0
    %3273 = vmatprep.subr.mxu0 0.0
    %3274 = vmatpush1.msra.mxu0 0.0
    %3275 = vmatprep.subr.mxu0 0.0
    %3276 = vmatpush1.msra.mxu0 0.0
    %3277 = vmatprep.subr.mxu0 0.0
    %3278 = vmatpush1.msra.mxu0 0.0
    %3279 = vmatprep.subr.mxu0 0.0
    %3280 = vmatpush1.msra.mxu0 0.0
    %3281 = vmatprep.subr.mxu0 0.0
    %3282 = vmatpush1.msra.mxu0 0.0
    %3283 = vmatprep.subr.mxu0 0.0
    %3284 = vmatpush1.msra.mxu0 0.0
    %3285 = vmatprep.subr.mxu0 0.0
    %3286 = vmatpush1.msra.mxu0 0.0
    %3287 = vmatprep.mubr.f32.mxu0 0.0
    %3288 = vmatmul.mubr.f32.gmra.mrb[0].mxu0 %v2591
    %v3289 = vpop.f32.mrb[0].mxu0
    %v3290 = vadd.f32 0.0, %v3289
    %v3291 = vpop.f32.mrb[0].mxu0
    %3292 = vdwg.mxu0
    %v3294 = vsel %vm120, %v3149, 0
    %3296 = vmatprep.subr.mxu0 0.0
    %3297 = vmatpush1.msra.mxu0 %v77
    %3298 = vmatprep.subr.mxu0 0.0
    %3299 = vmatpush1.msra.mxu0 %v78
    %3300 = vmatprep.subr.mxu0 0.0
    %3301 = vmatpush1.msra.mxu0 %v79
    %3302 = vmatprep.subr.mxu0 0.0
    %3303 = vmatpush1.msra.mxu0 %v80
    %3304 = vmatprep.subr.mxu0 0.0
    %3305 = vmatpush1.msra.mxu0 0.0
    %3306 = vmatprep.subr.mxu0 0.0
    %3307 = vmatpush1.msra.mxu0 0.0
    %3308 = vmatprep.subr.mxu0 0.0
    %3309 = vmatpush1.msra.mxu0 0.0
    %3310 = vmatprep.subr.mxu0 0.0
    %3311 = vmatpush1.msra.mxu0 0.0
    %3312 = vmatprep.subr.mxu0 0.0
    %3313 = vmatpush1.msra.mxu0 0.0
    %3314 = vmatprep.subr.mxu0 0.0
    %3315 = vmatpush1.msra.mxu0 0.0
    %3316 = vmatprep.subr.mxu0 0.0
    %3317 = vmatpush1.msra.mxu0 0.0
    %3318 = vmatprep.subr.mxu0 0.0
    %3319 = vmatpush1.msra.mxu0 0.0
    %3320 = vmatprep.subr.mxu0 0.0
    %3321 = vmatpush1.msra.mxu0 0.0
    %3322 = vmatprep.subr.mxu0 0.0
    %3323 = vmatpush1.msra.mxu0 0.0
    %3324 = vmatprep.subr.mxu0 0.0
    %3325 = vmatpush1.msra.mxu0 0.0
    %3326 = vmatprep.subr.mxu0 0.0
    %3327 = vmatpush1.msra.mxu0 0.0
    %3328 = vmatprep.subr.mxu0 0.0
    %3329 = vmatpush1.msra.mxu0 0.0
    %3330 = vmatprep.subr.mxu0 0.0
    %3331 = vmatpush1.msra.mxu0 0.0
    %3332 = vmatprep.subr.mxu0 0.0
    %3333 = vmatpush1.msra.mxu0 0.0
    %3334 = vmatprep.subr.mxu0 0.0
    %3335 = vmatpush1.msra.mxu0 0.0
    %3336 = vmatprep.subr.mxu0 0.0
    %3337 = vmatpush1.msra.mxu0 0.0
    %3338 = vmatprep.subr.mxu0 0.0
    %3339 = vmatpush1.msra.mxu0 0.0
    %3340 = vmatprep.subr.mxu0 0.0
    %3341 = vmatpush1.msra.mxu0 0.0
    %3342 = vmatprep.subr.mxu0 0.0
    %3343 = vmatpush1.msra.mxu0 0.0
    %3344 = vmatprep.subr.mxu0 0.0
    %3345 = vmatpush1.msra.mxu0 0.0
    %3346 = vmatprep.subr.mxu0 0.0
    %3347 = vmatpush1.msra.mxu0 0.0
    %3348 = vmatprep.subr.mxu0 0.0
    %3349 = vmatpush1.msra.mxu0 0.0
    %3350 = vmatprep.subr.mxu0 0.0
    %3351 = vmatpush1.msra.mxu0 0.0
    %3352 = vmatprep.subr.mxu0 0.0
    %3353 = vmatpush1.msra.mxu0 0.0
    %3354 = vmatprep.subr.mxu0 0.0
    %3355 = vmatpush1.msra.mxu0 0.0
    %3356 = vmatprep.subr.mxu0 0.0
    %3357 = vmatpush1.msra.mxu0 0.0
    %3358 = vmatprep.subr.mxu0 0.0
    %3359 = vmatpush1.msra.mxu0 0.0
    %3360 = vmatprep.mubr.f32.mxu0 0.0
    %3361 = vmatmul.mubr.f32.gmra.mrb[0].mxu0 %v3294
    %v3362 = vpop.f32.mrb[0].mxu0
    %v3363 = vadd.f32 %v3220, %v3362
    %v3364 = vpop.f32.mrb[0].mxu0
    %3365 = vdwg.mxu0
    %v3367 = vsel %vm120, %v3150, 0
    %3369 = vmatprep.subr.mxu0 0.0
    %3370 = vmatpush1.msra.mxu0 %v81
    %3371 = vmatprep.subr.mxu0 0.0
    %3372 = vmatpush1.msra.mxu0 %v82
    %3373 = vmatprep.subr.mxu0 0.0
    %3374 = vmatpush1.msra.mxu0 %v83
    %3375 = vmatprep.subr.mxu0 0.0
    %3376 = vmatpush1.msra.mxu0 %v84
    %3377 = vmatprep.subr.mxu0 0.0
    %3378 = vmatpush1.msra.mxu0 0.0
    %3379 = vmatprep.subr.mxu0 0.0
    %3380 = vmatpush1.msra.mxu0 0.0
    %3381 = vmatprep.subr.mxu0 0.0
    %3382 = vmatpush1.msra.mxu0 0.0
    %3383 = vmatprep.subr.mxu0 0.0
    %3384 = vmatpush1.msra.mxu0 0.0
    %3385 = vmatprep.subr.mxu0 0.0
    %3386 = vmatpush1.msra.mxu0 0.0
    %3387 = vmatprep.subr.mxu0 0.0
    %3388 = vmatpush1.msra.mxu0 0.0
    %3389 = vmatprep.subr.mxu0 0.0
    %3390 = vmatpush1.msra.mxu0 0.0
    %3391 = vmatprep.subr.mxu0 0.0
    %3392 = vmatpush1.msra.mxu0 0.0
    %3393 = vmatprep.subr.mxu0 0.0
    %3394 = vmatpush1.msra.mxu0 0.0
    %3395 = vmatprep.subr.mxu0 0.0
    %3396 = vmatpush1.msra.mxu0 0.0
    %3397 = vmatprep.subr.mxu0 0.0
    %3398 = vmatpush1.msra.mxu0 0.0
    %3399 = vmatprep.subr.mxu0 0.0
    %3400 = vmatpush1.msra.mxu0 0.0
    %3401 = vmatprep.subr.mxu0 0.0
    %3402 = vmatpush1.msra.mxu0 0.0
    %3403 = vmatprep.subr.mxu0 0.0
    %3404 = vmatpush1.msra.mxu0 0.0
    %3405 = vmatprep.subr.mxu0 0.0
    %3406 = vmatpush1.msra.mxu0 0.0
    %3407 = vmatprep.subr.mxu0 0.0
    %3408 = vmatpush1.msra.mxu0 0.0
    %3409 = vmatprep.subr.mxu0 0.0
    %3410 = vmatpush1.msra.mxu0 0.0
    %3411 = vmatprep.subr.mxu0 0.0
    %3412 = vmatpush1.msra.mxu0 0.0
    %3413 = vmatprep.subr.mxu0 0.0
    %3414 = vmatpush1.msra.mxu0 0.0
    %3415 = vmatprep.subr.mxu0 0.0
    %3416 = vmatpush1.msra.mxu0 0.0
    %3417 = vmatprep.subr.mxu0 0.0
    %3418 = vmatpush1.msra.mxu0 0.0
    %3419 = vmatprep.subr.mxu0 0.0
    %3420 = vmatpush1.msra.mxu0 0.0
    %3421 = vmatprep.subr.mxu0 0.0
    %3422 = vmatpush1.msra.mxu0 0.0
    %3423 = vmatprep.subr.mxu0 0.0
    %3424 = vmatpush1.msra.mxu0 0.0
    %3425 = vmatprep.subr.mxu0 0.0
    %3426 = vmatpush1.msra.mxu0 0.0
    %3427 = vmatprep.subr.mxu0 0.0
    %3428 = vmatpush1.msra.mxu0 0.0
    %3429 = vmatprep.subr.mxu0 0.0
    %3430 = vmatpush1.msra.mxu0 0.0
    %3431 = vmatprep.subr.mxu0 0.0
    %3432 = vmatpush1.msra.mxu0 0.0
    %3433 = vmatprep.mubr.f32.mxu0 0.0
    %3434 = vmatmul.mubr.f32.gmra.mrb[0].mxu0 %v3367
    %v3435 = vpop.f32.mrb[0].mxu0
    %v3436 = vadd.f32 %v3290, %v3435
    %v3437 = vpop.f32.mrb[0].mxu0
    %3438 = vdwg.mxu0
    %v3441 = vunpack.c.l.s4 1966171168
    %v3442 = vunpack.c.0.s8 %v3441
    %v3443 = vlaneseq
    %v3444 = vshrl.u32 %v3443, 7
    %v3445 = vsub.s32 %v3442, %v3444
    %v3446 = vrot.slane %v3152, %v3445
    %v3447 = vcombine.high %v3446, %v3446
    %v3449 = vunpack.c.l.s4 1966171168
    %v3450 = vunpack.c.0.s8 %v3449
    %v3451 = vlaneseq
    %v3452 = vshrl.u32 %v3451, 7
    %v3453 = vsub.s32 %v3450, %v3452
    %v3454 = vrot.slane %v3446, %v3453
    %v3456 = vunpack.c.l.s4 1966171168
    %v3457 = vunpack.c.0.s8 %v3456
    %v3458 = vlaneseq
    %v3459 = vshrl.u32 %v3458, 7
    %v3460 = vsub.s32 %v3457, %v3459
    %v3461 = vrot.slane %v3447, %v3460
    %v3462 = vlaneseq
    %v3463 = vshrl.u32 %v3462, 7
    %v3464 = vsub.s32 0, %v3463
    %v3465 = vrot.slane %v3454, %v3464
    %v3466 = vlaneseq
    %v3467 = vshrl.u32 %v3466, 7
    %v3468 = vsub.s32 0, %v3467
    %v3469 = vrot.slane %v3461, %v3468
    %v3472 = vadd.f32 %v3363, %v3465
    %v3473 = vadd.f32 %v3436, %v3469
    %v3474 = vxor.u32 %v3472, 2147483648
    %v3475 = vxor.u32 %v3473, 2147483648
    %v3476 = vmul.f32 %v3474, 1.442695
    %v3477 = vpow.pop %v3476
    %v3478 = vmul.f32 %v3475, 1.442695
    %v3479 = vpow.pop %v3478
    %v3480 = vadd.f32 %v3477, 1.0
    %v3481 = vadd.f32 %v3479, 1.0
    %v3482 = vrcp.pop %v3480
    %v3483 = vmul.f32 1.0, %v3482
    %v3484 = vrcp.pop %v3481
    %v3485 = vmul.f32 1.0, %v3484
    %v3486 = vtanh.pop %v3472
    %v3487 = vtanh.pop %v3473
    %v3488 = vmul.f32 %v3483, %v2499
    %v3489 = vmul.f32 %v3485, %v2500
    %3492 = vrot.lane.b32.xlu0 %v3486, 64
    %v3493 = vpop.permute.xlu0 %3492
    %3494 = vrot.lane.b32.xlu0 %v3487, 64
    %v3495 = vpop.permute.xlu0 %3494
    %v3498 = vmul.f32 %v3483, %v3493
    %v3499 = vmul.f32 %v3485, %v3495
    %3502 = vrot.lane.b32.xlu0 %v3498, 32
    %v3503 = vpop.permute.xlu0 %3502
    %3504 = vrot.lane.b32.xlu0 %v3499, 32
    %v3505 = vpop.permute.xlu0 %3504
    %v3508 = vadd.f32 %v3488, %v3503
    %v3509 = vadd.f32 %v3489, %v3505
    %v3510 = vtanh.pop %v3508
    %v3511 = vtanh.pop %v3509
    %3514 = vrot.lane.b32.xlu0 %v3510, 64
    %v3515 = vpop.permute.xlu0 %3514
    %3516 = vrot.lane.b32.xlu0 %v3511, 64
    %v3517 = vpop.permute.xlu0 %3516
    %v3520 = vmul.f32 %v3483, %v3515
    %v3521 = vmul.f32 %v3485, %v3517
    %3523 = vrot.lane.b32.xlu0 %v3520, 32
    %v3524 = vpop.permute.xlu0 %3523
    %v3525 = vsel %vm120, %v3524, 0
    %3527 = vmatprep.subr.mxu0 0.0
    %3528 = vmatpush1.msra.mxu0 %v93
    %3529 = vmatprep.subr.mxu0 0.0
    %3530 = vmatpush1.msra.mxu0 %v94
    %3531 = vmatprep.subr.mxu0 0.0
    %3532 = vmatpush1.msra.mxu0 %v95
    %3533 = vmatprep.subr.mxu0 0.0
    %3534 = vmatpush1.msra.mxu0 %v96
    %3535 = vmatprep.subr.mxu0 0.0
    %3536 = vmatpush1.msra.mxu0 0.0
    %3537 = vmatprep.subr.mxu0 0.0
    %3538 = vmatpush1.msra.mxu0 0.0
    %3539 = vmatprep.subr.mxu0 0.0
    %3540 = vmatpush1.msra.mxu0 0.0
    %3541 = vmatprep.subr.mxu0 0.0
    %3542 = vmatpush1.msra.mxu0 0.0
    %3543 = vmatprep.subr.mxu0 0.0
    %3544 = vmatpush1.msra.mxu0 0.0
    %3545 = vmatprep.subr.mxu0 0.0
    %3546 = vmatpush1.msra.mxu0 0.0
    %3547 = vmatprep.subr.mxu0 0.0
    %3548 = vmatpush1.msra.mxu0 0.0
    %3549 = vmatprep.subr.mxu0 0.0
    %3550 = vmatpush1.msra.mxu0 0.0
    %3551 = vmatprep.subr.mxu0 0.0
    %3552 = vmatpush1.msra.mxu0 0.0
    %3553 = vmatprep.subr.mxu0 0.0
    %3554 = vmatpush1.msra.mxu0 0.0
    %3555 = vmatprep.subr.mxu0 0.0
    %3556 = vmatpush1.msra.mxu0 0.0
    %3557 = vmatprep.subr.mxu0 0.0
    %3558 = vmatpush1.msra.mxu0 0.0
    %3559 = vmatprep.subr.mxu0 0.0
    %3560 = vmatpush1.msra.mxu0 0.0
    %3561 = vmatprep.subr.mxu0 0.0
    %3562 = vmatpush1.msra.mxu0 0.0
    %3563 = vmatprep.subr.mxu0 0.0
    %3564 = vmatpush1.msra.mxu0 0.0
    %3565 = vmatprep.subr.mxu0 0.0
    %3566 = vmatpush1.msra.mxu0 0.0
    %3567 = vmatprep.subr.mxu0 0.0
    %3568 = vmatpush1.msra.mxu0 0.0
    %3569 = vmatprep.subr.mxu0 0.0
    %3570 = vmatpush1.msra.mxu0 0.0
    %3571 = vmatprep.subr.mxu0 0.0
    %3572 = vmatpush1.msra.mxu0 0.0
    %3573 = vmatprep.subr.mxu0 0.0
    %3574 = vmatpush1.msra.mxu0 0.0
    %3575 = vmatprep.subr.mxu0 0.0
    %3576 = vmatpush1.msra.mxu0 0.0
    %3577 = vmatprep.subr.mxu0 0.0
    %3578 = vmatpush1.msra.mxu0 0.0
    %3579 = vmatprep.subr.mxu0 0.0
    %3580 = vmatpush1.msra.mxu0 0.0
    %3581 = vmatprep.subr.mxu0 0.0
    %3582 = vmatpush1.msra.mxu0 0.0
    %3583 = vmatprep.subr.mxu0 0.0
    %3584 = vmatpush1.msra.mxu0 0.0
    %3585 = vmatprep.subr.mxu0 0.0
    %3586 = vmatpush1.msra.mxu0 0.0
    %3587 = vmatprep.subr.mxu0 0.0
    %3588 = vmatpush1.msra.mxu0 0.0
    %3589 = vmatprep.subr.mxu0 0.0
    %3590 = vmatpush1.msra.mxu0 0.0
    %3591 = vmatprep.mubr.f32.mxu0 0.0
    %3592 = vmatmul.mubr.f32.gmra.mrb[0].mxu0 %v3525
    %v3593 = vpop.f32.mrb[0].mxu0
    %v3594 = vadd.f32 0.0, %v3593
    %v3595 = vpop.f32.mrb[0].mxu0
    %3596 = vdwg.mxu0
    %3598 = vrot.lane.b32.xlu0 %v3521, 32
    %v3599 = vpop.permute.xlu0 %3598
    %v3600 = vsel %vm120, %v3599, 0
    %3602 = vmatprep.subr.mxu0 0.0
    %3603 = vmatpush1.msra.mxu0 %v97
    %3604 = vmatprep.subr.mxu0 0.0
    %3605 = vmatpush1.msra.mxu0 %v98
    %3606 = vmatprep.subr.mxu0 0.0
    %3607 = vmatpush1.msra.mxu0 %v99
    %3608 = vmatprep.subr.mxu0 0.0
    %3609 = vmatpush1.msra.mxu0 %v100
    %3610 = vmatprep.subr.mxu0 0.0
    %3611 = vmatpush1.msra.mxu0 0.0
    %3612 = vmatprep.subr.mxu0 0.0
    %3613 = vmatpush1.msra.mxu0 0.0
    %3614 = vmatprep.subr.mxu0 0.0
    %3615 = vmatpush1.msra.mxu0 0.0
    %3616 = vmatprep.subr.mxu0 0.0
    %3617 = vmatpush1.msra.mxu0 0.0
    %3618 = vmatprep.subr.mxu0 0.0
    %3619 = vmatpush1.msra.mxu0 0.0
    %3620 = vmatprep.subr.mxu0 0.0
    %3621 = vmatpush1.msra.mxu0 0.0
    %3622 = vmatprep.subr.mxu0 0.0
    %3623 = vmatpush1.msra.mxu0 0.0
    %3624 = vmatprep.subr.mxu0 0.0
    %3625 = vmatpush1.msra.mxu0 0.0
    %3626 = vmatprep.subr.mxu0 0.0
    %3627 = vmatpush1.msra.mxu0 0.0
    %3628 = vmatprep.subr.mxu0 0.0
    %3629 = vmatpush1.msra.mxu0 0.0
    %3630 = vmatprep.subr.mxu0 0.0
    %3631 = vmatpush1.msra.mxu0 0.0
    %3632 = vmatprep.subr.mxu0 0.0
    %3633 = vmatpush1.msra.mxu0 0.0
    %3634 = vmatprep.subr.mxu0 0.0
    %3635 = vmatpush1.msra.mxu0 0.0
    %3636 = vmatprep.subr.mxu0 0.0
    %3637 = vmatpush1.msra.mxu0 0.0
    %3638 = vmatprep.subr.mxu0 0.0
    %3639 = vmatpush1.msra.mxu0 0.0
    %3640 = vmatprep.subr.mxu0 0.0
    %3641 = vmatpush1.msra.mxu0 0.0
    %3642 = vmatprep.subr.mxu0 0.0
    %3643 = vmatpush1.msra.mxu0 0.0
    %3644 = vmatprep.subr.mxu0 0.0
    %3645 = vmatpush1.msra.mxu0 0.0
    %3646 = vmatprep.subr.mxu0 0.0
    %3647 = vmatpush1.msra.mxu0 0.0
    %3648 = vmatprep.subr.mxu0 0.0
    %3649 = vmatpush1.msra.mxu0 0.0
    %3650 = vmatprep.subr.mxu0 0.0
    %3651 = vmatpush1.msra.mxu0 0.0
    %3652 = vmatprep.subr.mxu0 0.0
    %3653 = vmatpush1.msra.mxu0 0.0
    %3654 = vmatprep.subr.mxu0 0.0
    %3655 = vmatpush1.msra.mxu0 0.0
    %3656 = vmatprep.subr.mxu0 0.0
    %3657 = vmatpush1.msra.mxu0 0.0
    %3658 = vmatprep.subr.mxu0 0.0
    %3659 = vmatpush1.msra.mxu0 0.0
    %3660 = vmatprep.subr.mxu0 0.0
    %3661 = vmatpush1.msra.mxu0 0.0
    %3662 = vmatprep.subr.mxu0 0.0
    %3663 = vmatpush1.msra.mxu0 0.0
    %3664 = vmatprep.subr.mxu0 0.0
    %3665 = vmatpush1.msra.mxu0 0.0
    %3666 = vmatprep.mubr.f32.mxu0 0.0
    %3667 = vmatmul.mubr.f32.gmra.mrb[0].mxu0 %v3600
    %v3668 = vpop.f32.mrb[0].mxu0
    %v3669 = vadd.f32 0.0, %v3668
    %v3670 = vpop.f32.mrb[0].mxu0
    %3671 = vdwg.mxu0
    %v3675 = vunpack.c.l.s4 1966171168
    %v3676 = vunpack.c.0.s8 %v3675
    %v3677 = vlaneseq
    %v3678 = vshrl.u32 %v3677, 7
    %v3679 = vsub.s32 %v3676, %v3678
    %v3680 = vrot.slane %v3594, %v3679
    %v3681 = vcombine.high %v3680, %v3680
    %v3683 = vunpack.c.l.s4 1966171168
    %v3684 = vunpack.c.0.s8 %v3683
    %v3685 = vlaneseq
    %v3686 = vshrl.u32 %v3685, 7
    %v3687 = vsub.s32 %v3684, %v3686
    %v3688 = vrot.slane %v3680, %v3687
    %v3690 = vunpack.c.l.s4 1966171168
    %v3691 = vunpack.c.0.s8 %v3690
    %v3692 = vlaneseq
    %v3693 = vshrl.u32 %v3692, 7
    %v3694 = vsub.s32 %v3691, %v3693
    %v3695 = vrot.slane %v3681, %v3694
    %v3697 = vunpack.c.l.s4 1966171168
    %v3698 = vunpack.c.0.s8 %v3697
    %v3699 = vlaneseq
    %v3700 = vshrl.u32 %v3699, 7
    %v3701 = vsub.s32 %v3698, %v3700
    %v3702 = vrot.slane %v3669, %v3701
    %v3703 = vcombine.high %v3702, %v3702
    %v3705 = vunpack.c.l.s4 1966171168
    %v3706 = vunpack.c.0.s8 %v3705
    %v3707 = vlaneseq
    %v3708 = vshrl.u32 %v3707, 7
    %v3709 = vsub.s32 %v3706, %v3708
    %v3710 = vrot.slane %v3702, %v3709
    %v3712 = vunpack.c.l.s4 1966171168
    %v3713 = vunpack.c.0.s8 %v3712
    %v3714 = vlaneseq
    %v3715 = vshrl.u32 %v3714, 7
    %v3716 = vsub.s32 %v3713, %v3715
    %v3717 = vrot.slane %v3703, %v3716
    %v3718 = vlaneseq
    %v3719 = vshrl.u32 %v3718, 7
    %v3720 = vsub.s32 0, %v3719
    %v3721 = vrot.slane %v3688, %v3720
    %v3722 = vlaneseq
    %v3723 = vshrl.u32 %v3722, 7
    %v3724 = vsub.s32 0, %v3723
    %v3725 = vrot.slane %v3695, %v3724
    %v3726 = vlaneseq
    %v3727 = vshrl.u32 %v3726, 7
    %v3728 = vsub.s32 0, %v3727
    %v3729 = vrot.slane %v3710, %v3728
    %v3730 = vlaneseq
    %v3731 = vshrl.u32 %v3730, 7
    %v3732 = vsub.s32 0, %v3731
    %v3733 = vrot.slane %v3717, %v3732
    %v3738 = vmul.f32 %v68, %v3721
    %v3739 = vmul.f32 %v69, %v3725
    %v3740 = vmul.f32 %v68, %v3729
    %v3741 = vmul.f32 %v69, %v3733
    %v3742 = vsel %vm120, %v3738, 0.0
    %3743 = vadd.xlane.f32.xlu0 %v3742
    %v3744 = vpop.xlane.xlu0 %3743
    %v3745 = vsel %vm120, %v3739, 0.0
    %3746 = vadd.xlane.f32.xlu0 %v3745
    %v3747 = vpop.xlane.xlu0 %3746
    %v3748 = vsel %vm120, %v3740, 0.0
    %3749 = vadd.xlane.f32.xlu0 %v3748
    %v3750 = vpop.xlane.xlu0 %3749
    %v3751 = vsel %vm120, %v3741, 0.0
    %3752 = vadd.xlane.f32.xlu0 %v3751
    %v3753 = vpop.xlane.xlu0 %3752
    %v3758 = vlaneseq
    %v3759 = vshrl.u32 %v3758, 7
    %v3760 = vsub.s32 %v72, %v3759
    %v3761 = vrot.slane %v3744, %v3760
    %v3762 = vlaneseq
    %v3763 = vshrl.u32 %v3762, 7
    %v3764 = vsub.s32 %v72, %v3763
    %v3765 = vrot.slane %v3747, %v3764
    %v3766 = vlaneseq
    %v3767 = vshrl.u32 %v3766, 7
    %v3768 = vsub.s32 %v72, %v3767
    %v3769 = vrot.slane %v3750, %v3768
    %v3770 = vlaneseq
    %v3771 = vshrl.u32 %v3770, 7
    %v3772 = vsub.s32 %v72, %v3771
    %v3773 = vrot.slane %v3753, %v3772
    %v3774 = vsel %vm745, %v3765, %v3761
    %v3775 = vsel %vm745, %v3773, %v3769
    %v3778 = vsel %vm724, %v3774, -1e+30
    %v3779 = vsel %vm724, %v3775, -1e+30
    %v3780 = vsel %vm752, %v3778, -inf
    %3781 = vmax.xlane.f32.xlu0 %v3780
    %v3782 = vpop.xlane.xlu0 %3781
    %v3783 = vsel %vm752, %v3779, -inf
    %3784 = vmax.xlane.f32.xlu0 %v3783
    %v3785 = vpop.xlane.xlu0 %3784
    %v3786 = vsub.f32 %v3778, %v3782
    %v3787 = vsub.f32 %v3779, %v3785
    %v3788 = vmul.f32 %v3786, 1.442695
    %v3789 = vpow.pop %v3788
    %v3790 = vmul.f32 %v3787, 1.442695
    %v3791 = vpow.pop %v3790
    %v3792 = vsel %vm752, %v3789, 0.0
    %3793 = vadd.xlane.f32.xlu0 %v3792
    %v3794 = vpop.xlane.xlu0 %3793
    %v3795 = vsel %vm752, %v3791, 0.0
    %3796 = vadd.xlane.f32.xlu0 %v3795
    %v3797 = vpop.xlane.xlu0 %3796
    %v3798 = vrcp.pop %v3794
    %v3799 = vrcp.pop %v3797
    %v3800 = vmul.f32 %v3794, %v3798
    %v3801 = vmul.f32 %v3797, %v3799
    %v3802 = vsub.f32 2.0, %v3800
    %v3803 = vsub.f32 2.0, %v3801
    %v3804 = vmul.f32 %v3798, %v3802
    %v3805 = vmul.f32 %v3799, %v3803
    %v3806 = vmul.f32 %v3789, %v3804
    %v3807 = vmul.f32 %v3791, %v3805
    %v3808 = vlaneseq
    %v3809 = vshrl.u32 %v3808, 7
    %v3810 = vsub.s32 0, %v3809
    %v3811 = vrot.slane %v3806, %v3810
    %3813 = vbcast.lane.b32.xlu0 %v3811, 256
    %v3814 = vpop.permute.xlu0 %3813
    %v3815 = vlaneseq
    %v3816 = vshrl.u32 %v3815, 7
    %v3817 = vsub.s32 1, %v3816
    %v3818 = vrot.slane %v3806, %v3817
    %3820 = vbcast.lane.b32.xlu0 %v3818, 256
    %v3821 = vpop.permute.xlu0 %3820
    %v3822 = vlaneseq
    %v3823 = vshrl.u32 %v3822, 7
    %v3824 = vsub.s32 0, %v3823
    %v3825 = vrot.slane %v3807, %v3824
    %3827 = vbcast.lane.b32.xlu0 %v3825, 256
    %v3828 = vpop.permute.xlu0 %3827
    %v3829 = vlaneseq
    %v3830 = vshrl.u32 %v3829, 7
    %v3831 = vsub.s32 1, %v3830
    %v3832 = vrot.slane %v3807, %v3831
    %3834 = vbcast.lane.b32.xlu0 %v3832, 256
    %v3835 = vpop.permute.xlu0 %3834
    %v3836 = vmul.f32 %v68, %v3814
    %v3837 = vmul.f32 %v69, %v3821
    %v3838 = vmul.f32 %v68, %v3828
    %v3839 = vmul.f32 %v69, %v3835
    %v3840 = vsel %vm120, %v3836, 0.0
    %v3841 = vrot.slane %v3840, 4
    %v3842 = vadd.f32 %v3840, %v3841
    %v3843 = vrot.slane %v3842, 2
    %v3844 = vadd.f32 %v3842, %v3843
    %v3845 = vrot.slane %v3844, 1
    %v3846 = vadd.f32 %v3844, %v3845
    %v3847 = vsel %vm120, %v3837, 0.0
    %v3848 = vrot.slane %v3847, 4
    %v3849 = vadd.f32 %v3847, %v3848
    %v3850 = vrot.slane %v3849, 2
    %v3851 = vadd.f32 %v3849, %v3850
    %v3852 = vrot.slane %v3851, 1
    %v3853 = vadd.f32 %v3851, %v3852
    %v3854 = vsel %vm120, %v3838, 0.0
    %v3855 = vrot.slane %v3854, 4
    %v3856 = vadd.f32 %v3854, %v3855
    %v3857 = vrot.slane %v3856, 2
    %v3858 = vadd.f32 %v3856, %v3857
    %v3859 = vrot.slane %v3858, 1
    %v3860 = vadd.f32 %v3858, %v3859
    %v3861 = vsel %vm120, %v3839, 0.0
    %v3862 = vrot.slane %v3861, 4
    %v3863 = vadd.f32 %v3861, %v3862
    %v3864 = vrot.slane %v3863, 2
    %v3865 = vadd.f32 %v3863, %v3864
    %v3866 = vrot.slane %v3865, 1
    %v3867 = vadd.f32 %v3865, %v3866
    %3868 = vmatprep.subr.mxu0 0.0
    %3869 = vmatpush1.msra.mxu0 %v109
    %3870 = vmatprep.subr.mxu0 0.0
    %3871 = vmatpush1.msra.mxu0 %v110
    %3872 = vmatprep.subr.mxu0 0.0
    %3873 = vmatpush1.msra.mxu0 %v111
    %3874 = vmatprep.subr.mxu0 0.0
    %3875 = vmatpush1.msra.mxu0 %v112
    %3876 = vmatprep.subr.mxu0 0.0
    %3877 = vmatpush1.msra.mxu0 0.0
    %3878 = vmatprep.subr.mxu0 0.0
    %3879 = vmatpush1.msra.mxu0 0.0
    %3880 = vmatprep.subr.mxu0 0.0
    %3881 = vmatpush1.msra.mxu0 0.0
    %3882 = vmatprep.subr.mxu0 0.0
    %3883 = vmatpush1.msra.mxu0 0.0
    %3884 = vmatprep.subr.mxu0 0.0
    %3885 = vmatpush1.msra.mxu0 0.0
    %3886 = vmatprep.subr.mxu0 0.0
    %3887 = vmatpush1.msra.mxu0 0.0
    %3888 = vmatprep.subr.mxu0 0.0
    %3889 = vmatpush1.msra.mxu0 0.0
    %3890 = vmatprep.subr.mxu0 0.0
    %3891 = vmatpush1.msra.mxu0 0.0
    %3892 = vmatprep.subr.mxu0 0.0
    %3893 = vmatpush1.msra.mxu0 0.0
    %3894 = vmatprep.subr.mxu0 0.0
    %3895 = vmatpush1.msra.mxu0 0.0
    %3896 = vmatprep.subr.mxu0 0.0
    %3897 = vmatpush1.msra.mxu0 0.0
    %3898 = vmatprep.subr.mxu0 0.0
    %3899 = vmatpush1.msra.mxu0 0.0
    %3900 = vmatprep.subr.mxu0 0.0
    %3901 = vmatpush1.msra.mxu0 0.0
    %3902 = vmatprep.subr.mxu0 0.0
    %3903 = vmatpush1.msra.mxu0 0.0
    %3904 = vmatprep.subr.mxu0 0.0
    %3905 = vmatpush1.msra.mxu0 0.0
    %3906 = vmatprep.subr.mxu0 0.0
    %3907 = vmatpush1.msra.mxu0 0.0
    %3908 = vmatprep.subr.mxu0 0.0
    %3909 = vmatpush1.msra.mxu0 0.0
    %3910 = vmatprep.subr.mxu0 0.0
    %3911 = vmatpush1.msra.mxu0 0.0
    %3912 = vmatprep.subr.mxu0 0.0
    %3913 = vmatpush1.msra.mxu0 0.0
    %3914 = vmatprep.subr.mxu0 0.0
    %3915 = vmatpush1.msra.mxu0 0.0
    %3916 = vmatprep.subr.mxu0 0.0
    %3917 = vmatpush1.msra.mxu0 0.0
    %3918 = vmatprep.subr.mxu0 0.0
    %3919 = vmatpush1.msra.mxu0 0.0
    %3920 = vmatprep.subr.mxu0 0.0
    %3921 = vmatpush1.msra.mxu0 0.0
    %3922 = vmatprep.subr.mxu0 0.0
    %3923 = vmatpush1.msra.mxu0 0.0
    %3924 = vmatprep.subr.mxu0 0.0
    %3925 = vmatpush1.msra.mxu0 0.0
    %3926 = vmatprep.subr.mxu0 0.0
    %3927 = vmatpush1.msra.mxu0 0.0
    %3928 = vmatprep.subr.mxu0 0.0
    %3929 = vmatpush1.msra.mxu0 0.0
    %3930 = vmatprep.subr.mxu0 0.0
    %3931 = vmatpush1.msra.mxu0 0.0
    %3932 = vmatprep.mubr.f32.mxu0 0.0
    %3933 = vmatmul.mubr.f32.gmra.mrb[0].mxu0 %v3525
    %v3934 = vpop.f32.mrb[0].mxu0
    %v3935 = vadd.f32 0.0, %v3934
    %v3936 = vpop.f32.mrb[0].mxu0
    %3937 = vdwg.mxu0
    %3938 = vmatprep.subr.mxu0 0.0
    %3939 = vmatpush1.msra.mxu0 %v113
    %3940 = vmatprep.subr.mxu0 0.0
    %3941 = vmatpush1.msra.mxu0 %v114
    %3942 = vmatprep.subr.mxu0 0.0
    %3943 = vmatpush1.msra.mxu0 %v115
    %3944 = vmatprep.subr.mxu0 0.0
    %3945 = vmatpush1.msra.mxu0 %v116
    %3946 = vmatprep.subr.mxu0 0.0
    %3947 = vmatpush1.msra.mxu0 0.0
    %3948 = vmatprep.subr.mxu0 0.0
    %3949 = vmatpush1.msra.mxu0 0.0
    %3950 = vmatprep.subr.mxu0 0.0
    %3951 = vmatpush1.msra.mxu0 0.0
    %3952 = vmatprep.subr.mxu0 0.0
    %3953 = vmatpush1.msra.mxu0 0.0
    %3954 = vmatprep.subr.mxu0 0.0
    %3955 = vmatpush1.msra.mxu0 0.0
    %3956 = vmatprep.subr.mxu0 0.0
    %3957 = vmatpush1.msra.mxu0 0.0
    %3958 = vmatprep.subr.mxu0 0.0
    %3959 = vmatpush1.msra.mxu0 0.0
    %3960 = vmatprep.subr.mxu0 0.0
    %3961 = vmatpush1.msra.mxu0 0.0
    %3962 = vmatprep.subr.mxu0 0.0
    %3963 = vmatpush1.msra.mxu0 0.0
    %3964 = vmatprep.subr.mxu0 0.0
    %3965 = vmatpush1.msra.mxu0 0.0
    %3966 = vmatprep.subr.mxu0 0.0
    %3967 = vmatpush1.msra.mxu0 0.0
    %3968 = vmatprep.subr.mxu0 0.0
    %3969 = vmatpush1.msra.mxu0 0.0
    %3970 = vmatprep.subr.mxu0 0.0
    %3971 = vmatpush1.msra.mxu0 0.0
    %3972 = vmatprep.subr.mxu0 0.0
    %3973 = vmatpush1.msra.mxu0 0.0
    %3974 = vmatprep.subr.mxu0 0.0
    %3975 = vmatpush1.msra.mxu0 0.0
    %3976 = vmatprep.subr.mxu0 0.0
    %3977 = vmatpush1.msra.mxu0 0.0
    %3978 = vmatprep.subr.mxu0 0.0
    %3979 = vmatpush1.msra.mxu0 0.0
    %3980 = vmatprep.subr.mxu0 0.0
    %3981 = vmatpush1.msra.mxu0 0.0
    %3982 = vmatprep.subr.mxu0 0.0
    %3983 = vmatpush1.msra.mxu0 0.0
    %3984 = vmatprep.subr.mxu0 0.0
    %3985 = vmatpush1.msra.mxu0 0.0
    %3986 = vmatprep.subr.mxu0 0.0
    %3987 = vmatpush1.msra.mxu0 0.0
    %3988 = vmatprep.subr.mxu0 0.0
    %3989 = vmatpush1.msra.mxu0 0.0
    %3990 = vmatprep.subr.mxu0 0.0
    %3991 = vmatpush1.msra.mxu0 0.0
    %3992 = vmatprep.subr.mxu0 0.0
    %3993 = vmatpush1.msra.mxu0 0.0
    %3994 = vmatprep.subr.mxu0 0.0
    %3995 = vmatpush1.msra.mxu0 0.0
    %3996 = vmatprep.subr.mxu0 0.0
    %3997 = vmatpush1.msra.mxu0 0.0
    %3998 = vmatprep.subr.mxu0 0.0
    %3999 = vmatpush1.msra.mxu0 0.0
    %4000 = vmatprep.subr.mxu0 0.0
    %4001 = vmatpush1.msra.mxu0 0.0
    %4002 = vmatprep.mubr.f32.mxu0 0.0
    %4003 = vmatmul.mubr.f32.gmra.mrb[0].mxu0 %v3600
    %v4004 = vpop.f32.mrb[0].mxu0
    %v4005 = vadd.f32 0.0, %v4004
    %v4006 = vpop.f32.mrb[0].mxu0
    %4007 = vdwg.mxu0
    %v4010 = vsel %vm745, %v3853, %v3846
    %v4011 = vsel %vm120, %v4010, 0
    %4013 = vmatprep.subr.mxu0 0.0
    %4014 = vmatpush1.msra.mxu0 %v101
    %4015 = vmatprep.subr.mxu0 0.0
    %4016 = vmatpush1.msra.mxu0 %v102
    %4017 = vmatprep.subr.mxu0 0.0
    %4018 = vmatpush1.msra.mxu0 %v103
    %4019 = vmatprep.subr.mxu0 0.0
    %4020 = vmatpush1.msra.mxu0 %v104
    %4021 = vmatprep.subr.mxu0 0.0
    %4022 = vmatpush1.msra.mxu0 0.0
    %4023 = vmatprep.subr.mxu0 0.0
    %4024 = vmatpush1.msra.mxu0 0.0
    %4025 = vmatprep.subr.mxu0 0.0
    %4026 = vmatpush1.msra.mxu0 0.0
    %4027 = vmatprep.subr.mxu0 0.0
    %4028 = vmatpush1.msra.mxu0 0.0
    %4029 = vmatprep.subr.mxu0 0.0
    %4030 = vmatpush1.msra.mxu0 0.0
    %4031 = vmatprep.subr.mxu0 0.0
    %4032 = vmatpush1.msra.mxu0 0.0
    %4033 = vmatprep.subr.mxu0 0.0
    %4034 = vmatpush1.msra.mxu0 0.0
    %4035 = vmatprep.subr.mxu0 0.0
    %4036 = vmatpush1.msra.mxu0 0.0
    %4037 = vmatprep.subr.mxu0 0.0
    %4038 = vmatpush1.msra.mxu0 0.0
    %4039 = vmatprep.subr.mxu0 0.0
    %4040 = vmatpush1.msra.mxu0 0.0
    %4041 = vmatprep.subr.mxu0 0.0
    %4042 = vmatpush1.msra.mxu0 0.0
    %4043 = vmatprep.subr.mxu0 0.0
    %4044 = vmatpush1.msra.mxu0 0.0
    %4045 = vmatprep.subr.mxu0 0.0
    %4046 = vmatpush1.msra.mxu0 0.0
    %4047 = vmatprep.subr.mxu0 0.0
    %4048 = vmatpush1.msra.mxu0 0.0
    %4049 = vmatprep.subr.mxu0 0.0
    %4050 = vmatpush1.msra.mxu0 0.0
    %4051 = vmatprep.subr.mxu0 0.0
    %4052 = vmatpush1.msra.mxu0 0.0
    %4053 = vmatprep.subr.mxu0 0.0
    %4054 = vmatpush1.msra.mxu0 0.0
    %4055 = vmatprep.subr.mxu0 0.0
    %4056 = vmatpush1.msra.mxu0 0.0
    %4057 = vmatprep.subr.mxu0 0.0
    %4058 = vmatpush1.msra.mxu0 0.0
    %4059 = vmatprep.subr.mxu0 0.0
    %4060 = vmatpush1.msra.mxu0 0.0
    %4061 = vmatprep.subr.mxu0 0.0
    %4062 = vmatpush1.msra.mxu0 0.0
    %4063 = vmatprep.subr.mxu0 0.0
    %4064 = vmatpush1.msra.mxu0 0.0
    %4065 = vmatprep.subr.mxu0 0.0
    %4066 = vmatpush1.msra.mxu0 0.0
    %4067 = vmatprep.subr.mxu0 0.0
    %4068 = vmatpush1.msra.mxu0 0.0
    %4069 = vmatprep.subr.mxu0 0.0
    %4070 = vmatpush1.msra.mxu0 0.0
    %4071 = vmatprep.subr.mxu0 0.0
    %4072 = vmatpush1.msra.mxu0 0.0
    %4073 = vmatprep.subr.mxu0 0.0
    %4074 = vmatpush1.msra.mxu0 0.0
    %4075 = vmatprep.subr.mxu0 0.0
    %4076 = vmatpush1.msra.mxu0 0.0
    %4077 = vmatprep.mubr.f32.mxu0 0.0
    %4078 = vmatmul.mubr.f32.gmra.mrb[0].mxu0 %v4011
    %v4079 = vpop.f32.mrb[0].mxu0
    %v4080 = vadd.f32 %v3935, %v4079
    %v4081 = vpop.f32.mrb[0].mxu0
    %4082 = vdwg.mxu0
    %v4085 = vsel %vm745, %v3867, %v3860
    %v4086 = vsel %vm120, %v4085, 0
    %4088 = vmatprep.subr.mxu0 0.0
    %4089 = vmatpush1.msra.mxu0 %v105
    %4090 = vmatprep.subr.mxu0 0.0
    %4091 = vmatpush1.msra.mxu0 %v106
    %4092 = vmatprep.subr.mxu0 0.0
    %4093 = vmatpush1.msra.mxu0 %v107
    %4094 = vmatprep.subr.mxu0 0.0
    %4095 = vmatpush1.msra.mxu0 %v108
    %4096 = vmatprep.subr.mxu0 0.0
    %4097 = vmatpush1.msra.mxu0 0.0
    %4098 = vmatprep.subr.mxu0 0.0
    %4099 = vmatpush1.msra.mxu0 0.0
    %4100 = vmatprep.subr.mxu0 0.0
    %4101 = vmatpush1.msra.mxu0 0.0
    %4102 = vmatprep.subr.mxu0 0.0
    %4103 = vmatpush1.msra.mxu0 0.0
    %4104 = vmatprep.subr.mxu0 0.0
    %4105 = vmatpush1.msra.mxu0 0.0
    %4106 = vmatprep.subr.mxu0 0.0
    %4107 = vmatpush1.msra.mxu0 0.0
    %4108 = vmatprep.subr.mxu0 0.0
    %4109 = vmatpush1.msra.mxu0 0.0
    %4110 = vmatprep.subr.mxu0 0.0
    %4111 = vmatpush1.msra.mxu0 0.0
    %4112 = vmatprep.subr.mxu0 0.0
    %4113 = vmatpush1.msra.mxu0 0.0
    %4114 = vmatprep.subr.mxu0 0.0
    %4115 = vmatpush1.msra.mxu0 0.0
    %4116 = vmatprep.subr.mxu0 0.0
    %4117 = vmatpush1.msra.mxu0 0.0
    %4118 = vmatprep.subr.mxu0 0.0
    %4119 = vmatpush1.msra.mxu0 0.0
    %4120 = vmatprep.subr.mxu0 0.0
    %4121 = vmatpush1.msra.mxu0 0.0
    %4122 = vmatprep.subr.mxu0 0.0
    %4123 = vmatpush1.msra.mxu0 0.0
    %4124 = vmatprep.subr.mxu0 0.0
    %4125 = vmatpush1.msra.mxu0 0.0
    %4126 = vmatprep.subr.mxu0 0.0
    %4127 = vmatpush1.msra.mxu0 0.0
    %4128 = vmatprep.subr.mxu0 0.0
    %4129 = vmatpush1.msra.mxu0 0.0
    %4130 = vmatprep.subr.mxu0 0.0
    %4131 = vmatpush1.msra.mxu0 0.0
    %4132 = vmatprep.subr.mxu0 0.0
    %4133 = vmatpush1.msra.mxu0 0.0
    %4134 = vmatprep.subr.mxu0 0.0
    %4135 = vmatpush1.msra.mxu0 0.0
    %4136 = vmatprep.subr.mxu0 0.0
    %4137 = vmatpush1.msra.mxu0 0.0
    %4138 = vmatprep.subr.mxu0 0.0
    %4139 = vmatpush1.msra.mxu0 0.0
    %4140 = vmatprep.subr.mxu0 0.0
    %4141 = vmatpush1.msra.mxu0 0.0
    %4142 = vmatprep.subr.mxu0 0.0
    %4143 = vmatpush1.msra.mxu0 0.0
    %4144 = vmatprep.subr.mxu0 0.0
    %4145 = vmatpush1.msra.mxu0 0.0
    %4146 = vmatprep.subr.mxu0 0.0
    %4147 = vmatpush1.msra.mxu0 0.0
    %4148 = vmatprep.subr.mxu0 0.0
    %4149 = vmatpush1.msra.mxu0 0.0
    %4150 = vmatprep.subr.mxu0 0.0
    %4151 = vmatpush1.msra.mxu0 0.0
    %4152 = vmatprep.mubr.f32.mxu0 0.0
    %4153 = vmatmul.mubr.f32.gmra.mrb[0].mxu0 %v4086
    %v4154 = vpop.f32.mrb[0].mxu0
    %v4155 = vadd.f32 %v4005, %v4154
    %v4156 = vpop.f32.mrb[0].mxu0
    %4157 = vdwg.mxu0
    %v4158 = vtanh.pop %v4080
    %v4159 = vtanh.pop %v4155
    %4161 = vrot.lane.b32.xlu0 %v4159, 32
    %v4162 = vpop.permute.xlu0 %4161
    %4164 = vrot.lane.b32.xlu0 %v2140, 64
    %v4165 = vpop.permute.xlu0 %4164
    %4167 = vrot.lane.b32.xlu0 %v3150, 96
    %v4168 = vpop.permute.xlu0 %4167
    %4170 = vrot.lane.b32.xlu0 %v2141, 32
    %v4171 = vpop.permute.xlu0 %4170
    %4174 = vrot.lane.b32.xlu0 %v4158, 64
    %v4175 = vpop.permute.xlu0 %4174
    %4177 = vrot.lane.b32.xlu0 %v1132, 96
    %v4178 = vpop.permute.xlu0 %4177
    %v4180 = vsel %vm120, %v1131, %v4162
    %vm4181 = vcmask 523264
    %v4182 = vsel %vm4181, %v4180, %v4165
    %vm4183 = vcmask 785408
    %v4184 = vsel %vm4183, %v4182, %v4168
    %v4185 = vsel %vm120, %v3149, %v4171
    %v4186 = vsel %vm4181, %v4185, %v4175
    %v4187 = vsel %vm4183, %v4186, %v4178
    %v4188 = vld [vmem:[%s10] sm:$0xff]
    %v4189 = vld [vmem:[%s10 + $0x8] sm:$0xff]
    %v4190 = vld [vmem:[%s10 + $0x10] sm:$0xff]
    %v4191 = vld [vmem:[%s10 + $0x18] sm:$0xff]
    %v4192 = vld [vmem:[%s10 + $0x20] sm:$0xff]
    %v4193 = vld [vmem:[%s10 + $0x28] sm:$0xff]
    %v4194 = vld [vmem:[%s10 + $0x30] sm:$0xff]
    %v4195 = vld [vmem:[%s10 + $0x38] sm:$0xff]
    %v4196 = vld [vmem:[%s10 + $0x40] sm:$0xff]
    %v4197 = vld [vmem:[%s10 + $0x48] sm:$0xff]
    %v4198 = vld [vmem:[%s10 + $0x50] sm:$0xff]
    %v4199 = vld [vmem:[%s10 + $0x58] sm:$0xff]
    %v4200 = vld [vmem:[%s10 + $0x60] sm:$0xff]
    %v4201 = vld [vmem:[%s10 + $0x68] sm:$0xff]
    %v4202 = vld [vmem:[%s10 + $0x70] sm:$0xff]
    %v4203 = vld [vmem:[%s10 + $0x78] sm:$0xff]
    %v4204 = vld [vmem:[%s10 + $0x80] sm:$0xff]
    %v4205 = vld [vmem:[%s10 + $0x88] sm:$0xff]
    %v4206 = vld [vmem:[%s10 + $0x90] sm:$0xff]
    %v4207 = vld [vmem:[%s10 + $0x98] sm:$0xff]
    %v4208 = vld [vmem:[%s10 + $0xa0] sm:$0xff]
    %v4209 = vld [vmem:[%s10 + $0xa8] sm:$0xff]
    %v4210 = vld [vmem:[%s10 + $0xb0] sm:$0xff]
    %v4211 = vld [vmem:[%s10 + $0xb8] sm:$0xff]
    %v4212 = vld [vmem:[%s10 + $0xc0] sm:$0xff]
    %v4213 = vld [vmem:[%s10 + $0xc8] sm:$0xff]
    %v4214 = vld [vmem:[%s10 + $0xd0] sm:$0xff]
    %v4215 = vld [vmem:[%s10 + $0xd8] sm:$0xff]
    %v4216 = vld [vmem:[%s10 + $0xe0] sm:$0xff]
    %v4217 = vld [vmem:[%s10 + $0xe8] sm:$0xff]
    %v4218 = vld [vmem:[%s10 + $0xf0] sm:$0xff]
    %v4219 = vld [vmem:[%s10 + $0xf8] sm:$0xff]
    %v4220 = vld [vmem:[%s11] sm:$0x1]
    %v4222 = vlaneseq
    %v4223 = vshrl.u32 %v4222, 7
    %v4224 = vsub.s32 0, %v4223
    %v4225 = vrot.slane %v4220, %v4224
    %4227 = vmatprep.subr.mxu0 0.0
    %4228 = vmatpush1.msra.mxu0 %v4188
    %4229 = vmatprep.subr.mxu0 0.0
    %4230 = vmatpush1.msra.mxu0 %v4189
    %4231 = vmatprep.subr.mxu0 0.0
    %4232 = vmatpush1.msra.mxu0 %v4190
    %4233 = vmatprep.subr.mxu0 0.0
    %4234 = vmatpush1.msra.mxu0 %v4191
    %4235 = vmatprep.subr.mxu0 0.0
    %4236 = vmatpush1.msra.mxu0 %v4192
    %4237 = vmatprep.subr.mxu0 0.0
    %4238 = vmatpush1.msra.mxu0 %v4193
    %4239 = vmatprep.subr.mxu0 0.0
    %4240 = vmatpush1.msra.mxu0 %v4194
    %4241 = vmatprep.subr.mxu0 0.0
    %4242 = vmatpush1.msra.mxu0 %v4195
    %4243 = vmatprep.subr.mxu0 0.0
    %4244 = vmatpush1.msra.mxu0 %v4196
    %4245 = vmatprep.subr.mxu0 0.0
    %4246 = vmatpush1.msra.mxu0 %v4197
    %4247 = vmatprep.subr.mxu0 0.0
    %4248 = vmatpush1.msra.mxu0 %v4198
    %4249 = vmatprep.subr.mxu0 0.0
    %4250 = vmatpush1.msra.mxu0 %v4199
    %4251 = vmatprep.subr.mxu0 0.0
    %4252 = vmatpush1.msra.mxu0 %v4200
    %4253 = vmatprep.subr.mxu0 0.0
    %4254 = vmatpush1.msra.mxu0 %v4201
    %4255 = vmatprep.subr.mxu0 0.0
    %4256 = vmatpush1.msra.mxu0 %v4202
    %4257 = vmatprep.subr.mxu0 0.0
    %4258 = vmatpush1.msra.mxu0 %v4203
    %4259 = vmatprep.subr.mxu0 0.0
    %4260 = vmatpush1.msra.mxu0 %v4204
    %4261 = vmatprep.subr.mxu0 0.0
    %4262 = vmatpush1.msra.mxu0 %v4205
    %4263 = vmatprep.subr.mxu0 0.0
    %4264 = vmatpush1.msra.mxu0 %v4206
    %4265 = vmatprep.subr.mxu0 0.0
    %4266 = vmatpush1.msra.mxu0 %v4207
    %4267 = vmatprep.subr.mxu0 0.0
    %4268 = vmatpush1.msra.mxu0 %v4208
    %4269 = vmatprep.subr.mxu0 0.0
    %4270 = vmatpush1.msra.mxu0 %v4209
    %4271 = vmatprep.subr.mxu0 0.0
    %4272 = vmatpush1.msra.mxu0 %v4210
    %4273 = vmatprep.subr.mxu0 0.0
    %4274 = vmatpush1.msra.mxu0 %v4211
    %4275 = vmatprep.subr.mxu0 0.0
    %4276 = vmatpush1.msra.mxu0 %v4212
    %4277 = vmatprep.subr.mxu0 0.0
    %4278 = vmatpush1.msra.mxu0 %v4213
    %4279 = vmatprep.subr.mxu0 0.0
    %4280 = vmatpush1.msra.mxu0 %v4214
    %4281 = vmatprep.subr.mxu0 0.0
    %4282 = vmatpush1.msra.mxu0 %v4215
    %4283 = vmatprep.subr.mxu0 0.0
    %4284 = vmatpush1.msra.mxu0 %v4216
    %4285 = vmatprep.subr.mxu0 0.0
    %4286 = vmatpush1.msra.mxu0 %v4217
    %4287 = vmatprep.subr.mxu0 0.0
    %4288 = vmatpush1.msra.mxu0 %v4218
    %4289 = vmatprep.subr.mxu0 0.0
    %4290 = vmatpush1.msra.mxu0 %v4219
    %4291 = vmatprep.mubr.f32.mxu0 %v4187
    %4292 = vmatmul.mubr.f32.gmra.mrb[0].mxu0 %v4184
    %v4293 = vpop.f32.mrb[0].mxu0
    %v4294 = vadd.f32 %v4225, %v4293
    %v4295 = vpop.f32.mrb[0].mxu0
    %4296 = vdwg.mxu0
    %4297 = vst.msk [vmem:[#allocation7] sm:$0x3] %vm752, %v4294
    // Predicated region
    $region58: #{tpu_custom_call.1} parent=1 // pred_check
      _
    $region59: #{tpu_custom_call.1} parent=1 // pred_check_branch
      %4299 = sbr.rel (0) target = $region61
    $region60: #{tpu_custom_call.1} parent=1 // pred_region
      %s4301 = ssub.s32 32, 32
      %4302 = vsyncadd [#allocation4], %s4301
      %s4304 = sshll.u32 [#allocation7], 4
      %s4305 = int_to_ptr.vmem [resolvable:$true] %s4304
      %4307 = dma.vmem_to_hbm [thread:$0]  %s4305, 32, %s12, [#allocation4]
    $region61: #{tpu_custom_call.1} parent=1 // pred_fallthru
      _
    // Predicated region
    $region62: #{tpu_custom_call.1} parent=1 // pred_check
      _
    $region63: #{tpu_custom_call.1} parent=1 // pred_check_branch
      %4309 = sbr.rel (0) target = $region65
    $region64: #{tpu_custom_call.1} parent=1 // pred_region
      %4310 = dma.done [#allocation4], 32
    $region65: #{tpu_custom_call.1} parent=1 // pred_fallthru
      _
    %4311 = vsyncpa [#allocation3], 1
    %4312 = vsyncpa [#allocation6], 1
    %4313 = vsyncpa [#allocation4], 1

</llo_original>
